<compile_context>
chip_gen: v7x
topology: tpu7x:2x2x1
jax: 0.10.0
libtpu: 0.0.40
codegen_flags: <defaults>
</compile_context>

<pallas_src>
import jax
import jax.numpy as jnp
from jax import lax
from jax.experimental import pallas as pl
from jax.experimental.pallas import tpu as pltpu


def _round_up(x, m):
    return ((x + m - 1) // m) * m


def lstm_recurrence_kernel(x_ref, w_ref, b_ref, h_out_ref, h_scr, c_scr):
    """Single grid step: full LSTM recurrence with an in-kernel time loop.

    x_ref:     (T, Bp, E)   bf16 inputs (image feature at t=0, embeddings after)
    w_ref:     (E+H, 4H)    bf16 fused [w_ih; w_hh] weights (gate order i,f,g,o)
    b_ref:     (1, 4H)      f32 fused bias (b_ih + b_hh)
    h_out_ref: (T, Bp, H)   bf16 hidden states emitted for every timestep
    h_scr, c_scr: (Bp, H)   f32 recurrent state scratch
    """
    T = x_ref.shape[0]
    H = h_scr.shape[1]

    h_scr[...] = jnp.zeros_like(h_scr)
    c_scr[...] = jnp.zeros_like(c_scr)

    def step(t, carry):
        x_t = x_ref[t]                                        # (Bp, E) bf16
        h_prev = h_scr[...]                                   # (Bp, H) f32
        xh = jnp.concatenate([x_t, h_prev.astype(jnp.bfloat16)], axis=-1)
        # One fused MXU matmul per step (input + hidden), f32 accumulation.
        gates = (jnp.dot(xh, w_ref[...], preferred_element_type=jnp.float32)
                 + b_ref[...])                                # (Bp, 4H) f32
        # H is a multiple of 128 so each gate slice is lane-aligned.
        i_g = jax.nn.sigmoid(gates[:, 0 * H:1 * H])
        f_g = jax.nn.sigmoid(gates[:, 1 * H:2 * H])
        g_g = jnp.tanh(gates[:, 2 * H:3 * H])
        o_g = jax.nn.sigmoid(gates[:, 3 * H:4 * H])
        c_new = f_g * c_scr[...] + i_g * g_g
        h_new = o_g * jnp.tanh(c_new)
        c_scr[...] = c_new
        h_scr[...] = h_new
        h_out_ref[t] = h_new.astype(h_out_ref.dtype)
        return carry

    lax.fori_loop(0, T, step, 0, unroll=True)


def vocab_proj_kernel(h_ref, w_ref, b_ref, o_ref):
    """Fully-parallel (rows, H) x (H, V) projection tile + bias."""
    o_ref[...] = (jnp.dot(h_ref[...], w_ref[...],
                          preferred_element_type=jnp.float32)
                  + b_ref[...]).astype(o_ref.dtype)


def decoder_rnn_forward(features, captions, params):
    """features: (B, E) float32; captions: (B, T_cap) int32 token ids."""
    emb_table = params["embed"]                      # (V, E)
    w_ih, w_hh = params["w_ih"], params["w_hh"]      # (E, 4H), (H, 4H)
    b_ih, b_hh = params["b_ih"], params["b_hh"]      # (1, 4H), (1, 4H)
    w_out, b_out = params["w_out"], params["b_out"]  # (H, V), (1, V)

    B, E = features.shape
    H = w_hh.shape[0]
    V = w_out.shape[1]

    # ---- glue: embedding gather + prepend image feature as timestep 0 ------
    embeddings = jnp.take(emb_table, captions[:, :-1], axis=0)       # (B, T-1, E)
    lstm_inputs = jnp.concatenate([features[:, None, :], embeddings], axis=1)
    T = lstm_inputs.shape[1]

    # ---- pad batch to a sublane multiple, go time-major, bf16 for the MXU --
    Bp = _round_up(max(B, 8), 8)
    x_tm = jnp.transpose(lstm_inputs, (1, 0, 2))                     # (T, B, E)
    x_tm = jnp.pad(x_tm, ((0, 0), (0, Bp - B), (0, 0))).astype(jnp.bfloat16)

    # Fuse input/hidden weights and biases (PyTorch gate order i, f, g, o).
    w_fused = jnp.concatenate([w_ih, w_hh], axis=0).astype(jnp.bfloat16)  # (E+H, 4H)
    b_fused = (b_ih + b_hh).astype(jnp.float32)                           # (1, 4H)

    h_tm = pl.pallas_call(
        lstm_recurrence_kernel,
        out_shape=jax.ShapeDtypeStruct((T, Bp, H), jnp.bfloat16),
        grid=(1,),
        in_specs=[
            pl.BlockSpec((T, Bp, E), lambda i: (0, 0, 0)),
            pl.BlockSpec((E + H, 4 * H), lambda i: (0, 0)),
            pl.BlockSpec((1, 4 * H), lambda i: (0, 0)),
        ],
        out_specs=pl.BlockSpec((T, Bp, H), lambda i: (0, 0, 0)),
        scratch_shapes=[
            pltpu.VMEM((Bp, H), jnp.float32),   # h state
            pltpu.VMEM((Bp, H), jnp.float32),   # c state
        ],
        compiler_params=pltpu.CompilerParams(
            dimension_semantics=("arbitrary",),
            vmem_limit_bytes=32 * 1024 * 1024),
    )(x_tm, w_fused, b_fused)

    # TODO(synk): dropout is identity here (inference / eval() semantics).

    # ---- hoisted hidden->vocab projection as ONE batched GEMM --------------
    # Transpose the *small* h tensor to batch_first (so the big logits never
    # need a transpose), flatten to rows, pad rows / V to tile boundaries.
    h_bt = jnp.transpose(h_tm, (1, 0, 2))[:B]                        # (B, T, H) bf16
    rows = B * T
    h_rows = h_bt.reshape(rows, H)

    if rows >= 128:
        tile_m = 128
        rows_p = _round_up(rows, tile_m)
    else:
        rows_p = _round_up(rows, 8)
        tile_m = rows_p
    Vp = _round_up(V, 128)
    tile_n = 128

    h_rows = jnp.pad(h_rows, ((0, rows_p - rows), (0, 0)))
    w_out_p = jnp.pad(w_out, ((0, 0), (0, Vp - V))).astype(jnp.bfloat16)
    b_out_p = jnp.pad(b_out, ((0, 0), (0, Vp - V))).astype(jnp.float32)

    logits = pl.pallas_call(
        vocab_proj_kernel,
        out_shape=jax.ShapeDtypeStruct((rows_p, Vp), jnp.float32),
        grid=(rows_p // tile_m, Vp // tile_n),
        in_specs=[
            pl.BlockSpec((tile_m, H), lambda i, j: (i, 0)),
            pl.BlockSpec((H, tile_n), lambda i, j: (0, j)),
            pl.BlockSpec((1, tile_n), lambda i, j: (0, j)),
        ],
        out_specs=pl.BlockSpec((tile_m, tile_n), lambda i, j: (i, j)),
        compiler_params=pltpu.CompilerParams(
            dimension_semantics=("parallel", "parallel"),
            vmem_limit_bytes=32 * 1024 * 1024),
    )(h_rows, w_out_p, b_out_p)

    return logits[:rows, :V].reshape(B, T, V)                        # (B, T, V)


def init_params(key, embed_size, hidden_size, vocab_size):
    ks = jax.random.split(key, 7)
    scale = 0.1
    return {
        "embed": scale * jax.random.normal(ks[0], (vocab_size, embed_size), jnp.float32),
        # PyTorch stores weight_ih as (4H, E); we store the transpose (E, 4H).
        "w_ih": scale * jax.random.normal(ks[1], (embed_size, 4 * hidden_size), jnp.float32),
        "w_hh": scale * jax.random.normal(ks[2], (hidden_size, 4 * hidden_size), jnp.float32),
        "b_ih": scale * jax.random.normal(ks[3], (1, 4 * hidden_size), jnp.float32),
        "b_hh": scale * jax.random.normal(ks[4], (1, 4 * hidden_size), jnp.float32),
        "w_out": scale * jax.random.normal(ks[5], (hidden_size, vocab_size), jnp.float32),
        "b_out": scale * jax.random.normal(ks[6], (1, vocab_size), jnp.float32),
    }


if __name__ == "__main__":
    # Small but lane/sublane-friendly shapes: H, E multiples of 128 so gate
    # slices are lane-aligned; V a multiple of 128; batch padded to 8 inside.
    embed_size, hidden_size, vocab_size = 128, 128, 256
    batch, cap_len = 2, 8            # LSTM sequence length = cap_len (feature + 7 tokens)

    key = jax.random.PRNGKey(0)
    k_feat, k_cap, k_param = jax.random.split(key, 3)

    features = jax.random.normal(k_feat, (batch, embed_size), jnp.float32)
    captions = jax.random.randint(k_cap, (batch, cap_len), 0, vocab_size, jnp.int32)
    params = init_params(k_param, embed_size, hidden_size, vocab_size)

    vocab_outputs = jax.jit(decoder_rnn_forward)(features, captions, params)
    jax.block_until_ready(vocab_outputs)

    assert vocab_outputs.shape == (batch, cap_len, vocab_size)
    print("KERNEL_OK")
</pallas_src>

<mosaic_0001>
module attributes {stable_mosaic.version = 11 : i64} {
  func.func @vocab_proj_kernel(%arg0: i32, %arg1: i32, %arg2: memref<16x128xbf16, #tpu.memory_space<vmem>>, %arg3: memref<128x128xbf16, #tpu.memory_space<vmem>>, %arg4: memref<1x128xf32, #tpu.memory_space<vmem>>, %arg5: memref<16x128xf32, #tpu.memory_space<vmem>>) attributes {dimension_semantics = [#tpu.dimension_semantics<parallel>, #tpu.dimension_semantics<parallel>], iteration_bounds = array<i64: 1, 2>, scalar_prefetch = 0 : i64, scratch_operands = 0 : i64, tpu.core_type = #tpu.core_type<tc>, window_params = [{transform_indices = @transform_0, window_bounds = array<i64: 16, 128>}, {transform_indices = @transform_1, window_bounds = array<i64: 128, 128>}, {transform_indices = @transform_2, window_bounds = array<i64: 1, 128>}, {transform_indices = @transform_3, window_bounds = array<i64: 16, 128>}]} {
    %c0 = arith.constant 0 : index
    %c0_0 = arith.constant 0 : index
    %0 = vector.load %arg2[%c0, %c0_0] : memref<16x128xbf16, #tpu.memory_space<vmem>>, vector<16x128xbf16>
    %c0_1 = arith.constant 0 : index
    %c0_2 = arith.constant 0 : index
    %1 = vector.load %arg3[%c0_1, %c0_2] : memref<128x128xbf16, #tpu.memory_space<vmem>>, vector<128x128xbf16>
    %cst = arith.constant dense<0.000000e+00> : vector<16x128xf32>
    %2 = tpu.matmul %0, %1, %cst {dimension_numbers = #tpu.dot_dimension_numbers<[1], [0], [0], [1], [0, 0, 1, 1], [], []>} : vector<16x128xbf16>, vector<128x128xbf16>, vector<16x128xf32> -> vector<16x128xf32>
    %c0_3 = arith.constant 0 : index
    %c0_4 = arith.constant 0 : index
    %3 = vector.load %arg4[%c0_3, %c0_4] : memref<1x128xf32, #tpu.memory_space<vmem>>, vector<1x128xf32>
    %4 = vector.broadcast %3 : vector<1x128xf32> to vector<16x128xf32>
    %5 = arith.addf %2, %4 : vector<16x128xf32>
    %c0_5 = arith.constant 0 : index
    %c0_6 = arith.constant 0 : index
    %6 = vector.load %arg5[%c0_5, %c0_6] : memref<16x128xf32, #tpu.memory_space<vmem>>, vector<16x128xf32>
    tpu.vector_store %arg5[%c0_5, %c0_6], %5 {strides = array<i32>} : memref<16x128xf32, #tpu.memory_space<vmem>>, vector<16x128xf32>,
    return
  }
  func.func @transform_0(%arg0: i32, %arg1: i32) -> (i32, i32) {
    %c0_i32 = arith.constant 0 : i32
    %c0_i32_0 = arith.constant 0 : i32
    return %arg0, %c0_i32 : i32, i32
  }
  func.func @transform_1(%arg0: i32, %arg1: i32) -> (i32, i32) {
    %c0_i32 = arith.constant 0 : i32
    %c0_i32_0 = arith.constant 0 : i32
    return %c0_i32, %arg1 : i32, i32
  }
  func.func @transform_2(%arg0: i32, %arg1: i32) -> (i32, i32) {
    %c0_i32 = arith.constant 0 : i32
    %c0_i32_0 = arith.constant 0 : i32
    return %c0_i32, %arg1 : i32, i32
  }
  func.func @transform_3(%arg0: i32, %arg1: i32) -> (i32, i32) {
    %c0_i32 = arith.constant 0 : i32
    return %arg0, %arg1 : i32, i32
  }
}

module attributes {stable_mosaic.version = 11 : i64} {
  func.func @lstm_recurrence_kernel(%arg0: i32, %arg1: memref<8x8x128xbf16, #tpu.memory_space<vmem>>, %arg2: memref<256x512xbf16, #tpu.memory_space<vmem>>, %arg3: memref<1x512xf32, #tpu.memory_space<vmem>>, %arg4: memref<8x8x128xbf16, #tpu.memory_space<vmem>>, %arg5: memref<8x128xf32, #tpu.memory_space<vmem>>, %arg6: memref<8x128xf32, #tpu.memory_space<vmem>>) attributes {dimension_semantics = [#tpu.dimension_semantics<arbitrary>], iteration_bounds = array<i64: 1>, scalar_prefetch = 0 : i64, scratch_operands = 2 : i64, tpu.core_type = #tpu.core_type<tc>, window_params = [{pipeline_mode = #tpu.pipeline_mode<synchronous>, transform_indices = @transform_0, window_bounds = array<i64: 8, 8, 128>}, {pipeline_mode = #tpu.pipeline_mode<synchronous>, transform_indices = @transform_1, window_bounds = array<i64: 256, 512>}, {pipeline_mode = #tpu.pipeline_mode<synchronous>, transform_indices = @transform_2, window_bounds = array<i64: 1, 512>}, {pipeline_mode = #tpu.pipeline_mode<synchronous>, transform_indices = @transform_3, window_bounds = array<i64: 8, 8, 128>}]} {
    %cst = arith.constant 0.000000e+00 : f32
    %0 = vector.broadcast %cst : f32 to vector<8x128xf32>
    %c0 = arith.constant 0 : index
    %c0_0 = arith.constant 0 : index
    %1 = vector.load %arg5[%c0, %c0_0] : memref<8x128xf32, #tpu.memory_space<vmem>>, vector<8x128xf32>
    tpu.vector_store %arg5[%c0, %c0_0], %0 {strides = array<i32>} : memref<8x128xf32, #tpu.memory_space<vmem>>, vector<8x128xf32>,
    %cst_1 = arith.constant 0.000000e+00 : f32
    %2 = vector.broadcast %cst_1 : f32 to vector<8x128xf32>
    %c0_2 = arith.constant 0 : index
    %c0_3 = arith.constant 0 : index
    %3 = vector.load %arg6[%c0_2, %c0_3] : memref<8x128xf32, #tpu.memory_space<vmem>>, vector<8x128xf32>
    tpu.vector_store %arg6[%c0_2, %c0_3], %2 {strides = array<i32>} : memref<8x128xf32, #tpu.memory_space<vmem>>, vector<8x128xf32>,
    %c0_i32 = arith.constant 0 : i32
    %4 = arith.index_cast %c0_i32 : i32 to index
    %c0_4 = arith.constant 0 : index
    %c0_5 = arith.constant 0 : index
    %5 = vector.load %arg1[%4, %c0_4, %c0_5] : memref<8x8x128xbf16, #tpu.memory_space<vmem>>, vector<1x8x128xbf16>
    %6 = vector.shape_cast %5 : vector<1x8x128xbf16> to vector<8x128xbf16>
    %c0_6 = arith.constant 0 : index
    %c0_7 = arith.constant 0 : index
    %7 = vector.load %arg5[%c0_6, %c0_7] : memref<8x128xf32, #tpu.memory_space<vmem>>, vector<8x128xf32>
    %8 = arith.truncf %7 : vector<8x128xf32> to vector<8x128xbf16>
    %9 = tpu.concatenate %6, %8 in 1 : vector<8x128xbf16>, vector<8x128xbf16> -> vector<8x256xbf16>
    %c0_8 = arith.constant 0 : index
    %c0_9 = arith.constant 0 : index
    %10 = vector.load %arg2[%c0_8, %c0_9] : memref<256x512xbf16, #tpu.memory_space<vmem>>, vector<256x512xbf16>
    %cst_10 = arith.constant dense<0.000000e+00> : vector<8x512xf32>
    %11 = tpu.matmul %9, %10, %cst_10 {dimension_numbers = #tpu.dot_dimension_numbers<[1], [0], [0], [1], [0, 0, 1, 1], [], []>} : vector<8x256xbf16>, vector<256x512xbf16>, vector<8x512xf32> -> vector<8x512xf32>
    %c0_11 = arith.constant 0 : index
    %c0_12 = arith.constant 0 : index
    %12 = vector.load %arg3[%c0_11, %c0_12] : memref<1x512xf32, #tpu.memory_space<vmem>>, vector<1x512xf32>
    %13 = vector.broadcast %12 : vector<1x512xf32> to vector<8x512xf32>
    %14 = arith.addf %11, %13 : vector<8x512xf32>
    %15 = vector.extract_strided_slice %14 {offsets = [0, 0], sizes = [8, 128], strides = [1, 1]} : vector<8x512xf32> to vector<8x128xf32>
    %16 = arith.negf %15 : vector<8x128xf32>
    %17 = math.exp %16 : vector<8x128xf32>
    %cst_13 = arith.constant 1.000000e+00 : f32
    %18 = vector.broadcast %cst_13 : f32 to vector<8x128xf32>
    %19 = arith.addf %18, %17 : vector<8x128xf32>
    %20 = arith.divf %18, %19 : vector<8x128xf32>
    %21 = vector.extract_strided_slice %14 {offsets = [0, 128], sizes = [8, 128], strides = [1, 1]} : vector<8x512xf32> to vector<8x128xf32>
    %22 = arith.negf %21 : vector<8x128xf32>
    %23 = math.exp %22 : vector<8x128xf32>
    %cst_14 = arith.constant 1.000000e+00 : f32
    %24 = vector.broadcast %cst_14 : f32 to vector<8x128xf32>
    %25 = arith.addf %24, %23 : vector<8x128xf32>
    %26 = arith.divf %24, %25 : vector<8x128xf32>
    %27 = vector.extract_strided_slice %14 {offsets = [0, 256], sizes = [8, 128], strides = [1, 1]} : vector<8x512xf32> to vector<8x128xf32>
    %28 = math.tanh %27 : vector<8x128xf32>
    %29 = vector.extract_strided_slice %14 {offsets = [0, 384], sizes = [8, 128], strides = [1, 1]} : vector<8x512xf32> to vector<8x128xf32>
    %30 = arith.negf %29 : vector<8x128xf32>
    %31 = math.exp %30 : vector<8x128xf32>
    %cst_15 = arith.constant 1.000000e+00 : f32
    %32 = vector.broadcast %cst_15 : f32 to vector<8x128xf32>
    %33 = arith.addf %32, %31 : vector<8x128xf32>
    %34 = arith.divf %32, %33 : vector<8x128xf32>
    %c0_16 = arith.constant 0 : index
    %c0_17 = arith.constant 0 : index
    %35 = vector.load %arg6[%c0_16, %c0_17] : memref<8x128xf32, #tpu.memory_space<vmem>>, vector<8x128xf32>
    %36 = arith.mulf %26, %35 : vector<8x128xf32>
    %37 = arith.mulf %20, %28 : vector<8x128xf32>
    %38 = arith.addf %36, %37 : vector<8x128xf32>
    %39 = math.tanh %38 : vector<8x128xf32>
    %40 = arith.mulf %34, %39 : vector<8x128xf32>
    %c0_18 = arith.constant 0 : index
    %c0_19 = arith.constant 0 : index
    %41 = vector.load %arg6[%c0_18, %c0_19] : memref<8x128xf32, #tpu.memory_space<vmem>>, vector<8x128xf32>
    tpu.vector_store %arg6[%c0_18, %c0_19], %38 {strides = array<i32>} : memref<8x128xf32, #tpu.memory_space<vmem>>, vector<8x128xf32>,
    %c0_20 = arith.constant 0 : index
    %c0_21 = arith.constant 0 : index
    %42 = vector.load %arg5[%c0_20, %c0_21] : memref<8x128xf32, #tpu.memory_space<vmem>>, vector<8x128xf32>
    tpu.vector_store %arg5[%c0_20, %c0_21], %40 {strides = array<i32>} : memref<8x128xf32, #tpu.memory_space<vmem>>, vector<8x128xf32>,
    %43 = arith.truncf %40 : vector<8x128xf32> to vector<8x128xbf16>
    %44 = arith.index_cast %c0_i32 : i32 to index
    %c0_22 = arith.constant 0 : index
    %c0_23 = arith.constant 0 : index
    %45 = vector.load %arg4[%44, %c0_22, %c0_23] : memref<8x8x128xbf16, #tpu.memory_space<vmem>>, vector<1x8x128xbf16>
    %46 = vector.shape_cast %45 : vector<1x8x128xbf16> to vector<8x128xbf16>
    %47 = vector.shape_cast %43 : vector<8x128xbf16> to vector<1x8x128xbf16>
    tpu.vector_store %arg4[%44, %c0_22, %c0_23], %47 {strides = array<i32>} : memref<8x8x128xbf16, #tpu.memory_space<vmem>>, vector<1x8x128xbf16>,
    %c1_i32 = arith.constant 1 : i32
    %48 = arith.index_cast %c1_i32 : i32 to index
    %c0_24 = arith.constant 0 : index
    %c0_25 = arith.constant 0 : index
    %49 = vector.load %arg1[%48, %c0_24, %c0_25] : memref<8x8x128xbf16, #tpu.memory_space<vmem>>, vector<1x8x128xbf16>
    %50 = vector.shape_cast %49 : vector<1x8x128xbf16> to vector<8x128xbf16>
    %c0_26 = arith.constant 0 : index
    %c0_27 = arith.constant 0 : index
    %51 = vector.load %arg5[%c0_26, %c0_27] : memref<8x128xf32, #tpu.memory_space<vmem>>, vector<8x128xf32>
    %52 = arith.truncf %51 : vector<8x128xf32> to vector<8x128xbf16>
    %53 = tpu.concatenate %50, %52 in 1 : vector<8x128xbf16>, vector<8x128xbf16> -> vector<8x256xbf16>
    %c0_28 = arith.constant 0 : index
    %c0_29 = arith.constant 0 : index
    %54 = vector.load %arg2[%c0_28, %c0_29] : memref<256x512xbf16, #tpu.memory_space<vmem>>, vector<256x512xbf16>
    %cst_30 = arith.constant dense<0.000000e+00> : vector<8x512xf32>
    %55 = tpu.matmul %53, %54, %cst_30 {dimension_numbers = #tpu.dot_dimension_numbers<[1], [0], [0], [1], [0, 0, 1, 1], [], []>} : vector<8x256xbf16>, vector<256x512xbf16>, vector<8x512xf32> -> vector<8x512xf32>
    %c0_31 = arith.constant 0 : index
    %c0_32 = arith.constant 0 : index
    %56 = vector.load %arg3[%c0_31, %c0_32] : memref<1x512xf32, #tpu.memory_space<vmem>>, vector<1x512xf32>
    %57 = vector.broadcast %56 : vector<1x512xf32> to vector<8x512xf32>
    %58 = arith.addf %55, %57 : vector<8x512xf32>
    %59 = vector.extract_strided_slice %58 {offsets = [0, 0], sizes = [8, 128], strides = [1, 1]} : vector<8x512xf32> to vector<8x128xf32>
    %60 = arith.negf %59 : vector<8x128xf32>
    %61 = math.exp %60 : vector<8x128xf32>
    %cst_33 = arith.constant 1.000000e+00 : f32
    %62 = vector.broadcast %cst_33 : f32 to vector<8x128xf32>
    %63 = arith.addf %62, %61 : vector<8x128xf32>
    %64 = arith.divf %62, %63 : vector<8x128xf32>
    %65 = vector.extract_strided_slice %58 {offsets = [0, 128], sizes = [8, 128], strides = [1, 1]} : vector<8x512xf32> to vector<8x128xf32>
    %66 = arith.negf %65 : vector<8x128xf32>
    %67 = math.exp %66 : vector<8x128xf32>
    %cst_34 = arith.constant 1.000000e+00 : f32
    %68 = vector.broadcast %cst_34 : f32 to vector<8x128xf32>
    %69 = arith.addf %68, %67 : vector<8x128xf32>
    %70 = arith.divf %68, %69 : vector<8x128xf32>
    %71 = vector.extract_strided_slice %58 {offsets = [0, 256], sizes = [8, 128], strides = [1, 1]} : vector<8x512xf32> to vector<8x128xf32>
    %72 = math.tanh %71 : vector<8x128xf32>
    %73 = vector.extract_strided_slice %58 {offsets = [0, 384], sizes = [8, 128], strides = [1, 1]} : vector<8x512xf32> to vector<8x128xf32>
    %74 = arith.negf %73 : vector<8x128xf32>
    %75 = math.exp %74 : vector<8x128xf32>
    %cst_35 = arith.constant 1.000000e+00 : f32
    %76 = vector.broadcast %cst_35 : f32 to vector<8x128xf32>
    %77 = arith.addf %76, %75 : vector<8x128xf32>
    %78 = arith.divf %76, %77 : vector<8x128xf32>
    %c0_36 = arith.constant 0 : index
    %c0_37 = arith.constant 0 : index
    %79 = vector.load %arg6[%c0_36, %c0_37] : memref<8x128xf32, #tpu.memory_space<vmem>>, vector<8x128xf32>
    %80 = arith.mulf %70, %79 : vector<8x128xf32>
    %81 = arith.mulf %64, %72 : vector<8x128xf32>
    %82 = arith.addf %80, %81 : vector<8x128xf32>
    %83 = math.tanh %82 : vector<8x128xf32>
    %84 = arith.mulf %78, %83 : vector<8x128xf32>
    %c0_38 = arith.constant 0 : index
    %c0_39 = arith.constant 0 : index
    %85 = vector.load %arg6[%c0_38, %c0_39] : memref<8x128xf32, #tpu.memory_space<vmem>>, vector<8x128xf32>
    tpu.vector_store %arg6[%c0_38, %c0_39], %82 {strides = array<i32>} : memref<8x128xf32, #tpu.memory_space<vmem>>, vector<8x128xf32>,
    %c0_40 = arith.constant 0 : index
    %c0_41 = arith.constant 0 : index
    %86 = vector.load %arg5[%c0_40, %c0_41] : memref<8x128xf32, #tpu.memory_space<vmem>>, vector<8x128xf32>
    tpu.vector_store %arg5[%c0_40, %c0_41], %84 {strides = array<i32>} : memref<8x128xf32, #tpu.memory_space<vmem>>, vector<8x128xf32>,
    %87 = arith.truncf %84 : vector<8x128xf32> to vector<8x128xbf16>
    %88 = arith.index_cast %c1_i32 : i32 to index
    %c0_42 = arith.constant 0 : index
    %c0_43 = arith.constant 0 : index
    %89 = vector.load %arg4[%88, %c0_42, %c0_43] : memref<8x8x128xbf16, #tpu.memory_space<vmem>>, vector<1x8x128xbf16>
    %90 = vector.shape_cast %89 : vector<1x8x128xbf16> to vector<8x128xbf16>
    %91 = vector.shape_cast %87 : vector<8x128xbf16> to vector<1x8x128xbf16>
    tpu.vector_store %arg4[%88, %c0_42, %c0_43], %91 {strides = array<i32>} : memref<8x8x128xbf16, #tpu.memory_space<vmem>>, vector<1x8x128xbf16>,
    %c2_i32 = arith.constant 2 : i32
    %92 = arith.index_cast %c2_i32 : i32 to index
    %c0_44 = arith.constant 0 : index
    %c0_45 = arith.constant 0 : index
    %93 = vector.load %arg1[%92, %c0_44, %c0_45] : memref<8x8x128xbf16, #tpu.memory_space<vmem>>, vector<1x8x128xbf16>
    %94 = vector.shape_cast %93 : vector<1x8x128xbf16> to vector<8x128xbf16>
    %c0_46 = arith.constant 0 : index
    %c0_47 = arith.constant 0 : index
    %95 = vector.load %arg5[%c0_46, %c0_47] : memref<8x128xf32, #tpu.memory_space<vmem>>, vector<8x128xf32>
    %96 = arith.truncf %95 : vector<8x128xf32> to vector<8x128xbf16>
    %97 = tpu.concatenate %94, %96 in 1 : vector<8x128xbf16>, vector<8x128xbf16> -> vector<8x256xbf16>
    %c0_48 = arith.constant 0 : index
    %c0_49 = arith.constant 0 : index
    %98 = vector.load %arg2[%c0_48, %c0_49] : memref<256x512xbf16, #tpu.memory_space<vmem>>, vector<256x512xbf16>
    %cst_50 = arith.constant dense<0.000000e+00> : vector<8x512xf32>
    %99 = tpu.matmul %97, %98, %cst_50 {dimension_numbers = #tpu.dot_dimension_numbers<[1], [0], [0], [1], [0, 0, 1, 1], [], []>} : vector<8x256xbf16>, vector<256x512xbf16>, vector<8x512xf32> -> vector<8x512xf32>
    %c0_51 = arith.constant 0 : index
    %c0_52 = arith.constant 0 : index
    %100 = vector.load %arg3[%c0_51, %c0_52] : memref<1x512xf32, #tpu.memory_space<vmem>>, vector<1x512xf32>
    %101 = vector.broadcast %100 : vector<1x512xf32> to vector<8x512xf32>
    %102 = arith.addf %99, %101 : vector<8x512xf32>
    %103 = vector.extract_strided_slice %102 {offsets = [0, 0], sizes = [8, 128], strides = [1, 1]} : vector<8x512xf32> to vector<8x128xf32>
    %104 = arith.negf %103 : vector<8x128xf32>
    %105 = math.exp %104 : vector<8x128xf32>
    %cst_53 = arith.constant 1.000000e+00 : f32
    %106 = vector.broadcast %cst_53 : f32 to vector<8x128xf32>
    %107 = arith.addf %106, %105 : vector<8x128xf32>
    %108 = arith.divf %106, %107 : vector<8x128xf32>
    %109 = vector.extract_strided_slice %102 {offsets = [0, 128], sizes = [8, 128], strides = [1, 1]} : vector<8x512xf32> to vector<8x128xf32>
    %110 = arith.negf %109 : vector<8x128xf32>
    %111 = math.exp %110 : vector<8x128xf32>
    %cst_54 = arith.constant 1.000000e+00 : f32
    %112 = vector.broadcast %cst_54 : f32 to vector<8x128xf32>
    %113 = arith.addf %112, %111 : vector<8x128xf32>
    %114 = arith.divf %112, %113 : vector<8x128xf32>
    %115 = vector.extract_strided_slice %102 {offsets = [0, 256], sizes = [8, 128], strides = [1, 1]} : vector<8x512xf32> to vector<8x128xf32>
    %116 = math.tanh %115 : vector<8x128xf32>
    %117 = vector.extract_strided_slice %102 {offsets = [0, 384], sizes = [8, 128], strides = [1, 1]} : vector<8x512xf32> to vector<8x128xf32>
    %118 = arith.negf %117 : vector<8x128xf32>
    %119 = math.exp %118 : vector<8x128xf32>
    %cst_55 = arith.constant 1.000000e+00 : f32
    %120 = vector.broadcast %cst_55 : f32 to vector<8x128xf32>
    %121 = arith.addf %120, %119 : vector<8x128xf32>
    %122 = arith.divf %120, %121 : vector<8x128xf32>
    %c0_56 = arith.constant 0 : index
    %c0_57 = arith.constant 0 : index
    %123 = vector.load %arg6[%c0_56, %c0_57] : memref<8x128xf32, #tpu.memory_space<vmem>>, vector<8x128xf32>
    %124 = arith.mulf %114, %123 : vector<8x128xf32>
    %125 = arith.mulf %108, %116 : vector<8x128xf32>
    %126 = arith.addf %124, %125 : vector<8x128xf32>
    %127 = math.tanh %126 : vector<8x128xf32>
    %128 = arith.mulf %122, %127 : vector<8x128xf32>
    %c0_58 = arith.constant 0 : index
    %c0_59 = arith.constant 0 : index
    %129 = vector.load %arg6[%c0_58, %c0_59] : memref<8x128xf32, #tpu.memory_space<vmem>>, vector<8x128xf32>
    tpu.vector_store %arg6[%c0_58, %c0_59], %126 {strides = array<i32>} : memref<8x128xf32, #tpu.memory_space<vmem>>, vector<8x128xf32>,
    %c0_60 = arith.constant 0 : index
    %c0_61 = arith.constant 0 : index
    %130 = vector.load %arg5[%c0_60, %c0_61] : memref<8x128xf32, #tpu.memory_space<vmem>>, vector<8x128xf32>
    tpu.vector_store %arg5[%c0_60, %c0_61], %128 {strides = array<i32>} : memref<8x128xf32, #tpu.memory_space<vmem>>, vector<8x128xf32>,
    %131 = arith.truncf %128 : vector<8x128xf32> to vector<8x128xbf16>
    %132 = arith.index_cast %c2_i32 : i32 to index
    %c0_62 = arith.constant 0 : index
    %c0_63 = arith.constant 0 : index
    %133 = vector.load %arg4[%132, %c0_62, %c0_63] : memref<8x8x128xbf16, #tpu.memory_space<vmem>>, vector<1x8x128xbf16>
    %134 = vector.shape_cast %133 : vector<1x8x128xbf16> to vector<8x128xbf16>
    %135 = vector.shape_cast %131 : vector<8x128xbf16> to vector<1x8x128xbf16>
    tpu.vector_store %arg4[%132, %c0_62, %c0_63], %135 {strides = array<i32>} : memref<8x8x128xbf16, #tpu.memory_space<vmem>>, vector<1x8x128xbf16>,
    %c3_i32 = arith.constant 3 : i32
    %136 = arith.index_cast %c3_i32 : i32 to index
    %c0_64 = arith.constant 0 : index
    %c0_65 = arith.constant 0 : index
    %137 = vector.load %arg1[%136, %c0_64, %c0_65] : memref<8x8x128xbf16, #tpu.memory_space<vmem>>, vector<1x8x128xbf16>
    %138 = vector.shape_cast %137 : vector<1x8x128xbf16> to vector<8x128xbf16>
    %c0_66 = arith.constant 0 : index
    %c0_67 = arith.constant 0 : index
    %139 = vector.load %arg5[%c0_66, %c0_67] : memref<8x128xf32, #tpu.memory_space<vmem>>, vector<8x128xf32>
    %140 = arith.truncf %139 : vector<8x128xf32> to vector<8x128xbf16>
    %141 = tpu.concatenate %138, %140 in 1 : vector<8x128xbf16>, vector<8x128xbf16> -> vector<8x256xbf16>
    %c0_68 = arith.constant 0 : index
    %c0_69 = arith.constant 0 : index
    %142 = vector.load %arg2[%c0_68, %c0_69] : memref<256x512xbf16, #tpu.memory_space<vmem>>, vector<256x512xbf16>
    %cst_70 = arith.constant dense<0.000000e+00> : vector<8x512xf32>
    %143 = tpu.matmul %141, %142, %cst_70 {dimension_numbers = #tpu.dot_dimension_numbers<[1], [0], [0], [1], [0, 0, 1, 1], [], []>} : vector<8x256xbf16>, vector<256x512xbf16>, vector<8x512xf32> -> vector<8x512xf32>
    %c0_71 = arith.constant 0 : index
    %c0_72 = arith.constant 0 : index
    %144 = vector.load %arg3[%c0_71, %c0_72] : memref<1x512xf32, #tpu.memory_space<vmem>>, vector<1x512xf32>
    %145 = vector.broadcast %144 : vector<1x512xf32> to vector<8x512xf32>
    %146 = arith.addf %143, %145 : vector<8x512xf32>
    %147 = vector.extract_strided_slice %146 {offsets = [0, 0], sizes = [8, 128], strides = [1, 1]} : vector<8x512xf32> to vector<8x128xf32>
    %148 = arith.negf %147 : vector<8x128xf32>
    %149 = math.exp %148 : vector<8x128xf32>
    %cst_73 = arith.constant 1.000000e+00 : f32
    %150 = vector.broadcast %cst_73 : f32 to vector<8x128xf32>
    %151 = arith.addf %150, %149 : vector<8x128xf32>
    %152 = arith.divf %150, %151 : vector<8x128xf32>
    %153 = vector.extract_strided_slice %146 {offsets = [0, 128], sizes = [8, 128], strides = [1, 1]} : vector<8x512xf32> to vector<8x128xf32>
    %154 = arith.negf %153 : vector<8x128xf32>
    %155 = math.exp %154 : vector<8x128xf32>
    %cst_74 = arith.constant 1.000000e+00 : f32
    %156 = vector.broadcast %cst_74 : f32 to vector<8x128xf32>
    %157 = arith.addf %156, %155 : vector<8x128xf32>
    %158 = arith.divf %156, %157 : vector<8x128xf32>
    %159 = vector.extract_strided_slice %146 {offsets = [0, 256], sizes = [8, 128], strides = [1, 1]} : vector<8x512xf32> to vector<8x128xf32>
    %160 = math.tanh %159 : vector<8x128xf32>
    %161 = vector.extract_strided_slice %146 {offsets = [0, 384], sizes = [8, 128], strides = [1, 1]} : vector<8x512xf32> to vector<8x128xf32>
    %162 = arith.negf %161 : vector<8x128xf32>
    %163 = math.exp %162 : vector<8x128xf32>
    %cst_75 = arith.constant 1.000000e+00 : f32
    %164 = vector.broadcast %cst_75 : f32 to vector<8x128xf32>
    %165 = arith.addf %164, %163 : vector<8x128xf32>
    %166 = arith.divf %164, %165 : vector<8x128xf32>
    %c0_76 = arith.constant 0 : index
    %c0_77 = arith.constant 0 : index
    %167 = vector.load %arg6[%c0_76, %c0_77] : memref<8x128xf32, #tpu.memory_space<vmem>>, vector<8x128xf32>
    %168 = arith.mulf %158, %167 : vector<8x128xf32>
    %169 = arith.mulf %152, %160 : vector<8x128xf32>
    %170 = arith.addf %168, %169 : vector<8x128xf32>
    %171 = math.tanh %170 : vector<8x128xf32>
    %172 = arith.mulf %166, %171 : vector<8x128xf32>
    %c0_78 = arith.constant 0 : index
    %c0_79 = arith.constant 0 : index
    %173 = vector.load %arg6[%c0_78, %c0_79] : memref<8x128xf32, #tpu.memory_space<vmem>>, vector<8x128xf32>
    tpu.vector_store %arg6[%c0_78, %c0_79], %170 {strides = array<i32>} : memref<8x128xf32, #tpu.memory_space<vmem>>, vector<8x128xf32>,
    %c0_80 = arith.constant 0 : index
    %c0_81 = arith.constant 0 : index
    %174 = vector.load %arg5[%c0_80, %c0_81] : memref<8x128xf32, #tpu.memory_space<vmem>>, vector<8x128xf32>
    tpu.vector_store %arg5[%c0_80, %c0_81], %172 {strides = array<i32>} : memref<8x128xf32, #tpu.memory_space<vmem>>, vector<8x128xf32>,
    %175 = arith.truncf %172 : vector<8x128xf32> to vector<8x128xbf16>
    %176 = arith.index_cast %c3_i32 : i32 to index
    %c0_82 = arith.constant 0 : index
    %c0_83 = arith.constant 0 : index
    %177 = vector.load %arg4[%176, %c0_82, %c0_83] : memref<8x8x128xbf16, #tpu.memory_space<vmem>>, vector<1x8x128xbf16>
    %178 = vector.shape_cast %177 : vector<1x8x128xbf16> to vector<8x128xbf16>
    %179 = vector.shape_cast %175 : vector<8x128xbf16> to vector<1x8x128xbf16>
    tpu.vector_store %arg4[%176, %c0_82, %c0_83], %179 {strides = array<i32>} : memref<8x8x128xbf16, #tpu.memory_space<vmem>>, vector<1x8x128xbf16>,
    %c4_i32 = arith.constant 4 : i32
    %180 = arith.index_cast %c4_i32 : i32 to index
    %c0_84 = arith.constant 0 : index
    %c0_85 = arith.constant 0 : index
    %181 = vector.load %arg1[%180, %c0_84, %c0_85] : memref<8x8x128xbf16, #tpu.memory_space<vmem>>, vector<1x8x128xbf16>
    %182 = vector.shape_cast %181 : vector<1x8x128xbf16> to vector<8x128xbf16>
    %c0_86 = arith.constant 0 : index
    %c0_87 = arith.constant 0 : index
    %183 = vector.load %arg5[%c0_86, %c0_87] : memref<8x128xf32, #tpu.memory_space<vmem>>, vector<8x128xf32>
    %184 = arith.truncf %183 : vector<8x128xf32> to vector<8x128xbf16>
    %185 = tpu.concatenate %182, %184 in 1 : vector<8x128xbf16>, vector<8x128xbf16> -> vector<8x256xbf16>
    %c0_88 = arith.constant 0 : index
    %c0_89 = arith.constant 0 : index
    %186 = vector.load %arg2[%c0_88, %c0_89] : memref<256x512xbf16, #tpu.memory_space<vmem>>, vector<256x512xbf16>
    %cst_90 = arith.constant dense<0.000000e+00> : vector<8x512xf32>
    %187 = tpu.matmul %185, %186, %cst_90 {dimension_numbers = #tpu.dot_dimension_numbers<[1], [0], [0], [1], [0, 0, 1, 1], [], []>} : vector<8x256xbf16>, vector<256x512xbf16>, vector<8x512xf32> -> vector<8x512xf32>
    %c0_91 = arith.constant 0 : index
    %c0_92 = arith.constant 0 : index
    %188 = vector.load %arg3[%c0_91, %c0_92] : memref<1x512xf32, #tpu.memory_space<vmem>>, vector<1x512xf32>
    %189 = vector.broadcast %188 : vector<1x512xf32> to vector<8x512xf32>
    %190 = arith.addf %187, %189 : vector<8x512xf32>
    %191 = vector.extract_strided_slice %190 {offsets = [0, 0], sizes = [8, 128], strides = [1, 1]} : vector<8x512xf32> to vector<8x128xf32>
    %192 = arith.negf %191 : vector<8x128xf32>
    %193 = math.exp %192 : vector<8x128xf32>
    %cst_93 = arith.constant 1.000000e+00 : f32
    %194 = vector.broadcast %cst_93 : f32 to vector<8x128xf32>
    %195 = arith.addf %194, %193 : vector<8x128xf32>
    %196 = arith.divf %194, %195 : vector<8x128xf32>
    %197 = vector.extract_strided_slice %190 {offsets = [0, 128], sizes = [8, 128], strides = [1, 1]} : vector<8x512xf32> to vector<8x128xf32>
    %198 = arith.negf %197 : vector<8x128xf32>
    %199 = math.exp %198 : vector<8x128xf32>
    %cst_94 = arith.constant 1.000000e+00 : f32
    %200 = vector.broadcast %cst_94 : f32 to vector<8x128xf32>
    %201 = arith.addf %200, %199 : vector<8x128xf32>
    %202 = arith.divf %200, %201 : vector<8x128xf32>
    %203 = vector.extract_strided_slice %190 {offsets = [0, 256], sizes = [8, 128], strides = [1, 1]} : vector<8x512xf32> to vector<8x128xf32>
    %204 = math.tanh %203 : vector<8x128xf32>
    %205 = vector.extract_strided_slice %190 {offsets = [0, 384], sizes = [8, 128], strides = [1, 1]} : vector<8x512xf32> to vector<8x128xf32>
    %206 = arith.negf %205 : vector<8x128xf32>
    %207 = math.exp %206 : vector<8x128xf32>
    %cst_95 = arith.constant 1.000000e+00 : f32
    %208 = vector.broadcast %cst_95 : f32 to vector<8x128xf32>
    %209 = arith.addf %208, %207 : vector<8x128xf32>
    %210 = arith.divf %208, %209 : vector<8x128xf32>
    %c0_96 = arith.constant 0 : index
    %c0_97 = arith.constant 0 : index
    %211 = vector.load %arg6[%c0_96, %c0_97] : memref<8x128xf32, #tpu.memory_space<vmem>>, vector<8x128xf32>
    %212 = arith.mulf %202, %211 : vector<8x128xf32>
    %213 = arith.mulf %196, %204 : vector<8x128xf32>
    %214 = arith.addf %212, %213 : vector<8x128xf32>
    %215 = math.tanh %214 : vector<8x128xf32>
    %216 = arith.mulf %210, %215 : vector<8x128xf32>
    %c0_98 = arith.constant 0 : index
    %c0_99 = arith.constant 0 : index
    %217 = vector.load %arg6[%c0_98, %c0_99] : memref<8x128xf32, #tpu.memory_space<vmem>>, vector<8x128xf32>
    tpu.vector_store %arg6[%c0_98, %c0_99], %214 {strides = array<i32>} : memref<8x128xf32, #tpu.memory_space<vmem>>, vector<8x128xf32>,
    %c0_100 = arith.constant 0 : index
    %c0_101 = arith.constant 0 : index
    %218 = vector.load %arg5[%c0_100, %c0_101] : memref<8x128xf32, #tpu.memory_space<vmem>>, vector<8x128xf32>
    tpu.vector_store %arg5[%c0_100, %c0_101], %216 {strides = array<i32>} : memref<8x128xf32, #tpu.memory_space<vmem>>, vector<8x128xf32>,
    %219 = arith.truncf %216 : vector<8x128xf32> to vector<8x128xbf16>
    %220 = arith.index_cast %c4_i32 : i32 to index
    %c0_102 = arith.constant 0 : index
    %c0_103 = arith.constant 0 : index
    %221 = vector.load %arg4[%220, %c0_102, %c0_103] : memref<8x8x128xbf16, #tpu.memory_space<vmem>>, vector<1x8x128xbf16>
    %222 = vector.shape_cast %221 : vector<1x8x128xbf16> to vector<8x128xbf16>
    %223 = vector.shape_cast %219 : vector<8x128xbf16> to vector<1x8x128xbf16>
    tpu.vector_store %arg4[%220, %c0_102, %c0_103], %223 {strides = array<i32>} : memref<8x8x128xbf16, #tpu.memory_space<vmem>>, vector<1x8x128xbf16>,
    %c5_i32 = arith.constant 5 : i32
    %224 = arith.index_cast %c5_i32 : i32 to index
    %c0_104 = arith.constant 0 : index
    %c0_105 = arith.constant 0 : index
    %225 = vector.load %arg1[%224, %c0_104, %c0_105] : memref<8x8x128xbf16, #tpu.memory_space<vmem>>, vector<1x8x128xbf16>
    %226 = vector.shape_cast %225 : vector<1x8x128xbf16> to vector<8x128xbf16>
    %c0_106 = arith.constant 0 : index
    %c0_107 = arith.constant 0 : index
    %227 = vector.load %arg5[%c0_106, %c0_107] : memref<8x128xf32, #tpu.memory_space<vmem>>, vector<8x128xf32>
    %228 = arith.truncf %227 : vector<8x128xf32> to vector<8x128xbf16>
    %229 = tpu.concatenate %226, %228 in 1 : vector<8x128xbf16>, vector<8x128xbf16> -> vector<8x256xbf16>
    %c0_108 = arith.constant 0 : index
    %c0_109 = arith.constant 0 : index
    %230 = vector.load %arg2[%c0_108, %c0_109] : memref<256x512xbf16, #tpu.memory_space<vmem>>, vector<256x512xbf16>
    %cst_110 = arith.constant dense<0.000000e+00> : vector<8x512xf32>
    %231 = tpu.matmul %229, %230, %cst_110 {dimension_numbers = #tpu.dot_dimension_numbers<[1], [0], [0], [1], [0, 0, 1, 1], [], []>} : vector<8x256xbf16>, vector<256x512xbf16>, vector<8x512xf32> -> vector<8x512xf32>
    %c0_111 = arith.constant 0 : index
    %c0_112 = arith.constant 0 : index
    %232 = vector.load %arg3[%c0_111, %c0_112] : memref<1x512xf32, #tpu.memory_space<vmem>>, vector<1x512xf32>
    %233 = vector.broadcast %232 : vector<1x512xf32> to vector<8x512xf32>
    %234 = arith.addf %231, %233 : vector<8x512xf32>
    %235 = vector.extract_strided_slice %234 {offsets = [0, 0], sizes = [8, 128], strides = [1, 1]} : vector<8x512xf32> to vector<8x128xf32>
    %236 = arith.negf %235 : vector<8x128xf32>
    %237 = math.exp %236 : vector<8x128xf32>
    %cst_113 = arith.constant 1.000000e+00 : f32
    %238 = vector.broadcast %cst_113 : f32 to vector<8x128xf32>
    %239 = arith.addf %238, %237 : vector<8x128xf32>
    %240 = arith.divf %238, %239 : vector<8x128xf32>
    %241 = vector.extract_strided_slice %234 {offsets = [0, 128], sizes = [8, 128], strides = [1, 1]} : vector<8x512xf32> to vector<8x128xf32>
    %242 = arith.negf %241 : vector<8x128xf32>
    %243 = math.exp %242 : vector<8x128xf32>
    %cst_114 = arith.constant 1.000000e+00 : f32
    %244 = vector.broadcast %cst_114 : f32 to vector<8x128xf32>
    %245 = arith.addf %244, %243 : vector<8x128xf32>
    %246 = arith.divf %244, %245 : vector<8x128xf32>
    %247 = vector.extract_strided_slice %234 {offsets = [0, 256], sizes = [8, 128], strides = [1, 1]} : vector<8x512xf32> to vector<8x128xf32>
    %248 = math.tanh %247 : vector<8x128xf32>
    %249 = vector.extract_strided_slice %234 {offsets = [0, 384], sizes = [8, 128], strides = [1, 1]} : vector<8x512xf32> to vector<8x128xf32>
    %250 = arith.negf %249 : vector<8x128xf32>
    %251 = math.exp %250 : vector<8x128xf32>
    %cst_115 = arith.constant 1.000000e+00 : f32
    %252 = vector.broadcast %cst_115 : f32 to vector<8x128xf32>
    %253 = arith.addf %252, %251 : vector<8x128xf32>
    %254 = arith.divf %252, %253 : vector<8x128xf32>
    %c0_116 = arith.constant 0 : index
    %c0_117 = arith.constant 0 : index
    %255 = vector.load %arg6[%c0_116, %c0_117] : memref<8x128xf32, #tpu.memory_space<vmem>>, vector<8x128xf32>
    %256 = arith.mulf %246, %255 : vector<8x128xf32>
    %257 = arith.mulf %240, %248 : vector<8x128xf32>
    %258 = arith.addf %256, %257 : vector<8x128xf32>
    %259 = math.tanh %258 : vector<8x128xf32>
    %260 = arith.mulf %254, %259 : vector<8x128xf32>
    %c0_118 = arith.constant 0 : index
    %c0_119 = arith.constant 0 : index
    %261 = vector.load %arg6[%c0_118, %c0_119] : memref<8x128xf32, #tpu.memory_space<vmem>>, vector<8x128xf32>
    tpu.vector_store %arg6[%c0_118, %c0_119], %258 {strides = array<i32>} : memref<8x128xf32, #tpu.memory_space<vmem>>, vector<8x128xf32>,
    %c0_120 = arith.constant 0 : index
    %c0_121 = arith.constant 0 : index
    %262 = vector.load %arg5[%c0_120, %c0_121] : memref<8x128xf32, #tpu.memory_space<vmem>>, vector<8x128xf32>
    tpu.vector_store %arg5[%c0_120, %c0_121], %260 {strides = array<i32>} : memref<8x128xf32, #tpu.memory_space<vmem>>, vector<8x128xf32>,
    %263 = arith.truncf %260 : vector<8x128xf32> to vector<8x128xbf16>
    %264 = arith.index_cast %c5_i32 : i32 to index
    %c0_122 = arith.constant 0 : index
    %c0_123 = arith.constant 0 : index
    %265 = vector.load %arg4[%264, %c0_122, %c0_123] : memref<8x8x128xbf16, #tpu.memory_space<vmem>>, vector<1x8x128xbf16>
    %266 = vector.shape_cast %265 : vector<1x8x128xbf16> to vector<8x128xbf16>
    %267 = vector.shape_cast %263 : vector<8x128xbf16> to vector<1x8x128xbf16>
    tpu.vector_store %arg4[%264, %c0_122, %c0_123], %267 {strides = array<i32>} : memref<8x8x128xbf16, #tpu.memory_space<vmem>>, vector<1x8x128xbf16>,
    %c6_i32 = arith.constant 6 : i32
    %268 = arith.index_cast %c6_i32 : i32 to index
    %c0_124 = arith.constant 0 : index
    %c0_125 = arith.constant 0 : index
    %269 = vector.load %arg1[%268, %c0_124, %c0_125] : memref<8x8x128xbf16, #tpu.memory_space<vmem>>, vector<1x8x128xbf16>
    %270 = vector.shape_cast %269 : vector<1x8x128xbf16> to vector<8x128xbf16>
    %c0_126 = arith.constant 0 : index
    %c0_127 = arith.constant 0 : index
    %271 = vector.load %arg5[%c0_126, %c0_127] : memref<8x128xf32, #tpu.memory_space<vmem>>, vector<8x128xf32>
    %272 = arith.truncf %271 : vector<8x128xf32> to vector<8x128xbf16>
    %273 = tpu.concatenate %270, %272 in 1 : vector<8x128xbf16>, vector<8x128xbf16> -> vector<8x256xbf16>
    %c0_128 = arith.constant 0 : index
    %c0_129 = arith.constant 0 : index
    %274 = vector.load %arg2[%c0_128, %c0_129] : memref<256x512xbf16, #tpu.memory_space<vmem>>, vector<256x512xbf16>
    %cst_130 = arith.constant dense<0.000000e+00> : vector<8x512xf32>
    %275 = tpu.matmul %273, %274, %cst_130 {dimension_numbers = #tpu.dot_dimension_numbers<[1], [0], [0], [1], [0, 0, 1, 1], [], []>} : vector<8x256xbf16>, vector<256x512xbf16>, vector<8x512xf32> -> vector<8x512xf32>
    %c0_131 = arith.constant 0 : index
    %c0_132 = arith.constant 0 : index
    %276 = vector.load %arg3[%c0_131, %c0_132] : memref<1x512xf32, #tpu.memory_space<vmem>>, vector<1x512xf32>
    %277 = vector.broadcast %276 : vector<1x512xf32> to vector<8x512xf32>
    %278 = arith.addf %275, %277 : vector<8x512xf32>
    %279 = vector.extract_strided_slice %278 {offsets = [0, 0], sizes = [8, 128], strides = [1, 1]} : vector<8x512xf32> to vector<8x128xf32>
    %280 = arith.negf %279 : vector<8x128xf32>
    %281 = math.exp %280 : vector<8x128xf32>
    %cst_133 = arith.constant 1.000000e+00 : f32
    %282 = vector.broadcast %cst_133 : f32 to vector<8x128xf32>
    %283 = arith.addf %282, %281 : vector<8x128xf32>
    %284 = arith.divf %282, %283 : vector<8x128xf32>
    %285 = vector.extract_strided_slice %278 {offsets = [0, 128], sizes = [8, 128], strides = [1, 1]} : vector<8x512xf32> to vector<8x128xf32>
    %286 = arith.negf %285 : vector<8x128xf32>
    %287 = math.exp %286 : vector<8x128xf32>
    %cst_134 = arith.constant 1.000000e+00 : f32
    %288 = vector.broadcast %cst_134 : f32 to vector<8x128xf32>
    %289 = arith.addf %288, %287 : vector<8x128xf32>
    %290 = arith.divf %288, %289 : vector<8x128xf32>
    %291 = vector.extract_strided_slice %278 {offsets = [0, 256], sizes = [8, 128], strides = [1, 1]} : vector<8x512xf32> to vector<8x128xf32>
    %292 = math.tanh %291 : vector<8x128xf32>
    %293 = vector.extract_strided_slice %278 {offsets = [0, 384], sizes = [8, 128], strides = [1, 1]} : vector<8x512xf32> to vector<8x128xf32>
    %294 = arith.negf %293 : vector<8x128xf32>
    %295 = math.exp %294 : vector<8x128xf32>
    %cst_135 = arith.constant 1.000000e+00 : f32
    %296 = vector.broadcast %cst_135 : f32 to vector<8x128xf32>
    %297 = arith.addf %296, %295 : vector<8x128xf32>
    %298 = arith.divf %296, %297 : vector<8x128xf32>
    %c0_136 = arith.constant 0 : index
    %c0_137 = arith.constant 0 : index
    %299 = vector.load %arg6[%c0_136, %c0_137] : memref<8x128xf32, #tpu.memory_space<vmem>>, vector<8x128xf32>
    %300 = arith.mulf %290, %299 : vector<8x128xf32>
    %301 = arith.mulf %284, %292 : vector<8x128xf32>
    %302 = arith.addf %300, %301 : vector<8x128xf32>
    %303 = math.tanh %302 : vector<8x128xf32>
    %304 = arith.mulf %298, %303 : vector<8x128xf32>
    %c0_138 = arith.constant 0 : index
    %c0_139 = arith.constant 0 : index
    %305 = vector.load %arg6[%c0_138, %c0_139] : memref<8x128xf32, #tpu.memory_space<vmem>>, vector<8x128xf32>
    tpu.vector_store %arg6[%c0_138, %c0_139], %302 {strides = array<i32>} : memref<8x128xf32, #tpu.memory_space<vmem>>, vector<8x128xf32>,
    %c0_140 = arith.constant 0 : index
    %c0_141 = arith.constant 0 : index
    %306 = vector.load %arg5[%c0_140, %c0_141] : memref<8x128xf32, #tpu.memory_space<vmem>>, vector<8x128xf32>
    tpu.vector_store %arg5[%c0_140, %c0_141], %304 {strides = array<i32>} : memref<8x128xf32, #tpu.memory_space<vmem>>, vector<8x128xf32>,
    %307 = arith.truncf %304 : vector<8x128xf32> to vector<8x128xbf16>
    %308 = arith.index_cast %c6_i32 : i32 to index
    %c0_142 = arith.constant 0 : index
    %c0_143 = arith.constant 0 : index
    %309 = vector.load %arg4[%308, %c0_142, %c0_143] : memref<8x8x128xbf16, #tpu.memory_space<vmem>>, vector<1x8x128xbf16>
    %310 = vector.shape_cast %309 : vector<1x8x128xbf16> to vector<8x128xbf16>
    %311 = vector.shape_cast %307 : vector<8x128xbf16> to vector<1x8x128xbf16>
    tpu.vector_store %arg4[%308, %c0_142, %c0_143], %311 {strides = array<i32>} : memref<8x8x128xbf16, #tpu.memory_space<vmem>>, vector<1x8x128xbf16>,
    %c7_i32 = arith.constant 7 : i32
    %312 = arith.index_cast %c7_i32 : i32 to index
    %c0_144 = arith.constant 0 : index
    %c0_145 = arith.constant 0 : index
    %313 = vector.load %arg1[%312, %c0_144, %c0_145] : memref<8x8x128xbf16, #tpu.memory_space<vmem>>, vector<1x8x128xbf16>
    %314 = vector.shape_cast %313 : vector<1x8x128xbf16> to vector<8x128xbf16>
    %c0_146 = arith.constant 0 : index
    %c0_147 = arith.constant 0 : index
    %315 = vector.load %arg5[%c0_146, %c0_147] : memref<8x128xf32, #tpu.memory_space<vmem>>, vector<8x128xf32>
    %316 = arith.truncf %315 : vector<8x128xf32> to vector<8x128xbf16>
    %317 = tpu.concatenate %314, %316 in 1 : vector<8x128xbf16>, vector<8x128xbf16> -> vector<8x256xbf16>
    %c0_148 = arith.constant 0 : index
    %c0_149 = arith.constant 0 : index
    %318 = vector.load %arg2[%c0_148, %c0_149] : memref<256x512xbf16, #tpu.memory_space<vmem>>, vector<256x512xbf16>
    %cst_150 = arith.constant dense<0.000000e+00> : vector<8x512xf32>
    %319 = tpu.matmul %317, %318, %cst_150 {dimension_numbers = #tpu.dot_dimension_numbers<[1], [0], [0], [1], [0, 0, 1, 1], [], []>} : vector<8x256xbf16>, vector<256x512xbf16>, vector<8x512xf32> -> vector<8x512xf32>
    %c0_151 = arith.constant 0 : index
    %c0_152 = arith.constant 0 : index
    %320 = vector.load %arg3[%c0_151, %c0_152] : memref<1x512xf32, #tpu.memory_space<vmem>>, vector<1x512xf32>
    %321 = vector.broadcast %320 : vector<1x512xf32> to vector<8x512xf32>
    %322 = arith.addf %319, %321 : vector<8x512xf32>
    %323 = vector.extract_strided_slice %322 {offsets = [0, 0], sizes = [8, 128], strides = [1, 1]} : vector<8x512xf32> to vector<8x128xf32>
    %324 = arith.negf %323 : vector<8x128xf32>
    %325 = math.exp %324 : vector<8x128xf32>
    %cst_153 = arith.constant 1.000000e+00 : f32
    %326 = vector.broadcast %cst_153 : f32 to vector<8x128xf32>
    %327 = arith.addf %326, %325 : vector<8x128xf32>
    %328 = arith.divf %326, %327 : vector<8x128xf32>
    %329 = vector.extract_strided_slice %322 {offsets = [0, 128], sizes = [8, 128], strides = [1, 1]} : vector<8x512xf32> to vector<8x128xf32>
    %330 = arith.negf %329 : vector<8x128xf32>
    %331 = math.exp %330 : vector<8x128xf32>
    %cst_154 = arith.constant 1.000000e+00 : f32
    %332 = vector.broadcast %cst_154 : f32 to vector<8x128xf32>
    %333 = arith.addf %332, %331 : vector<8x128xf32>
    %334 = arith.divf %332, %333 : vector<8x128xf32>
    %335 = vector.extract_strided_slice %322 {offsets = [0, 256], sizes = [8, 128], strides = [1, 1]} : vector<8x512xf32> to vector<8x128xf32>
    %336 = math.tanh %335 : vector<8x128xf32>
    %337 = vector.extract_strided_slice %322 {offsets = [0, 384], sizes = [8, 128], strides = [1, 1]} : vector<8x512xf32> to vector<8x128xf32>
    %338 = arith.negf %337 : vector<8x128xf32>
    %339 = math.exp %338 : vector<8x128xf32>
    %cst_155 = arith.constant 1.000000e+00 : f32
    %340 = vector.broadcast %cst_155 : f32 to vector<8x128xf32>
    %341 = arith.addf %340, %339 : vector<8x128xf32>
    %342 = arith.divf %340, %341 : vector<8x128xf32>
    %c0_156 = arith.constant 0 : index
    %c0_157 = arith.constant 0 : index
    %343 = vector.load %arg6[%c0_156, %c0_157] : memref<8x128xf32, #tpu.memory_space<vmem>>, vector<8x128xf32>
    %344 = arith.mulf %334, %343 : vector<8x128xf32>
    %345 = arith.mulf %328, %336 : vector<8x128xf32>
    %346 = arith.addf %344, %345 : vector<8x128xf32>
    %347 = math.tanh %346 : vector<8x128xf32>
    %348 = arith.mulf %342, %347 : vector<8x128xf32>
    %c0_158 = arith.constant 0 : index
    %c0_159 = arith.constant 0 : index
    %349 = vector.load %arg6[%c0_158, %c0_159] : memref<8x128xf32, #tpu.memory_space<vmem>>, vector<8x128xf32>
    tpu.vector_store %arg6[%c0_158, %c0_159], %346 {strides = array<i32>} : memref<8x128xf32, #tpu.memory_space<vmem>>, vector<8x128xf32>,
    %c0_160 = arith.constant 0 : index
    %c0_161 = arith.constant 0 : index
    %350 = vector.load %arg5[%c0_160, %c0_161] : memref<8x128xf32, #tpu.memory_space<vmem>>, vector<8x128xf32>
    tpu.vector_store %arg5[%c0_160, %c0_161], %348 {strides = array<i32>} : memref<8x128xf32, #tpu.memory_space<vmem>>, vector<8x128xf32>,
    %351 = arith.truncf %348 : vector<8x128xf32> to vector<8x128xbf16>
    %352 = arith.index_cast %c7_i32 : i32 to index
    %c0_162 = arith.constant 0 : index
    %c0_163 = arith.constant 0 : index
    %353 = vector.load %arg4[%352, %c0_162, %c0_163] : memref<8x8x128xbf16, #tpu.memory_space<vmem>>, vector<1x8x128xbf16>
    %354 = vector.shape_cast %353 : vector<1x8x128xbf16> to vector<8x128xbf16>
    %355 = vector.shape_cast %351 : vector<8x128xbf16> to vector<1x8x128xbf16>
    tpu.vector_store %arg4[%352, %c0_162, %c0_163], %355 {strides = array<i32>} : memref<8x8x128xbf16, #tpu.memory_space<vmem>>, vector<1x8x128xbf16>,
    %c8_i32 = arith.constant 8 : i32
    return
  }
  func.func @transform_0(%arg0: i32) -> (i32, i32, i32) {
    %c0_i32 = arith.constant 0 : i32
    %c0_i32_0 = arith.constant 0 : i32
    %c0_i32_1 = arith.constant 0 : i32
    %c0_i32_2 = arith.constant 0 : i32
    return %c0_i32, %c0_i32_0, %c0_i32_1 : i32, i32, i32
  }
  func.func @transform_1(%arg0: i32) -> (i32, i32) {
    %c0_i32 = arith.constant 0 : i32
    %c0_i32_0 = arith.constant 0 : i32
    %c0_i32_1 = arith.constant 0 : i32
    return %c0_i32, %c0_i32_0 : i32, i32
  }
  func.func @transform_2(%arg0: i32) -> (i32, i32) {
    %c0_i32 = arith.constant 0 : i32
    %c0_i32_0 = arith.constant 0 : i32
    %c0_i32_1 = arith.constant 0 : i32
    return %c0_i32, %c0_i32_0 : i32, i32
  }
  func.func @transform_3(%arg0: i32) -> (i32, i32, i32) {
    %c0_i32 = arith.constant 0 : i32
    %c0_i32_0 = arith.constant 0 : i32
    %c0_i32_1 = arith.constant 0 : i32
    %c0_i32_2 = arith.constant 0 : i32
    return %c0_i32, %c0_i32_0, %c0_i32_1 : i32, i32, i32
  }
}

</mosaic_0001>

<llo_original>
// kernel: decoder_rnn_forward.3
$region0: #{decoder_rnn_forward.3}
  #allocation0 [shape = 'u32[]', space=smem, size = 0x4, offset = 0x4, fixed_abs, tag = 'smem constant byte address 0x4 - core index']
  #allocation1 [shape = 'u32[144,128]{1,0:T(1,128)}', space=vmem, size = 0x12000, scoped, tag = 'internal scratch']
  %s0 = inlined_call_operand.vmem [shape: bf16[16,128], index: 0, kind: input, shape index: {}]
  %s1 = inlined_call_operand.vmem [shape: bf16[128,256], index: 1, kind: input, shape index: {}]
  %s2 = inlined_call_operand.vmem [shape: f32[1,256], index: 2, kind: input, shape index: {}]
  %s3 = inlined_call_operand.hbm [shape: f32[16,256], index: 3, kind: output, shape index: {}]
  %s4 = sld [smem:[#allocation0]]
  $region86: #{decoder_rnn_forward.3} parent=0
    _
  %s6 = ssub.s32 1, %s4
  %s7 = scalar_select 0, %s6, %s4
  $region1: #{decoder_rnn_forward.3} parent=0
    #allocation2 [shape = 'u8[65536]{0}', space=vmem, size = 0x10000, scoped, tag = 'input window, operand 1']
    #allocation3 [shape = 'u8[16384]{0}', space=vmem, size = 0x4000, scoped, tag = 'output window, operand 0']
    #allocation4 [shape = 's32[2]{0}', space=sflag, size = 0x8, scoped, tag = 'scoped memory for decoder_rnn_forward.3']
    %8 = vsyncpa [#allocation4], 0
    %s9 = scalar_lea.sflag [#allocation4], 1
    %10 = vsyncpa %s9, 0
    loop: start=0, step=1, limit=4
    $region2: #{decoder_rnn_forward.3} parent=1 // loop_pre_header
      _
    $region3: #{decoder_rnn_forward.3} parent=1 // loop_header
      %s12 = sphi 0, %s16
      %p13 = scmp.ge.s32.totalorder %s12, 4
      %s19 = sphi 0, %s31
      %s20 = sphi 0, %s27
      %s21 = sphi 0, %s19
      %s22 = sphi 0, %s20
      %s23 = sphi 0, %s21
      %s24 = sphi 0, %s22
      %s34 = sphi 0, %s36
      %s37 = sphi 0, %s34
      %s38 = sphi 0, %s37
      %s54 = sphi 0, %s38
      %s60 = sphi 0, %s62
      %s63 = sphi 0, %s60
      %s64 = sphi 0, %s63
      %s80 = sphi 0, %s64
      %s86 = sphi 0, %s88
      %s89 = sphi 0, %s86
      %s90 = sphi 0, %s89
      %s106 = sphi 0, %s90
      %s114 = sphi 0, %s116
      %s117 = sphi 0, %s114
      %s118 = sphi 0, %s117
      %s134 = sphi 0, %s118
    $region4: #{decoder_rnn_forward.3} parent=1 // loop_header_branch
      %15 = sbr.rel (%p13) target = $region8
    $region5: #{decoder_rnn_forward.3} parent=1 // loop_body
      %s17 = ssub.s32 %s12, 1
      %s18 = ssub.s32 %s12, 2
      %s25 = sadd.s32 1, %s20
      %p26 = scmp.ge.s32.totalorder %s25, 2
      %s27 = scalar_select %p26, 0, %s25
      %s28 = sadd.s32 1, %s19
      %s29 = scalar_select %p26, %s28, %s19
      %p30 = scmp.ge.s32.totalorder %s29, 1
      %s31 = scalar_select %p30, 0, %s29
      %s32 = ssub.s32 %s19, %s31
      %p33 = scmp.eq.s32.totalorder %s32, 0
      %s35 = sadd.s32 %s34, 1
      %s36 = scalar_select %p33, %s34, %s35
      %p39 = pneg %p33
      %p40 = scmp.eq.s32.totalorder %s12, 1
      %p41 = por %p39, %p40
      %p42 = scmp.ne.s32.totalorder %s34, %s37
      %p43 = scmp.eq.s32.totalorder %s12, 0
      %p44 = por %p42, %p43
      %p45 = scmp.ne.s32.totalorder %s34, %s37
      %p46 = scmp.eq.s32.totalorder %s17, 1
      %p47 = por %p45, %p46
      %p48 = scmp.ne.s32.totalorder %s37, %s38
      %p49 = scmp.eq.s32.totalorder %s17, 0
      %p50 = por %p48, %p49
      %p51 = scmp.ne.s32.totalorder %s37, %s38
      %p52 = scmp.eq.s32.totalorder %s18, 1
      %p53 = por %p51, %p52
      %p55 = scmp.ne.s32.totalorder %s38, %s54
      %p56 = scmp.eq.s32.totalorder %s18, 0
      %p57 = por %p55, %p56
      %s58 = ssub.s32 %s20, %s27
      %p59 = scmp.eq.s32.totalorder %s58, 0
      %s61 = sadd.s32 %s60, 1
      %s62 = scalar_select %p59, %s60, %s61
      %p65 = pneg %p59
      %p66 = scmp.eq.s32.totalorder %s12, 1
      %p67 = por %p65, %p66
      %p68 = scmp.ne.s32.totalorder %s60, %s63
      %p69 = scmp.eq.s32.totalorder %s12, 0
      %p70 = por %p68, %p69
      %p71 = scmp.ne.s32.totalorder %s60, %s63
      %p72 = scmp.eq.s32.totalorder %s17, 1
      %p73 = por %p71, %p72
      %p74 = scmp.ne.s32.totalorder %s63, %s64
      %p75 = scmp.eq.s32.totalorder %s17, 0
      %p76 = por %p74, %p75
      %p77 = scmp.ne.s32.totalorder %s63, %s64
      %p78 = scmp.eq.s32.totalorder %s18, 1
      %p79 = por %p77, %p78
      %p81 = scmp.ne.s32.totalorder %s64, %s80
      %p82 = scmp.eq.s32.totalorder %s18, 0
      %p83 = por %p81, %p82
      %s84 = ssub.s32 %s20, %s27
      %p85 = scmp.eq.s32.totalorder %s84, 0
      %s87 = sadd.s32 %s86, 1
      %s88 = scalar_select %p85, %s86, %s87
      %p91 = pneg %p85
      %p92 = scmp.eq.s32.totalorder %s12, 1
      %p93 = por %p91, %p92
      %p94 = scmp.ne.s32.totalorder %s86, %s89
      %p95 = scmp.eq.s32.totalorder %s12, 0
      %p96 = por %p94, %p95
      %p97 = scmp.ne.s32.totalorder %s86, %s89
      %p98 = scmp.eq.s32.totalorder %s17, 1
      %p99 = por %p97, %p98
      %p100 = scmp.ne.s32.totalorder %s89, %s90
      %p101 = scmp.eq.s32.totalorder %s17, 0
      %p102 = por %p100, %p101
      %p103 = scmp.ne.s32.totalorder %s89, %s90
      %p104 = scmp.eq.s32.totalorder %s18, 1
      %p105 = por %p103, %p104
      %p107 = scmp.ne.s32.totalorder %s90, %s106
      %p108 = scmp.eq.s32.totalorder %s18, 0
      %p109 = por %p107, %p108
      %s110 = ssub.s32 %s19, %s31
      %s111 = ssub.s32 %s20, %s27
      %s112 = sor.u32 %s110, %s111
      %p113 = scmp.eq.s32.totalorder %s112, 0
      %s115 = sadd.s32 %s114, 1
      %s116 = scalar_select %p113, %s114, %s115
      %p119 = pneg %p113
      %p120 = scmp.eq.s32.totalorder %s12, 1
      %p121 = por %p119, %p120
      %p122 = scmp.ne.s32.totalorder %s114, %s117
      %p123 = scmp.eq.s32.totalorder %s12, 0
      %p124 = por %p122, %p123
      %p125 = scmp.ne.s32.totalorder %s114, %s117
      %p126 = scmp.eq.s32.totalorder %s17, 1
      %p127 = por %p125, %p126
      %p128 = scmp.ne.s32.totalorder %s117, %s118
      %p129 = scmp.eq.s32.totalorder %s17, 0
      %p130 = por %p128, %p129
      %p131 = scmp.ne.s32.totalorder %s117, %s118
      %p132 = scmp.eq.s32.totalorder %s18, 1
      %p133 = por %p131, %p132
      %p135 = scmp.ne.s32.totalorder %s118, %s134
      %p136 = scmp.eq.s32.totalorder %s18, 0
      %p137 = por %p135, %p136
      %p138 = scmp.le.s32.totalorder 1, %s12
      %p139 = scmp.lt.s32.totalorder %s12, 3
      %p140 = pnand %p138, %p139
      %p141 = pneg %p140
      // Predicated region
      $region9: #{decoder_rnn_forward.3} parent=5 // pred_check
        _
      $region10: #{decoder_rnn_forward.3} parent=5 // pred_check_branch
        %143 = sbr.rel (%p140) target = $region12
      $region11: #{decoder_rnn_forward.3} parent=5 // pred_region
        %s144 = ssub.s32 %s12, 1
        // Predicated region
        $region13: #{decoder_rnn_forward.3} parent=11 // pred_check
          %p145 = pneg %p50
        $region14: #{decoder_rnn_forward.3} parent=11 // pred_check_branch
          %147 = sbr.rel (%p145) target = $region16
        $region15: #{decoder_rnn_forward.3} parent=11 // pred_region
          %s148 = smul.u32 2, %s21
          %p149 = scmp.lt.s32.totalorder %s148, 1
          %s150 = scalar_select %p149, %s148, 1
          %s151 = smul.addr %s150, 4
          %s152 = scalar_lea.vmem %s0, %s151
          %s153 = smul.u32 2, %s21
        $region16: #{decoder_rnn_forward.3} parent=11 // pred_fallthru
          _
      $region12: #{decoder_rnn_forward.3} parent=5 // pred_fallthru
        _
      %p154 = scmp.lt.s32.totalorder %s12, 2
      // Predicated region
      $region17: #{decoder_rnn_forward.3} parent=5 // pred_check
        %p155 = pneg %p154
      $region18: #{decoder_rnn_forward.3} parent=5 // pred_check_branch
        %157 = sbr.rel (%p155) target = $region20
      $region19: #{decoder_rnn_forward.3} parent=5 // pred_region
        // Predicated region
        $region21: #{decoder_rnn_forward.3} parent=19 // pred_check
          %p158 = pneg %p70
        $region22: #{decoder_rnn_forward.3} parent=19 // pred_check_branch
          %160 = sbr.rel (%p158) target = $region24
        $region23: #{decoder_rnn_forward.3} parent=19 // pred_region
          %s161 = sand.u32 %s60, 1
          %s162 = sand.u32 %s60, 1
          %s163 = smul.addr %s162, 64
          %s164 = scalar_lea.vmem [#allocation2], %s163
          %s165 = smul.addr %s20, 4
          %s166 = scalar_lea.vmem %s1, %s165
          // Predicated region
          $region25: #{decoder_rnn_forward.3} parent=23 // pred_check
            _
          $region26: #{decoder_rnn_forward.3} parent=23 // pred_check_branch
            %168 = sbr.rel (0) target = $region28
          $region27: #{decoder_rnn_forward.3} parent=23 // pred_region
            // Predicated region
            $region29: #{decoder_rnn_forward.3} parent=27 // pred_check
              _
            $region30: #{decoder_rnn_forward.3} parent=27 // pred_check_branch
              %170 = sbr.rel target = $region32
            $region31: #{decoder_rnn_forward.3} parent=27 // pred_region
              // Predicated region
              $region44: #{decoder_rnn_forward.3} parent=31 // pred_check
                _
              $region45: #{decoder_rnn_forward.3} parent=31 // pred_check_branch
                %215 = sbr.rel (0) target = $region47
              $region46: #{decoder_rnn_forward.3} parent=31 // pred_region
                loop: start=0, step=1, limit=1
                $region48: #{decoder_rnn_forward.3} parent=46 // loop_pre_header
                  _
                $region49: #{decoder_rnn_forward.3} parent=46 // loop_header
                  %s217 = sphi 0, %s221
                  %p218 = scmp.ge.s32.totalorder %s217, 1
                  %s222 = sphi %s166, %s166
                  %s223 = sphi %s164, %s164
                $region50: #{decoder_rnn_forward.3} parent=46 // loop_header_branch
                  %220 = sbr.rel (%p218) target = $region54
                $region51: #{decoder_rnn_forward.3} parent=46 // loop_body
                  _
                $region52: #{decoder_rnn_forward.3} parent=46 // loop_footer
                  %s221 = sadd.s32 1, %s217
                $region53: #{decoder_rnn_forward.3} parent=46 // loop_footer_branch
                  %216 = sbr.rel target = $region49
                $region54: #{decoder_rnn_forward.3} parent=46 // loop_exit
                  _
                loop: start=0, step=1, limit=1
                $region55: #{decoder_rnn_forward.3} parent=46 // loop_pre_header
                  _
                $region56: #{decoder_rnn_forward.3} parent=46 // loop_header
                  %s226 = sphi 0, %s230
                  %p227 = scmp.ge.s32.totalorder %s226, 1
                  %s231 = sphi %s166, %s166
                  %s232 = sphi %s164, %s164
                $region57: #{decoder_rnn_forward.3} parent=46 // loop_header_branch
                  %229 = sbr.rel (%p227) target = $region61
                $region58: #{decoder_rnn_forward.3} parent=46 // loop_body
                  %v233 = vld [vmem:[%s231] sm:$0xf]
                  %234 = vst [vmem:[%s232] sm:$0xf] %v233
                  %v235 = vld [vmem:[%s231 + $0x8] sm:$0xf]
                  %236 = vst [vmem:[%s232 + $0x4] sm:$0xf] %v235
                  %v237 = vld [vmem:[%s231 + $0x10] sm:$0xf]
                  %238 = vst [vmem:[%s232 + $0x8] sm:$0xf] %v237
                  %v239 = vld [vmem:[%s231 + $0x18] sm:$0xf]
                  %240 = vst [vmem:[%s232 + $0xc] sm:$0xf] %v239
                  %v241 = vld [vmem:[%s231 + $0x20] sm:$0xf]
                  %242 = vst [vmem:[%s232 + $0x10] sm:$0xf] %v241
                  %v243 = vld [vmem:[%s231 + $0x28] sm:$0xf]
                  %244 = vst [vmem:[%s232 + $0x14] sm:$0xf] %v243
                  %v245 = vld [vmem:[%s231 + $0x30] sm:$0xf]
                  %246 = vst [vmem:[%s232 + $0x18] sm:$0xf] %v245
                  %v247 = vld [vmem:[%s231 + $0x38] sm:$0xf]
                  %248 = vst [vmem:[%s232 + $0x1c] sm:$0xf] %v247
                  %v249 = vld [vmem:[%s231 + $0x40] sm:$0xf]
                  %250 = vst [vmem:[%s232 + $0x20] sm:$0xf] %v249
                  %v251 = vld [vmem:[%s231 + $0x48] sm:$0xf]
                  %252 = vst [vmem:[%s232 + $0x24] sm:$0xf] %v251
                  %v253 = vld [vmem:[%s231 + $0x50] sm:$0xf]
                  %254 = vst [vmem:[%s232 + $0x28] sm:$0xf] %v253
                  %v255 = vld [vmem:[%s231 + $0x58] sm:$0xf]
                  %256 = vst [vmem:[%s232 + $0x2c] sm:$0xf] %v255
                  %v257 = vld [vmem:[%s231 + $0x60] sm:$0xf]
                  %258 = vst [vmem:[%s232 + $0x30] sm:$0xf] %v257
                  %v259 = vld [vmem:[%s231 + $0x68] sm:$0xf]
                  %260 = vst [vmem:[%s232 + $0x34] sm:$0xf] %v259
                  %v261 = vld [vmem:[%s231 + $0x70] sm:$0xf]
                  %262 = vst [vmem:[%s232 + $0x38] sm:$0xf] %v261
                  %v263 = vld [vmem:[%s231 + $0x78] sm:$0xf]
                  %264 = vst [vmem:[%s232 + $0x3c] sm:$0xf] %v263
                $region59: #{decoder_rnn_forward.3} parent=46 // loop_footer
                  %s230 = sadd.s32 1, %s226
                $region60: #{decoder_rnn_forward.3} parent=46 // loop_footer_branch
                  %225 = sbr.rel target = $region56
                $region61: #{decoder_rnn_forward.3} parent=46 // loop_exit
                  _
              $region47: #{decoder_rnn_forward.3} parent=31 // pred_fallthru
                _
            $region32: #{decoder_rnn_forward.3} parent=27 // pred_fallthru
              _
            // Predicated region
            $region33: #{decoder_rnn_forward.3} parent=27 // pred_check
              _
            $region34: #{decoder_rnn_forward.3} parent=27 // pred_check_branch
              %172 = sbr.rel (0) target = $region36
            $region35: #{decoder_rnn_forward.3} parent=27 // pred_region
              loop: start=0, step=1, limit=1
              $region37: #{decoder_rnn_forward.3} parent=35 // loop_pre_header
                _
              $region38: #{decoder_rnn_forward.3} parent=35 // loop_header
                %s175 = sphi 0, %s179
                %p176 = scmp.ge.s32.totalorder %s175, 1
                %s180 = sphi %s166, %s166
                %s181 = sphi %s164, %s164
              $region39: #{decoder_rnn_forward.3} parent=35 // loop_header_branch
                %178 = sbr.rel (%p176) target = $region43
              $region40: #{decoder_rnn_forward.3} parent=35 // loop_body
                %v182 = vld [vmem:[%s180] sm:$0xf]
                %183 = vst [vmem:[%s181] sm:$0xf] %v182
                %v184 = vld [vmem:[%s180 + $0x8] sm:$0xf]
                %185 = vst [vmem:[%s181 + $0x4] sm:$0xf] %v184
                %v186 = vld [vmem:[%s180 + $0x10] sm:$0xf]
                %187 = vst [vmem:[%s181 + $0x8] sm:$0xf] %v186
                %v188 = vld [vmem:[%s180 + $0x18] sm:$0xf]
                %189 = vst [vmem:[%s181 + $0xc] sm:$0xf] %v188
                %v190 = vld [vmem:[%s180 + $0x20] sm:$0xf]
                %191 = vst [vmem:[%s181 + $0x10] sm:$0xf] %v190
                %v192 = vld [vmem:[%s180 + $0x28] sm:$0xf]
                %193 = vst [vmem:[%s181 + $0x14] sm:$0xf] %v192
                %v194 = vld [vmem:[%s180 + $0x30] sm:$0xf]
                %195 = vst [vmem:[%s181 + $0x18] sm:$0xf] %v194
                %v196 = vld [vmem:[%s180 + $0x38] sm:$0xf]
                %197 = vst [vmem:[%s181 + $0x1c] sm:$0xf] %v196
                %v198 = vld [vmem:[%s180 + $0x40] sm:$0xf]
                %199 = vst [vmem:[%s181 + $0x20] sm:$0xf] %v198
                %v200 = vld [vmem:[%s180 + $0x48] sm:$0xf]
                %201 = vst [vmem:[%s181 + $0x24] sm:$0xf] %v200
                %v202 = vld [vmem:[%s180 + $0x50] sm:$0xf]
                %203 = vst [vmem:[%s181 + $0x28] sm:$0xf] %v202
                %v204 = vld [vmem:[%s180 + $0x58] sm:$0xf]
                %205 = vst [vmem:[%s181 + $0x2c] sm:$0xf] %v204
                %v206 = vld [vmem:[%s180 + $0x60] sm:$0xf]
                %207 = vst [vmem:[%s181 + $0x30] sm:$0xf] %v206
                %v208 = vld [vmem:[%s180 + $0x68] sm:$0xf]
                %209 = vst [vmem:[%s181 + $0x34] sm:$0xf] %v208
                %v210 = vld [vmem:[%s180 + $0x70] sm:$0xf]
                %211 = vst [vmem:[%s181 + $0x38] sm:$0xf] %v210
                %v212 = vld [vmem:[%s180 + $0x78] sm:$0xf]
                %213 = vst [vmem:[%s181 + $0x3c] sm:$0xf] %v212
              $region41: #{decoder_rnn_forward.3} parent=35 // loop_footer
                %s179 = sadd.s32 1, %s175
              $region42: #{decoder_rnn_forward.3} parent=35 // loop_footer_branch
                %174 = sbr.rel target = $region38
              $region43: #{decoder_rnn_forward.3} parent=35 // loop_exit
                _
            $region36: #{decoder_rnn_forward.3} parent=27 // pred_fallthru
              _
          $region28: #{decoder_rnn_forward.3} parent=23 // pred_fallthru
            _
          %265 = vnop
        $region24: #{decoder_rnn_forward.3} parent=19 // pred_fallthru
          _
        // Predicated region
        $region62: #{decoder_rnn_forward.3} parent=19 // pred_check
          %p266 = pneg %p96
        $region63: #{decoder_rnn_forward.3} parent=19 // pred_check_branch
          %268 = sbr.rel (%p266) target = $region65
        $region64: #{decoder_rnn_forward.3} parent=19 // pred_region
          %p269 = scmp.lt.s32.totalorder %s20, 1
          %s270 = scalar_select %p269, %s20, 1
          %s271 = scalar_lea.vmem %s2, %s270
        $region65: #{decoder_rnn_forward.3} parent=19 // pred_fallthru
          _
      $region20: #{decoder_rnn_forward.3} parent=5 // pred_fallthru
        _
      %p272 = scmp.le.s32.totalorder 1, %s12
      %p273 = scmp.lt.s32.totalorder %s12, 3
      %p274 = pnand %p272, %p273
      %p275 = pneg %p274
      // Predicated region
      $region66: #{decoder_rnn_forward.3} parent=5 // pred_check
        _
      $region67: #{decoder_rnn_forward.3} parent=5 // pred_check_branch
        %277 = sbr.rel (%p274) target = $region69
      $region68: #{decoder_rnn_forward.3} parent=5 // pred_region
        %s278 = ssub.s32 %s12, 1
        %s279 = sand.u32 %s63, 1
        %s280 = sand.u32 %s63, 1
        %s281 = smul.addr %s280, 64
        %s282 = scalar_lea.vmem [#allocation2], %s281
        // Predicated region
        $region70: #{decoder_rnn_forward.3} parent=68 // pred_check
          %p283 = pneg %p76
        $region71: #{decoder_rnn_forward.3} parent=68 // pred_check_branch
          %285 = sbr.rel (%p283) target = $region73
        $region72: #{decoder_rnn_forward.3} parent=68 // pred_region
          _
        $region73: #{decoder_rnn_forward.3} parent=68 // pred_fallthru
          _
        %s286 = smul.u32 2, %s21
        %p287 = scmp.lt.s32.totalorder %s286, 1
        %s288 = scalar_select %p287, %s286, 1
        %s289 = smul.addr %s288, 4
        %s290 = scalar_lea.vmem %s0, %s289
        %p291 = pneg %p50
        %p292 = pneg %p47
        %s293 = sand.u32 %s63, 1
        %s294 = sand.u32 %s63, 1
        %s295 = smul.addr %s294, 64
        %s296 = scalar_lea.vmem [#allocation2], %s295
        %p297 = pneg %p76
        %p298 = pneg %p73
        %p299 = scmp.lt.s32.totalorder %s22, 1
        %s300 = scalar_select %p299, %s22, 1
        %s301 = scalar_lea.vmem %s2, %s300
        %p302 = pneg %p102
        %p303 = pneg %p99
        %p304 = pneg %p130
        %p305 = pneg %p127
        %s306 = sand.u32 %s117, 1
        %s307 = scalar_lea.sflag [#allocation4], %s306
        %s308 = sand.u32 %s117, 1
        %s309 = smul.addr %s308, 16
        %s310 = scalar_lea.vmem [#allocation3], %s309
        %s311 = smul.u32 2, %s21
        %p312 = scmp.lt.s32.totalorder %s311, 1
        %s313 = scalar_select %p312, %s311, 1
        %s314 = smul.addr %s313, 4
        %s315 = scalar_lea.vmem %s0, %s314
        %s316 = smul.u32 2, %s21
        %p317 = scmp.lt.s32.totalorder %s22, 1
        %s318 = scalar_select %p317, %s22, 1
        %s319 = scalar_lea.vmem %s2, %s318
        %s320 = smul.u32 2, %s21
        %v322 = vld [vmem:[%s315] sm:$0xf]
        %v323 = vld [vmem:[%s315 + $0x4] sm:$0xf]
        %v324 = vld [vmem:[%s282] sm:$0xf]
        %v325 = vld [vmem:[%s282 + $0x4] sm:$0xf]
        %v326 = vld [vmem:[%s282 + $0x8] sm:$0xf]
        %v327 = vld [vmem:[%s282 + $0xc] sm:$0xf]
        %v328 = vld [vmem:[%s282 + $0x10] sm:$0xf]
        %v329 = vld [vmem:[%s282 + $0x14] sm:$0xf]
        %v330 = vld [vmem:[%s282 + $0x18] sm:$0xf]
        %v331 = vld [vmem:[%s282 + $0x1c] sm:$0xf]
        %v332 = vld [vmem:[%s282 + $0x20] sm:$0xf]
        %v333 = vld [vmem:[%s282 + $0x24] sm:$0xf]
        %v334 = vld [vmem:[%s282 + $0x28] sm:$0xf]
        %v335 = vld [vmem:[%s282 + $0x2c] sm:$0xf]
        %v336 = vld [vmem:[%s282 + $0x30] sm:$0xf]
        %v337 = vld [vmem:[%s282 + $0x34] sm:$0xf]
        %v338 = vld [vmem:[%s282 + $0x38] sm:$0xf]
        %v339 = vld [vmem:[%s282 + $0x3c] sm:$0xf]
        %v340 = vld [vmem:[%s319] sm:$0x1]
        %v342 = vlaneseq
        %v343 = vshrl.u32 %v342, 7
        %v344 = vsub.s32 0, %v343
        %v345 = vrot.slane %v340, %v344
        %v349 = vunpack.c.l.b16 %v322
        %v350 = vunpack.c.l.b16 %v323
        %v351 = vpack.c.b16 %v350, %v349
        %v369 = vunpack.c.l.b16 %v324
        %v370 = vunpack.c.l.b16 %v325
        %v371 = vunpack.c.l.b16 %v326
        %v372 = vunpack.c.l.b16 %v327
        %v373 = vunpack.c.l.b16 %v328
        %v374 = vunpack.c.l.b16 %v329
        %v375 = vunpack.c.l.b16 %v330
        %v376 = vunpack.c.l.b16 %v331
        %v377 = vunpack.c.l.b16 %v332
        %v378 = vunpack.c.l.b16 %v333
        %v379 = vunpack.c.l.b16 %v334
        %v380 = vunpack.c.l.b16 %v335
        %v381 = vunpack.c.l.b16 %v336
        %v382 = vunpack.c.l.b16 %v337
        %v383 = vunpack.c.l.b16 %v338
        %v384 = vunpack.c.l.b16 %v339
        %v385 = vpack.c.b16 %v370, %v369
        %v386 = vpack.c.b16 %v372, %v371
        %v387 = vpack.c.b16 %v374, %v373
        %v388 = vpack.c.b16 %v376, %v375
        %v389 = vpack.c.b16 %v378, %v377
        %v390 = vpack.c.b16 %v380, %v379
        %v391 = vpack.c.b16 %v382, %v381
        %v392 = vpack.c.b16 %v384, %v383
        %401 = vmatprep.subr.bf16.mxu0 0
        %402 = vmatpush1.bf16.msra.mxu0 %v385
        %403 = vmatprep.subr.bf16.mxu0 0
        %404 = vmatpush1.bf16.msra.mxu0 %v386
        %405 = vmatprep.subr.bf16.mxu0 0
        %406 = vmatpush1.bf16.msra.mxu0 %v387
        %407 = vmatprep.subr.bf16.mxu0 0
        %408 = vmatpush1.bf16.msra.mxu0 %v388
        %409 = vmatprep.subr.bf16.mxu0 0
        %410 = vmatpush1.bf16.msra.mxu0 %v389
        %411 = vmatprep.subr.bf16.mxu0 0
        %412 = vmatpush1.bf16.msra.mxu0 %v390
        %413 = vmatprep.subr.bf16.mxu0 0
        %414 = vmatpush1.bf16.msra.mxu0 %v391
        %415 = vmatprep.subr.bf16.mxu0 0
        %416 = vmatpush1.bf16.msra.mxu0 %v392
        %417 = vmatprep.subr.bf16.mxu0 0
        %418 = vmatpush1.bf16.msra.mxu0 0
        %419 = vmatprep.subr.bf16.mxu0 0
        %420 = vmatpush1.bf16.msra.mxu0 0
        %421 = vmatprep.subr.bf16.mxu0 0
        %422 = vmatpush1.bf16.msra.mxu0 0
        %423 = vmatprep.subr.bf16.mxu0 0
        %424 = vmatpush1.bf16.msra.mxu0 0
        %425 = vmatprep.subr.bf16.mxu0 0
        %426 = vmatpush1.bf16.msra.mxu0 0
        %427 = vmatprep.subr.bf16.mxu0 0
        %428 = vmatpush1.bf16.msra.mxu0 0
        %429 = vmatprep.subr.bf16.mxu0 0
        %430 = vmatpush1.bf16.msra.mxu0 0
        %431 = vmatprep.subr.bf16.mxu0 0
        %432 = vmatpush1.bf16.msra.mxu0 0
        %433 = vmatprep.mubr.bf16.mxu0 0
        %434 = vmatmul.mubr.bf16.gmra.mrb[0].mxu0 %v351
        %v435 = vpop.f32.mrb[0].mxu0
        %v436 = vadd.f32 %v345, %v435
        %v437 = vpop.f32.mrb[0].mxu0
        %v438 = vpop.f32.mrb[0].mxu0
        %v439 = vadd.f32 %v345, %v438
        %v440 = vpop.f32.mrb[0].mxu0
        %441 = vdwg.mxu0
        %442 = vst [vmem:[%s310] sm:$0xff] %v436
        %443 = vst [vmem:[%s310 + $0x8] sm:$0xff] %v439
        %s444 = sand.u32 %s117, 1
        %s445 = scalar_lea.sflag [#allocation4], %s444
        %s446 = sand.u32 %s117, 1
        %s447 = smul.addr %s446, 16
        %s448 = scalar_lea.vmem [#allocation3], %s447
        // Predicated region
        $region74: #{decoder_rnn_forward.3} parent=68 // pred_check
          %p449 = pneg %p127
        $region75: #{decoder_rnn_forward.3} parent=68 // pred_check_branch
          %451 = sbr.rel (%p449) target = $region77
        $region76: #{decoder_rnn_forward.3} parent=68 // pred_region
          %s452 = smul.u32 2, %s21
          %s454 = ssub.s32 256, 256
          %455 = vsyncadd %s445, %s454
          %s456 = smul.addr %s452, 2
          %s457 = sadd.s32 %s22, %s456
          %s458 = smul.addr %s457, 128
          %s459 = scalar_lea.hbm %s3, %s458
          %s460 = sshll.u32 %s448, 4
          %s461 = int_to_ptr.vmem [resolvable:$true] %s460
          %466 = dma.vmem_to_hbm [thread:$0]  %s461, 256, %s459, %s445, 128, 256, 8
        $region77: #{decoder_rnn_forward.3} parent=68 // pred_fallthru
          _
      $region69: #{decoder_rnn_forward.3} parent=5 // pred_fallthru
        _
      %p467 = scmp.le.s32.totalorder 2, %s12
      // Predicated region
      $region78: #{decoder_rnn_forward.3} parent=5 // pred_check
        %p468 = pneg %p467
      $region79: #{decoder_rnn_forward.3} parent=5 // pred_check_branch
        %470 = sbr.rel (%p468) target = $region81
      $region80: #{decoder_rnn_forward.3} parent=5 // pred_region
        %s471 = ssub.s32 %s12, 2
        // Predicated region
        $region82: #{decoder_rnn_forward.3} parent=80 // pred_check
          %p472 = pneg %p133
        $region83: #{decoder_rnn_forward.3} parent=80 // pred_check_branch
          %474 = sbr.rel (%p472) target = $region85
        $region84: #{decoder_rnn_forward.3} parent=80 // pred_region
          %s475 = sand.u32 %s118, 1
          %s476 = scalar_lea.sflag [#allocation4], %s475
          %s477 = sand.u32 %s118, 1
          %s478 = smul.addr %s477, 16
          %s479 = scalar_lea.vmem [#allocation3], %s478
          %480 = dma.done %s476, 256
        $region85: #{decoder_rnn_forward.3} parent=80 // pred_fallthru
          _
      $region81: #{decoder_rnn_forward.3} parent=5 // pred_fallthru
        _
    $region6: #{decoder_rnn_forward.3} parent=1 // loop_footer
      %s16 = sadd.s32 1, %s12
    $region7: #{decoder_rnn_forward.3} parent=1 // loop_footer_branch
      %11 = sbr.rel target = $region3
    $region8: #{decoder_rnn_forward.3} parent=1 // loop_exit
      _
    %481 = vsyncpa [#allocation4], 1
    %s482 = scalar_lea.sflag [#allocation4], 1
    %483 = vsyncpa %s482, 1

// kernel: decoder_rnn_forward.2
$region0: #{decoder_rnn_forward.2}
  #allocation0 [shape = 'u32[]', space=smem, size = 0x4, offset = 0x4, fixed_abs, tag = 'smem constant byte address 0x4 - core index']
  #allocation1 [shape = 'u32[144,128]{1,0:T(1,128)}', space=vmem, size = 0x12000, scoped, tag = 'internal scratch']
  #allocation2 [shape = 'f32[8,128]{1,0:T(8,128)}', space=vmem, size = 0x1000, scoped, tag = 'scratch operand']
  #allocation3 [shape = 'f32[8,128]{1,0:T(8,128)}', space=vmem, size = 0x1000, scoped, tag = 'scratch operand']
  %s0 = inlined_call_operand.vmem [shape: bf16[8,8,128], index: 0, kind: input, shape index: {}]
  %s1 = inlined_call_operand.vmem [shape: bf16[256,512], index: 1, kind: input, shape index: {}]
  %s2 = inlined_call_operand.vmem [shape: f32[1,512], index: 2, kind: input, shape index: {}]
  %s3 = inlined_call_operand.vmem [shape: bf16[8,8,128], index: 3, kind: output, shape index: {}]
  %s4 = sld [smem:[#allocation0]]
  $region22: #{decoder_rnn_forward.2} parent=0
    _
  %s6 = ssub.s32 1, %s4
  %s7 = scalar_select 0, %s6, %s4
  // Predicated region
  $region2: #{decoder_rnn_forward.2} parent=0 // pred_check
    _
  $region3: #{decoder_rnn_forward.2} parent=0 // pred_check_branch
    %9 = sbr.rel (0) target = $region5
  $region4: #{decoder_rnn_forward.2} parent=0 // pred_region
    _
  $region5: #{decoder_rnn_forward.2} parent=0 // pred_fallthru
    _
  // Predicated region
  $region6: #{decoder_rnn_forward.2} parent=0 // pred_check
    _
  $region7: #{decoder_rnn_forward.2} parent=0 // pred_check_branch
    %11 = sbr.rel (0) target = $region9
  $region8: #{decoder_rnn_forward.2} parent=0 // pred_region
    _
  $region9: #{decoder_rnn_forward.2} parent=0 // pred_fallthru
    _
  // Predicated region
  $region10: #{decoder_rnn_forward.2} parent=0 // pred_check
    _
  $region11: #{decoder_rnn_forward.2} parent=0 // pred_check_branch
    %13 = sbr.rel (0) target = $region13
  $region12: #{decoder_rnn_forward.2} parent=0 // pred_region
    _
  $region13: #{decoder_rnn_forward.2} parent=0 // pred_fallthru
    _
  %14 = vst [vmem:[#allocation2] sm:$0xff] 0.0
  %15 = vst [vmem:[#allocation3] sm:$0xff] 0.0
  %v16 = vld [vmem:[%s0] sm:$0xf]
  %v17 = vld [vmem:[#allocation2] sm:$0xff]
  %v18 = vpack.c.bf16 %v17, %v17
  %v19 = vld [vmem:[%s1] sm:$0xff]
  %v20 = vld [vmem:[%s1 + $0x8] sm:$0xff]
  %v21 = vld [vmem:[%s1 + $0x10] sm:$0xff]
  %v22 = vld [vmem:[%s1 + $0x18] sm:$0xff]
  %v23 = vld [vmem:[%s1 + $0x20] sm:$0xff]
  %v24 = vld [vmem:[%s1 + $0x28] sm:$0xff]
  %v25 = vld [vmem:[%s1 + $0x30] sm:$0xff]
  %v26 = vld [vmem:[%s1 + $0x38] sm:$0xff]
  %v27 = vld [vmem:[%s1 + $0x40] sm:$0xff]
  %v28 = vld [vmem:[%s1 + $0x48] sm:$0xff]
  %v29 = vld [vmem:[%s1 + $0x50] sm:$0xff]
  %v30 = vld [vmem:[%s1 + $0x58] sm:$0xff]
  %v31 = vld [vmem:[%s1 + $0x60] sm:$0xff]
  %v32 = vld [vmem:[%s1 + $0x68] sm:$0xff]
  %v33 = vld [vmem:[%s1 + $0x70] sm:$0xff]
  %v34 = vld [vmem:[%s1 + $0x78] sm:$0xff]
  %v35 = vld [vmem:[%s1 + $0x80] sm:$0xff]
  %v36 = vld [vmem:[%s1 + $0x88] sm:$0xff]
  %v37 = vld [vmem:[%s1 + $0x90] sm:$0xff]
  %v38 = vld [vmem:[%s1 + $0x98] sm:$0xff]
  %v39 = vld [vmem:[%s1 + $0xa0] sm:$0xff]
  %v40 = vld [vmem:[%s1 + $0xa8] sm:$0xff]
  %v41 = vld [vmem:[%s1 + $0xb0] sm:$0xff]
  %v42 = vld [vmem:[%s1 + $0xb8] sm:$0xff]
  %v43 = vld [vmem:[%s1 + $0xc0] sm:$0xff]
  %v44 = vld [vmem:[%s1 + $0xc8] sm:$0xff]
  %v45 = vld [vmem:[%s1 + $0xd0] sm:$0xff]
  %v46 = vld [vmem:[%s1 + $0xd8] sm:$0xff]
  %v47 = vld [vmem:[%s1 + $0xe0] sm:$0xff]
  %v48 = vld [vmem:[%s1 + $0xe8] sm:$0xff]
  %v49 = vld [vmem:[%s1 + $0xf0] sm:$0xff]
  %v50 = vld [vmem:[%s1 + $0xf8] sm:$0xff]
  %v51 = vld [vmem:[%s1 + $0x100] sm:$0xff]
  %v52 = vld [vmem:[%s1 + $0x108] sm:$0xff]
  %v53 = vld [vmem:[%s1 + $0x110] sm:$0xff]
  %v54 = vld [vmem:[%s1 + $0x118] sm:$0xff]
  %v55 = vld [vmem:[%s1 + $0x120] sm:$0xff]
  %v56 = vld [vmem:[%s1 + $0x128] sm:$0xff]
  %v57 = vld [vmem:[%s1 + $0x130] sm:$0xff]
  %v58 = vld [vmem:[%s1 + $0x138] sm:$0xff]
  %v59 = vld [vmem:[%s1 + $0x140] sm:$0xff]
  %v60 = vld [vmem:[%s1 + $0x148] sm:$0xff]
  %v61 = vld [vmem:[%s1 + $0x150] sm:$0xff]
  %v62 = vld [vmem:[%s1 + $0x158] sm:$0xff]
  %v63 = vld [vmem:[%s1 + $0x160] sm:$0xff]
  %v64 = vld [vmem:[%s1 + $0x168] sm:$0xff]
  %v65 = vld [vmem:[%s1 + $0x170] sm:$0xff]
  %v66 = vld [vmem:[%s1 + $0x178] sm:$0xff]
  %v67 = vld [vmem:[%s1 + $0x180] sm:$0xff]
  %v68 = vld [vmem:[%s1 + $0x188] sm:$0xff]
  %v69 = vld [vmem:[%s1 + $0x190] sm:$0xff]
  %v70 = vld [vmem:[%s1 + $0x198] sm:$0xff]
  %v71 = vld [vmem:[%s1 + $0x1a0] sm:$0xff]
  %v72 = vld [vmem:[%s1 + $0x1a8] sm:$0xff]
  %v73 = vld [vmem:[%s1 + $0x1b0] sm:$0xff]
  %v74 = vld [vmem:[%s1 + $0x1b8] sm:$0xff]
  %v75 = vld [vmem:[%s1 + $0x1c0] sm:$0xff]
  %v76 = vld [vmem:[%s1 + $0x1c8] sm:$0xff]
  %v77 = vld [vmem:[%s1 + $0x1d0] sm:$0xff]
  %v78 = vld [vmem:[%s1 + $0x1d8] sm:$0xff]
  %v79 = vld [vmem:[%s1 + $0x1e0] sm:$0xff]
  %v80 = vld [vmem:[%s1 + $0x1e8] sm:$0xff]
  %v81 = vld [vmem:[%s1 + $0x1f0] sm:$0xff]
  %v82 = vld [vmem:[%s1 + $0x1f8] sm:$0xff]
  %v83 = vld [vmem:[%s2] sm:$0xf]
  %v85 = vlaneseq
  %v86 = vshrl.u32 %v85, 7
  %v87 = vsub.s32 0, %v86
  %v88 = vrot.slane %v83, %v87
  %v89 = vlaneseq
  %v90 = vshrl.u32 %v89, 7
  %v91 = vsub.s32 1, %v90
  %v92 = vrot.slane %v83, %v91
  %v93 = vlaneseq
  %v94 = vshrl.u32 %v93, 7
  %v95 = vsub.s32 2, %v94
  %v96 = vrot.slane %v83, %v95
  %v97 = vlaneseq
  %v98 = vshrl.u32 %v97, 7
  %v99 = vsub.s32 3, %v98
  %v100 = vrot.slane %v83, %v99
  %v169 = vunpack.c.l.b16 %v19
  %v170 = vunpack.c.h.b16 %v19
  %v171 = vunpack.c.l.b16 %v20
  %v172 = vunpack.c.h.b16 %v20
  %v173 = vunpack.c.l.b16 %v21
  %v174 = vunpack.c.h.b16 %v21
  %v175 = vunpack.c.l.b16 %v22
  %v176 = vunpack.c.h.b16 %v22
  %v177 = vunpack.c.l.b16 %v23
  %v178 = vunpack.c.h.b16 %v23
  %v179 = vunpack.c.l.b16 %v24
  %v180 = vunpack.c.h.b16 %v24
  %v181 = vunpack.c.l.b16 %v25
  %v182 = vunpack.c.h.b16 %v25
  %v183 = vunpack.c.l.b16 %v26
  %v184 = vunpack.c.h.b16 %v26
  %v185 = vunpack.c.l.b16 %v27
  %v186 = vunpack.c.h.b16 %v27
  %v187 = vunpack.c.l.b16 %v28
  %v188 = vunpack.c.h.b16 %v28
  %v189 = vunpack.c.l.b16 %v29
  %v190 = vunpack.c.h.b16 %v29
  %v191 = vunpack.c.l.b16 %v30
  %v192 = vunpack.c.h.b16 %v30
  %v193 = vunpack.c.l.b16 %v31
  %v194 = vunpack.c.h.b16 %v31
  %v195 = vunpack.c.l.b16 %v32
  %v196 = vunpack.c.h.b16 %v32
  %v197 = vunpack.c.l.b16 %v33
  %v198 = vunpack.c.h.b16 %v33
  %v199 = vunpack.c.l.b16 %v34
  %v200 = vunpack.c.h.b16 %v34
  %v201 = vunpack.c.l.b16 %v35
  %v202 = vunpack.c.h.b16 %v35
  %v203 = vunpack.c.l.b16 %v36
  %v204 = vunpack.c.h.b16 %v36
  %v205 = vunpack.c.l.b16 %v37
  %v206 = vunpack.c.h.b16 %v37
  %v207 = vunpack.c.l.b16 %v38
  %v208 = vunpack.c.h.b16 %v38
  %v209 = vunpack.c.l.b16 %v39
  %v210 = vunpack.c.h.b16 %v39
  %v211 = vunpack.c.l.b16 %v40
  %v212 = vunpack.c.h.b16 %v40
  %v213 = vunpack.c.l.b16 %v41
  %v214 = vunpack.c.h.b16 %v41
  %v215 = vunpack.c.l.b16 %v42
  %v216 = vunpack.c.h.b16 %v42
  %v217 = vunpack.c.l.b16 %v43
  %v218 = vunpack.c.h.b16 %v43
  %v219 = vunpack.c.l.b16 %v44
  %v220 = vunpack.c.h.b16 %v44
  %v221 = vunpack.c.l.b16 %v45
  %v222 = vunpack.c.h.b16 %v45
  %v223 = vunpack.c.l.b16 %v46
  %v224 = vunpack.c.h.b16 %v46
  %v225 = vunpack.c.l.b16 %v47
  %v226 = vunpack.c.h.b16 %v47
  %v227 = vunpack.c.l.b16 %v48
  %v228 = vunpack.c.h.b16 %v48
  %v229 = vunpack.c.l.b16 %v49
  %v230 = vunpack.c.h.b16 %v49
  %v231 = vunpack.c.l.b16 %v50
  %v232 = vunpack.c.h.b16 %v50
  %v233 = vunpack.c.l.b16 %v51
  %v234 = vunpack.c.h.b16 %v51
  %v235 = vunpack.c.l.b16 %v52
  %v236 = vunpack.c.h.b16 %v52
  %v237 = vunpack.c.l.b16 %v53
  %v238 = vunpack.c.h.b16 %v53
  %v239 = vunpack.c.l.b16 %v54
  %v240 = vunpack.c.h.b16 %v54
  %v241 = vunpack.c.l.b16 %v55
  %v242 = vunpack.c.h.b16 %v55
  %v243 = vunpack.c.l.b16 %v56
  %v244 = vunpack.c.h.b16 %v56
  %v245 = vunpack.c.l.b16 %v57
  %v246 = vunpack.c.h.b16 %v57
  %v247 = vunpack.c.l.b16 %v58
  %v248 = vunpack.c.h.b16 %v58
  %v249 = vunpack.c.l.b16 %v59
  %v250 = vunpack.c.h.b16 %v59
  %v251 = vunpack.c.l.b16 %v60
  %v252 = vunpack.c.h.b16 %v60
  %v253 = vunpack.c.l.b16 %v61
  %v254 = vunpack.c.h.b16 %v61
  %v255 = vunpack.c.l.b16 %v62
  %v256 = vunpack.c.h.b16 %v62
  %v257 = vunpack.c.l.b16 %v63
  %v258 = vunpack.c.h.b16 %v63
  %v259 = vunpack.c.l.b16 %v64
  %v260 = vunpack.c.h.b16 %v64
  %v261 = vunpack.c.l.b16 %v65
  %v262 = vunpack.c.h.b16 %v65
  %v263 = vunpack.c.l.b16 %v66
  %v264 = vunpack.c.h.b16 %v66
  %v265 = vunpack.c.l.b16 %v67
  %v266 = vunpack.c.h.b16 %v67
  %v267 = vunpack.c.l.b16 %v68
  %v268 = vunpack.c.h.b16 %v68
  %v269 = vunpack.c.l.b16 %v69
  %v270 = vunpack.c.h.b16 %v69
  %v271 = vunpack.c.l.b16 %v70
  %v272 = vunpack.c.h.b16 %v70
  %v273 = vunpack.c.l.b16 %v71
  %v274 = vunpack.c.h.b16 %v71
  %v275 = vunpack.c.l.b16 %v72
  %v276 = vunpack.c.h.b16 %v72
  %v277 = vunpack.c.l.b16 %v73
  %v278 = vunpack.c.h.b16 %v73
  %v279 = vunpack.c.l.b16 %v74
  %v280 = vunpack.c.h.b16 %v74
  %v281 = vunpack.c.l.b16 %v75
  %v282 = vunpack.c.h.b16 %v75
  %v283 = vunpack.c.l.b16 %v76
  %v284 = vunpack.c.h.b16 %v76
  %v285 = vunpack.c.l.b16 %v77
  %v286 = vunpack.c.h.b16 %v77
  %v287 = vunpack.c.l.b16 %v78
  %v288 = vunpack.c.h.b16 %v78
  %v289 = vunpack.c.l.b16 %v79
  %v290 = vunpack.c.h.b16 %v79
  %v291 = vunpack.c.l.b16 %v80
  %v292 = vunpack.c.h.b16 %v80
  %v293 = vunpack.c.l.b16 %v81
  %v294 = vunpack.c.h.b16 %v81
  %v295 = vunpack.c.l.b16 %v82
  %v296 = vunpack.c.h.b16 %v82
  %v297 = vpack.c.b16 %v173, %v169
  %v298 = vpack.c.b16 %v174, %v170
  %v299 = vpack.c.b16 %v175, %v171
  %v300 = vpack.c.b16 %v176, %v172
  %v301 = vpack.c.b16 %v181, %v177
  %v302 = vpack.c.b16 %v182, %v178
  %v303 = vpack.c.b16 %v183, %v179
  %v304 = vpack.c.b16 %v184, %v180
  %v305 = vpack.c.b16 %v189, %v185
  %v306 = vpack.c.b16 %v190, %v186
  %v307 = vpack.c.b16 %v191, %v187
  %v308 = vpack.c.b16 %v192, %v188
  %v309 = vpack.c.b16 %v197, %v193
  %v310 = vpack.c.b16 %v198, %v194
  %v311 = vpack.c.b16 %v199, %v195
  %v312 = vpack.c.b16 %v200, %v196
  %v313 = vpack.c.b16 %v205, %v201
  %v314 = vpack.c.b16 %v206, %v202
  %v315 = vpack.c.b16 %v207, %v203
  %v316 = vpack.c.b16 %v208, %v204
  %v317 = vpack.c.b16 %v213, %v209
  %v318 = vpack.c.b16 %v214, %v210
  %v319 = vpack.c.b16 %v215, %v211
  %v320 = vpack.c.b16 %v216, %v212
  %v321 = vpack.c.b16 %v221, %v217
  %v322 = vpack.c.b16 %v222, %v218
  %v323 = vpack.c.b16 %v223, %v219
  %v324 = vpack.c.b16 %v224, %v220
  %v325 = vpack.c.b16 %v229, %v225
  %v326 = vpack.c.b16 %v230, %v226
  %v327 = vpack.c.b16 %v231, %v227
  %v328 = vpack.c.b16 %v232, %v228
  %v329 = vpack.c.b16 %v237, %v233
  %v330 = vpack.c.b16 %v238, %v234
  %v331 = vpack.c.b16 %v239, %v235
  %v332 = vpack.c.b16 %v240, %v236
  %v333 = vpack.c.b16 %v245, %v241
  %v334 = vpack.c.b16 %v246, %v242
  %v335 = vpack.c.b16 %v247, %v243
  %v336 = vpack.c.b16 %v248, %v244
  %v337 = vpack.c.b16 %v253, %v249
  %v338 = vpack.c.b16 %v254, %v250
  %v339 = vpack.c.b16 %v255, %v251
  %v340 = vpack.c.b16 %v256, %v252
  %v341 = vpack.c.b16 %v261, %v257
  %v342 = vpack.c.b16 %v262, %v258
  %v343 = vpack.c.b16 %v263, %v259
  %v344 = vpack.c.b16 %v264, %v260
  %v345 = vpack.c.b16 %v269, %v265
  %v346 = vpack.c.b16 %v270, %v266
  %v347 = vpack.c.b16 %v271, %v267
  %v348 = vpack.c.b16 %v272, %v268
  %v349 = vpack.c.b16 %v277, %v273
  %v350 = vpack.c.b16 %v278, %v274
  %v351 = vpack.c.b16 %v279, %v275
  %v352 = vpack.c.b16 %v280, %v276
  %v353 = vpack.c.b16 %v285, %v281
  %v354 = vpack.c.b16 %v286, %v282
  %v355 = vpack.c.b16 %v287, %v283
  %v356 = vpack.c.b16 %v288, %v284
  %v357 = vpack.c.b16 %v293, %v289
  %v358 = vpack.c.b16 %v294, %v290
  %v359 = vpack.c.b16 %v295, %v291
  %v360 = vpack.c.b16 %v296, %v292
  %425 = vmatprep.subr.bf16.mxu0 %v298
  %426 = vmatpush1.bf16.msra.mxu0 %v297
  %427 = vmatprep.subr.bf16.mxu0 %v302
  %428 = vmatpush1.bf16.msra.mxu0 %v301
  %429 = vmatprep.subr.bf16.mxu0 %v306
  %430 = vmatpush1.bf16.msra.mxu0 %v305
  %431 = vmatprep.subr.bf16.mxu0 %v310
  %432 = vmatpush1.bf16.msra.mxu0 %v309
  %433 = vmatprep.subr.bf16.mxu0 %v314
  %434 = vmatpush1.bf16.msra.mxu0 %v313
  %435 = vmatprep.subr.bf16.mxu0 %v318
  %436 = vmatpush1.bf16.msra.mxu0 %v317
  %437 = vmatprep.subr.bf16.mxu0 %v322
  %438 = vmatpush1.bf16.msra.mxu0 %v321
  %439 = vmatprep.subr.bf16.mxu0 %v326
  %440 = vmatpush1.bf16.msra.mxu0 %v325
  %441 = vmatprep.subr.bf16.mxu0 %v330
  %442 = vmatpush1.bf16.msra.mxu0 %v329
  %443 = vmatprep.subr.bf16.mxu0 %v334
  %444 = vmatpush1.bf16.msra.mxu0 %v333
  %445 = vmatprep.subr.bf16.mxu0 %v338
  %446 = vmatpush1.bf16.msra.mxu0 %v337
  %447 = vmatprep.subr.bf16.mxu0 %v342
  %448 = vmatpush1.bf16.msra.mxu0 %v341
  %449 = vmatprep.subr.bf16.mxu0 %v346
  %450 = vmatpush1.bf16.msra.mxu0 %v345
  %451 = vmatprep.subr.bf16.mxu0 %v350
  %452 = vmatpush1.bf16.msra.mxu0 %v349
  %453 = vmatprep.subr.bf16.mxu0 %v354
  %454 = vmatpush1.bf16.msra.mxu0 %v353
  %455 = vmatprep.subr.bf16.mxu0 %v358
  %456 = vmatpush1.bf16.msra.mxu0 %v357
  %457 = vmatprep.mubr.bf16.mxu0 %v18
  %458 = vmatmul.mubr.bf16.gmra.mrb[0].mxu0 %v16
  %v459 = vpop.f32.mrb[0].mxu0
  %v460 = vadd.f32 %v88, %v459
  %v461 = vpop.f32.mrb[0].mxu0
  %v462 = vadd.f32 %v92, %v461
  %v463 = vpop.f32.mrb[0].mxu0
  %v464 = vpop.f32.mrb[0].mxu0
  %465 = vdwg.mxu0
  %466 = vmatprep.subr.bf16.mxu0 %v300
  %467 = vmatpush1.bf16.msra.mxu0 %v299
  %468 = vmatprep.subr.bf16.mxu0 %v304
  %469 = vmatpush1.bf16.msra.mxu0 %v303
  %470 = vmatprep.subr.bf16.mxu0 %v308
  %471 = vmatpush1.bf16.msra.mxu0 %v307
  %472 = vmatprep.subr.bf16.mxu0 %v312
  %473 = vmatpush1.bf16.msra.mxu0 %v311
  %474 = vmatprep.subr.bf16.mxu0 %v316
  %475 = vmatpush1.bf16.msra.mxu0 %v315
  %476 = vmatprep.subr.bf16.mxu0 %v320
  %477 = vmatpush1.bf16.msra.mxu0 %v319
  %478 = vmatprep.subr.bf16.mxu0 %v324
  %479 = vmatpush1.bf16.msra.mxu0 %v323
  %480 = vmatprep.subr.bf16.mxu0 %v328
  %481 = vmatpush1.bf16.msra.mxu0 %v327
  %482 = vmatprep.subr.bf16.mxu0 %v332
  %483 = vmatpush1.bf16.msra.mxu0 %v331
  %484 = vmatprep.subr.bf16.mxu0 %v336
  %485 = vmatpush1.bf16.msra.mxu0 %v335
  %486 = vmatprep.subr.bf16.mxu0 %v340
  %487 = vmatpush1.bf16.msra.mxu0 %v339
  %488 = vmatprep.subr.bf16.mxu0 %v344
  %489 = vmatpush1.bf16.msra.mxu0 %v343
  %490 = vmatprep.subr.bf16.mxu0 %v348
  %491 = vmatpush1.bf16.msra.mxu0 %v347
  %492 = vmatprep.subr.bf16.mxu0 %v352
  %493 = vmatpush1.bf16.msra.mxu0 %v351
  %494 = vmatprep.subr.bf16.mxu0 %v356
  %495 = vmatpush1.bf16.msra.mxu0 %v355
  %496 = vmatprep.subr.bf16.mxu0 %v360
  %497 = vmatpush1.bf16.msra.mxu0 %v359
  %498 = vmatprep.mubr.bf16.mxu0 %v18
  %499 = vmatmul.mubr.bf16.gmra.mrb[0].mxu0 %v16
  %v500 = vpop.f32.mrb[0].mxu0
  %v501 = vadd.f32 %v96, %v500
  %v502 = vpop.f32.mrb[0].mxu0
  %v503 = vadd.f32 %v100, %v502
  %v504 = vpop.f32.mrb[0].mxu0
  %v505 = vpop.f32.mrb[0].mxu0
  %506 = vdwg.mxu0
  %v507 = vxor.u32 %v460, 2147483648
  %v508 = vmul.f32 %v507, 1.442695
  %v509 = vpow.pop %v508
  %v510 = vadd.f32 %v509, 1.0
  %v511 = vrcp.pop %v510
  %v512 = vmul.f32 1.0, %v511
  %v513 = vxor.u32 %v462, 2147483648
  %v514 = vmul.f32 %v513, 1.442695
  %v515 = vpow.pop %v514
  %v516 = vadd.f32 %v515, 1.0
  %v517 = vrcp.pop %v516
  %v518 = vmul.f32 1.0, %v517
  %v519 = vtanh.pop %v501
  %v520 = vxor.u32 %v503, 2147483648
  %v521 = vmul.f32 %v520, 1.442695
  %v522 = vpow.pop %v521
  %v523 = vadd.f32 %v522, 1.0
  %v524 = vrcp.pop %v523
  %v525 = vmul.f32 1.0, %v524
  %v526 = vld [vmem:[#allocation3] sm:$0xff]
  %v527 = vmul.f32 %v518, %v526
  %v528 = vmul.f32 %v512, %v519
  %v529 = vadd.f32 %v527, %v528
  %v530 = vtanh.pop %v529
  %v531 = vmul.f32 %v525, %v530
  %532 = vst [vmem:[#allocation3] sm:$0xff] %v529
  %533 = vst [vmem:[#allocation2] sm:$0xff] %v531
  %v534 = vpack.c.bf16 %v531, %v531
  %535 = vst [vmem:[%s3] sm:$0xf] %v534
  %s536 = scalar_lea.vmem %s0, 4
  %v537 = vld [vmem:[%s536] sm:$0xf]
  %v538 = vld [vmem:[#allocation2] sm:$0xff]
  %v539 = vpack.c.bf16 %v538, %v538
  %v540 = vld [vmem:[%s1] sm:$0xff]
  %v541 = vld [vmem:[%s1 + $0x8] sm:$0xff]
  %v542 = vld [vmem:[%s1 + $0x10] sm:$0xff]
  %v543 = vld [vmem:[%s1 + $0x18] sm:$0xff]
  %v544 = vld [vmem:[%s1 + $0x20] sm:$0xff]
  %v545 = vld [vmem:[%s1 + $0x28] sm:$0xff]
  %v546 = vld [vmem:[%s1 + $0x30] sm:$0xff]
  %v547 = vld [vmem:[%s1 + $0x38] sm:$0xff]
  %v548 = vld [vmem:[%s1 + $0x40] sm:$0xff]
  %v549 = vld [vmem:[%s1 + $0x48] sm:$0xff]
  %v550 = vld [vmem:[%s1 + $0x50] sm:$0xff]
  %v551 = vld [vmem:[%s1 + $0x58] sm:$0xff]
  %v552 = vld [vmem:[%s1 + $0x60] sm:$0xff]
  %v553 = vld [vmem:[%s1 + $0x68] sm:$0xff]
  %v554 = vld [vmem:[%s1 + $0x70] sm:$0xff]
  %v555 = vld [vmem:[%s1 + $0x78] sm:$0xff]
  %v556 = vld [vmem:[%s1 + $0x80] sm:$0xff]
  %v557 = vld [vmem:[%s1 + $0x88] sm:$0xff]
  %v558 = vld [vmem:[%s1 + $0x90] sm:$0xff]
  %v559 = vld [vmem:[%s1 + $0x98] sm:$0xff]
  %v560 = vld [vmem:[%s1 + $0xa0] sm:$0xff]
  %v561 = vld [vmem:[%s1 + $0xa8] sm:$0xff]
  %v562 = vld [vmem:[%s1 + $0xb0] sm:$0xff]
  %v563 = vld [vmem:[%s1 + $0xb8] sm:$0xff]
  %v564 = vld [vmem:[%s1 + $0xc0] sm:$0xff]
  %v565 = vld [vmem:[%s1 + $0xc8] sm:$0xff]
  %v566 = vld [vmem:[%s1 + $0xd0] sm:$0xff]
  %v567 = vld [vmem:[%s1 + $0xd8] sm:$0xff]
  %v568 = vld [vmem:[%s1 + $0xe0] sm:$0xff]
  %v569 = vld [vmem:[%s1 + $0xe8] sm:$0xff]
  %v570 = vld [vmem:[%s1 + $0xf0] sm:$0xff]
  %v571 = vld [vmem:[%s1 + $0xf8] sm:$0xff]
  %v572 = vld [vmem:[%s1 + $0x100] sm:$0xff]
  %v573 = vld [vmem:[%s1 + $0x108] sm:$0xff]
  %v574 = vld [vmem:[%s1 + $0x110] sm:$0xff]
  %v575 = vld [vmem:[%s1 + $0x118] sm:$0xff]
  %v576 = vld [vmem:[%s1 + $0x120] sm:$0xff]
  %v577 = vld [vmem:[%s1 + $0x128] sm:$0xff]
  %v578 = vld [vmem:[%s1 + $0x130] sm:$0xff]
  %v579 = vld [vmem:[%s1 + $0x138] sm:$0xff]
  %v580 = vld [vmem:[%s1 + $0x140] sm:$0xff]
  %v581 = vld [vmem:[%s1 + $0x148] sm:$0xff]
  %v582 = vld [vmem:[%s1 + $0x150] sm:$0xff]
  %v583 = vld [vmem:[%s1 + $0x158] sm:$0xff]
  %v584 = vld [vmem:[%s1 + $0x160] sm:$0xff]
  %v585 = vld [vmem:[%s1 + $0x168] sm:$0xff]
  %v586 = vld [vmem:[%s1 + $0x170] sm:$0xff]
  %v587 = vld [vmem:[%s1 + $0x178] sm:$0xff]
  %v588 = vld [vmem:[%s1 + $0x180] sm:$0xff]
  %v589 = vld [vmem:[%s1 + $0x188] sm:$0xff]
  %v590 = vld [vmem:[%s1 + $0x190] sm:$0xff]
  %v591 = vld [vmem:[%s1 + $0x198] sm:$0xff]
  %v592 = vld [vmem:[%s1 + $0x1a0] sm:$0xff]
  %v593 = vld [vmem:[%s1 + $0x1a8] sm:$0xff]
  %v594 = vld [vmem:[%s1 + $0x1b0] sm:$0xff]
  %v595 = vld [vmem:[%s1 + $0x1b8] sm:$0xff]
  %v596 = vld [vmem:[%s1 + $0x1c0] sm:$0xff]
  %v597 = vld [vmem:[%s1 + $0x1c8] sm:$0xff]
  %v598 = vld [vmem:[%s1 + $0x1d0] sm:$0xff]
  %v599 = vld [vmem:[%s1 + $0x1d8] sm:$0xff]
  %v600 = vld [vmem:[%s1 + $0x1e0] sm:$0xff]
  %v601 = vld [vmem:[%s1 + $0x1e8] sm:$0xff]
  %v602 = vld [vmem:[%s1 + $0x1f0] sm:$0xff]
  %v603 = vld [vmem:[%s1 + $0x1f8] sm:$0xff]
  %v604 = vld [vmem:[%s2] sm:$0xf]
  %v606 = vlaneseq
  %v607 = vshrl.u32 %v606, 7
  %v608 = vsub.s32 0, %v607
  %v609 = vrot.slane %v604, %v608
  %v610 = vlaneseq
  %v611 = vshrl.u32 %v610, 7
  %v612 = vsub.s32 1, %v611
  %v613 = vrot.slane %v604, %v612
  %v614 = vlaneseq
  %v615 = vshrl.u32 %v614, 7
  %v616 = vsub.s32 2, %v615
  %v617 = vrot.slane %v604, %v616
  %v618 = vlaneseq
  %v619 = vshrl.u32 %v618, 7
  %v620 = vsub.s32 3, %v619
  %v621 = vrot.slane %v604, %v620
  %v690 = vunpack.c.l.b16 %v540
  %v691 = vunpack.c.h.b16 %v540
  %v692 = vunpack.c.l.b16 %v541
  %v693 = vunpack.c.h.b16 %v541
  %v694 = vunpack.c.l.b16 %v542
  %v695 = vunpack.c.h.b16 %v542
  %v696 = vunpack.c.l.b16 %v543
  %v697 = vunpack.c.h.b16 %v543
  %v698 = vunpack.c.l.b16 %v544
  %v699 = vunpack.c.h.b16 %v544
  %v700 = vunpack.c.l.b16 %v545
  %v701 = vunpack.c.h.b16 %v545
  %v702 = vunpack.c.l.b16 %v546
  %v703 = vunpack.c.h.b16 %v546
  %v704 = vunpack.c.l.b16 %v547
  %v705 = vunpack.c.h.b16 %v547
  %v706 = vunpack.c.l.b16 %v548
  %v707 = vunpack.c.h.b16 %v548
  %v708 = vunpack.c.l.b16 %v549
  %v709 = vunpack.c.h.b16 %v549
  %v710 = vunpack.c.l.b16 %v550
  %v711 = vunpack.c.h.b16 %v550
  %v712 = vunpack.c.l.b16 %v551
  %v713 = vunpack.c.h.b16 %v551
  %v714 = vunpack.c.l.b16 %v552
  %v715 = vunpack.c.h.b16 %v552
  %v716 = vunpack.c.l.b16 %v553
  %v717 = vunpack.c.h.b16 %v553
  %v718 = vunpack.c.l.b16 %v554
  %v719 = vunpack.c.h.b16 %v554
  %v720 = vunpack.c.l.b16 %v555
  %v721 = vunpack.c.h.b16 %v555
  %v722 = vunpack.c.l.b16 %v556
  %v723 = vunpack.c.h.b16 %v556
  %v724 = vunpack.c.l.b16 %v557
  %v725 = vunpack.c.h.b16 %v557
  %v726 = vunpack.c.l.b16 %v558
  %v727 = vunpack.c.h.b16 %v558
  %v728 = vunpack.c.l.b16 %v559
  %v729 = vunpack.c.h.b16 %v559
  %v730 = vunpack.c.l.b16 %v560
  %v731 = vunpack.c.h.b16 %v560
  %v732 = vunpack.c.l.b16 %v561
  %v733 = vunpack.c.h.b16 %v561
  %v734 = vunpack.c.l.b16 %v562
  %v735 = vunpack.c.h.b16 %v562
  %v736 = vunpack.c.l.b16 %v563
  %v737 = vunpack.c.h.b16 %v563
  %v738 = vunpack.c.l.b16 %v564
  %v739 = vunpack.c.h.b16 %v564
  %v740 = vunpack.c.l.b16 %v565
  %v741 = vunpack.c.h.b16 %v565
  %v742 = vunpack.c.l.b16 %v566
  %v743 = vunpack.c.h.b16 %v566
  %v744 = vunpack.c.l.b16 %v567
  %v745 = vunpack.c.h.b16 %v567
  %v746 = vunpack.c.l.b16 %v568
  %v747 = vunpack.c.h.b16 %v568
  %v748 = vunpack.c.l.b16 %v569
  %v749 = vunpack.c.h.b16 %v569
  %v750 = vunpack.c.l.b16 %v570
  %v751 = vunpack.c.h.b16 %v570
  %v752 = vunpack.c.l.b16 %v571
  %v753 = vunpack.c.h.b16 %v571
  %v754 = vunpack.c.l.b16 %v572
  %v755 = vunpack.c.h.b16 %v572
  %v756 = vunpack.c.l.b16 %v573
  %v757 = vunpack.c.h.b16 %v573
  %v758 = vunpack.c.l.b16 %v574
  %v759 = vunpack.c.h.b16 %v574
  %v760 = vunpack.c.l.b16 %v575
  %v761 = vunpack.c.h.b16 %v575
  %v762 = vunpack.c.l.b16 %v576
  %v763 = vunpack.c.h.b16 %v576
  %v764 = vunpack.c.l.b16 %v577
  %v765 = vunpack.c.h.b16 %v577
  %v766 = vunpack.c.l.b16 %v578
  %v767 = vunpack.c.h.b16 %v578
  %v768 = vunpack.c.l.b16 %v579
  %v769 = vunpack.c.h.b16 %v579
  %v770 = vunpack.c.l.b16 %v580
  %v771 = vunpack.c.h.b16 %v580
  %v772 = vunpack.c.l.b16 %v581
  %v773 = vunpack.c.h.b16 %v581
  %v774 = vunpack.c.l.b16 %v582
  %v775 = vunpack.c.h.b16 %v582
  %v776 = vunpack.c.l.b16 %v583
  %v777 = vunpack.c.h.b16 %v583
  %v778 = vunpack.c.l.b16 %v584
  %v779 = vunpack.c.h.b16 %v584
  %v780 = vunpack.c.l.b16 %v585
  %v781 = vunpack.c.h.b16 %v585
  %v782 = vunpack.c.l.b16 %v586
  %v783 = vunpack.c.h.b16 %v586
  %v784 = vunpack.c.l.b16 %v587
  %v785 = vunpack.c.h.b16 %v587
  %v786 = vunpack.c.l.b16 %v588
  %v787 = vunpack.c.h.b16 %v588
  %v788 = vunpack.c.l.b16 %v589
  %v789 = vunpack.c.h.b16 %v589
  %v790 = vunpack.c.l.b16 %v590
  %v791 = vunpack.c.h.b16 %v590
  %v792 = vunpack.c.l.b16 %v591
  %v793 = vunpack.c.h.b16 %v591
  %v794 = vunpack.c.l.b16 %v592
  %v795 = vunpack.c.h.b16 %v592
  %v796 = vunpack.c.l.b16 %v593
  %v797 = vunpack.c.h.b16 %v593
  %v798 = vunpack.c.l.b16 %v594
  %v799 = vunpack.c.h.b16 %v594
  %v800 = vunpack.c.l.b16 %v595
  %v801 = vunpack.c.h.b16 %v595
  %v802 = vunpack.c.l.b16 %v596
  %v803 = vunpack.c.h.b16 %v596
  %v804 = vunpack.c.l.b16 %v597
  %v805 = vunpack.c.h.b16 %v597
  %v806 = vunpack.c.l.b16 %v598
  %v807 = vunpack.c.h.b16 %v598
  %v808 = vunpack.c.l.b16 %v599
  %v809 = vunpack.c.h.b16 %v599
  %v810 = vunpack.c.l.b16 %v600
  %v811 = vunpack.c.h.b16 %v600
  %v812 = vunpack.c.l.b16 %v601
  %v813 = vunpack.c.h.b16 %v601
  %v814 = vunpack.c.l.b16 %v602
  %v815 = vunpack.c.h.b16 %v602
  %v816 = vunpack.c.l.b16 %v603
  %v817 = vunpack.c.h.b16 %v603
  %v818 = vpack.c.b16 %v694, %v690
  %v819 = vpack.c.b16 %v695, %v691
  %v820 = vpack.c.b16 %v696, %v692
  %v821 = vpack.c.b16 %v697, %v693
  %v822 = vpack.c.b16 %v702, %v698
  %v823 = vpack.c.b16 %v703, %v699
  %v824 = vpack.c.b16 %v704, %v700
  %v825 = vpack.c.b16 %v705, %v701
  %v826 = vpack.c.b16 %v710, %v706
  %v827 = vpack.c.b16 %v711, %v707
  %v828 = vpack.c.b16 %v712, %v708
  %v829 = vpack.c.b16 %v713, %v709
  %v830 = vpack.c.b16 %v718, %v714
  %v831 = vpack.c.b16 %v719, %v715
  %v832 = vpack.c.b16 %v720, %v716
  %v833 = vpack.c.b16 %v721, %v717
  %v834 = vpack.c.b16 %v726, %v722
  %v835 = vpack.c.b16 %v727, %v723
  %v836 = vpack.c.b16 %v728, %v724
  %v837 = vpack.c.b16 %v729, %v725
  %v838 = vpack.c.b16 %v734, %v730
  %v839 = vpack.c.b16 %v735, %v731
  %v840 = vpack.c.b16 %v736, %v732
  %v841 = vpack.c.b16 %v737, %v733
  %v842 = vpack.c.b16 %v742, %v738
  %v843 = vpack.c.b16 %v743, %v739
  %v844 = vpack.c.b16 %v744, %v740
  %v845 = vpack.c.b16 %v745, %v741
  %v846 = vpack.c.b16 %v750, %v746
  %v847 = vpack.c.b16 %v751, %v747
  %v848 = vpack.c.b16 %v752, %v748
  %v849 = vpack.c.b16 %v753, %v749
  %v850 = vpack.c.b16 %v758, %v754
  %v851 = vpack.c.b16 %v759, %v755
  %v852 = vpack.c.b16 %v760, %v756
  %v853 = vpack.c.b16 %v761, %v757
  %v854 = vpack.c.b16 %v766, %v762
  %v855 = vpack.c.b16 %v767, %v763
  %v856 = vpack.c.b16 %v768, %v764
  %v857 = vpack.c.b16 %v769, %v765
  %v858 = vpack.c.b16 %v774, %v770
  %v859 = vpack.c.b16 %v775, %v771
  %v860 = vpack.c.b16 %v776, %v772
  %v861 = vpack.c.b16 %v777, %v773
  %v862 = vpack.c.b16 %v782, %v778
  %v863 = vpack.c.b16 %v783, %v779
  %v864 = vpack.c.b16 %v784, %v780
  %v865 = vpack.c.b16 %v785, %v781
  %v866 = vpack.c.b16 %v790, %v786
  %v867 = vpack.c.b16 %v791, %v787
  %v868 = vpack.c.b16 %v792, %v788
  %v869 = vpack.c.b16 %v793, %v789
  %v870 = vpack.c.b16 %v798, %v794
  %v871 = vpack.c.b16 %v799, %v795
  %v872 = vpack.c.b16 %v800, %v796
  %v873 = vpack.c.b16 %v801, %v797
  %v874 = vpack.c.b16 %v806, %v802
  %v875 = vpack.c.b16 %v807, %v803
  %v876 = vpack.c.b16 %v808, %v804
  %v877 = vpack.c.b16 %v809, %v805
  %v878 = vpack.c.b16 %v814, %v810
  %v879 = vpack.c.b16 %v815, %v811
  %v880 = vpack.c.b16 %v816, %v812
  %v881 = vpack.c.b16 %v817, %v813
  %946 = vmatprep.subr.bf16.mxu0 %v819
  %947 = vmatpush1.bf16.msra.mxu0 %v818
  %948 = vmatprep.subr.bf16.mxu0 %v823
  %949 = vmatpush1.bf16.msra.mxu0 %v822
  %950 = vmatprep.subr.bf16.mxu0 %v827
  %951 = vmatpush1.bf16.msra.mxu0 %v826
  %952 = vmatprep.subr.bf16.mxu0 %v831
  %953 = vmatpush1.bf16.msra.mxu0 %v830
  %954 = vmatprep.subr.bf16.mxu0 %v835
  %955 = vmatpush1.bf16.msra.mxu0 %v834
  %956 = vmatprep.subr.bf16.mxu0 %v839
  %957 = vmatpush1.bf16.msra.mxu0 %v838
  %958 = vmatprep.subr.bf16.mxu0 %v843
  %959 = vmatpush1.bf16.msra.mxu0 %v842
  %960 = vmatprep.subr.bf16.mxu0 %v847
  %961 = vmatpush1.bf16.msra.mxu0 %v846
  %962 = vmatprep.subr.bf16.mxu0 %v851
  %963 = vmatpush1.bf16.msra.mxu0 %v850
  %964 = vmatprep.subr.bf16.mxu0 %v855
  %965 = vmatpush1.bf16.msra.mxu0 %v854
  %966 = vmatprep.subr.bf16.mxu0 %v859
  %967 = vmatpush1.bf16.msra.mxu0 %v858
  %968 = vmatprep.subr.bf16.mxu0 %v863
  %969 = vmatpush1.bf16.msra.mxu0 %v862
  %970 = vmatprep.subr.bf16.mxu0 %v867
  %971 = vmatpush1.bf16.msra.mxu0 %v866
  %972 = vmatprep.subr.bf16.mxu0 %v871
  %973 = vmatpush1.bf16.msra.mxu0 %v870
  %974 = vmatprep.subr.bf16.mxu0 %v875
  %975 = vmatpush1.bf16.msra.mxu0 %v874
  %976 = vmatprep.subr.bf16.mxu0 %v879
  %977 = vmatpush1.bf16.msra.mxu0 %v878
  %978 = vmatprep.mubr.bf16.mxu0 %v539
  %979 = vmatmul.mubr.bf16.gmra.mrb[0].mxu0 %v537
  %v980 = vpop.f32.mrb[0].mxu0
  %v981 = vadd.f32 %v609, %v980
  %v982 = vpop.f32.mrb[0].mxu0
  %v983 = vadd.f32 %v613, %v982
  %v984 = vpop.f32.mrb[0].mxu0
  %v985 = vpop.f32.mrb[0].mxu0
  %986 = vdwg.mxu0
  %987 = vmatprep.subr.bf16.mxu0 %v821
  %988 = vmatpush1.bf16.msra.mxu0 %v820
  %989 = vmatprep.subr.bf16.mxu0 %v825
  %990 = vmatpush1.bf16.msra.mxu0 %v824
  %991 = vmatprep.subr.bf16.mxu0 %v829
  %992 = vmatpush1.bf16.msra.mxu0 %v828
  %993 = vmatprep.subr.bf16.mxu0 %v833
  %994 = vmatpush1.bf16.msra.mxu0 %v832
  %995 = vmatprep.subr.bf16.mxu0 %v837
  %996 = vmatpush1.bf16.msra.mxu0 %v836
  %997 = vmatprep.subr.bf16.mxu0 %v841
  %998 = vmatpush1.bf16.msra.mxu0 %v840
  %999 = vmatprep.subr.bf16.mxu0 %v845
  %1000 = vmatpush1.bf16.msra.mxu0 %v844
  %1001 = vmatprep.subr.bf16.mxu0 %v849
  %1002 = vmatpush1.bf16.msra.mxu0 %v848
  %1003 = vmatprep.subr.bf16.mxu0 %v853
  %1004 = vmatpush1.bf16.msra.mxu0 %v852
  %1005 = vmatprep.subr.bf16.mxu0 %v857
  %1006 = vmatpush1.bf16.msra.mxu0 %v856
  %1007 = vmatprep.subr.bf16.mxu0 %v861
  %1008 = vmatpush1.bf16.msra.mxu0 %v860
  %1009 = vmatprep.subr.bf16.mxu0 %v865
  %1010 = vmatpush1.bf16.msra.mxu0 %v864
  %1011 = vmatprep.subr.bf16.mxu0 %v869
  %1012 = vmatpush1.bf16.msra.mxu0 %v868
  %1013 = vmatprep.subr.bf16.mxu0 %v873
  %1014 = vmatpush1.bf16.msra.mxu0 %v872
  %1015 = vmatprep.subr.bf16.mxu0 %v877
  %1016 = vmatpush1.bf16.msra.mxu0 %v876
  %1017 = vmatprep.subr.bf16.mxu0 %v881
  %1018 = vmatpush1.bf16.msra.mxu0 %v880
  %1019 = vmatprep.mubr.bf16.mxu0 %v539
  %1020 = vmatmul.mubr.bf16.gmra.mrb[0].mxu0 %v537
  %v1021 = vpop.f32.mrb[0].mxu0
  %v1022 = vadd.f32 %v617, %v1021
  %v1023 = vpop.f32.mrb[0].mxu0
  %v1024 = vadd.f32 %v621, %v1023
  %v1025 = vpop.f32.mrb[0].mxu0
  %v1026 = vpop.f32.mrb[0].mxu0
  %1027 = vdwg.mxu0
  %v1028 = vxor.u32 %v981, 2147483648
  %v1029 = vmul.f32 %v1028, 1.442695
  %v1030 = vpow.pop %v1029
  %v1031 = vadd.f32 %v1030, 1.0
  %v1032 = vrcp.pop %v1031
  %v1033 = vmul.f32 1.0, %v1032
  %v1034 = vxor.u32 %v983, 2147483648
  %v1035 = vmul.f32 %v1034, 1.442695
  %v1036 = vpow.pop %v1035
  %v1037 = vadd.f32 %v1036, 1.0
  %v1038 = vrcp.pop %v1037
  %v1039 = vmul.f32 1.0, %v1038
  %v1040 = vtanh.pop %v1022
  %v1041 = vxor.u32 %v1024, 2147483648
  %v1042 = vmul.f32 %v1041, 1.442695
  %v1043 = vpow.pop %v1042
  %v1044 = vadd.f32 %v1043, 1.0
  %v1045 = vrcp.pop %v1044
  %v1046 = vmul.f32 1.0, %v1045
  %v1047 = vld [vmem:[#allocation3] sm:$0xff]
  %v1048 = vmul.f32 %v1039, %v1047
  %v1049 = vmul.f32 %v1033, %v1040
  %v1050 = vadd.f32 %v1048, %v1049
  %v1051 = vtanh.pop %v1050
  %v1052 = vmul.f32 %v1046, %v1051
  %1053 = vst [vmem:[#allocation3] sm:$0xff] %v1050
  %1054 = vst [vmem:[#allocation2] sm:$0xff] %v1052
  %v1055 = vpack.c.bf16 %v1052, %v1052
  %s1056 = scalar_lea.vmem %s3, 4
  %1057 = vst [vmem:[%s1056] sm:$0xf] %v1055
  %s1058 = scalar_lea.vmem %s0, 8
  %v1059 = vld [vmem:[%s1058] sm:$0xf]
  %v1060 = vld [vmem:[#allocation2] sm:$0xff]
  %v1061 = vpack.c.bf16 %v1060, %v1060
  %v1062 = vld [vmem:[%s1] sm:$0xff]
  %v1063 = vld [vmem:[%s1 + $0x8] sm:$0xff]
  %v1064 = vld [vmem:[%s1 + $0x10] sm:$0xff]
  %v1065 = vld [vmem:[%s1 + $0x18] sm:$0xff]
  %v1066 = vld [vmem:[%s1 + $0x20] sm:$0xff]
  %v1067 = vld [vmem:[%s1 + $0x28] sm:$0xff]
  %v1068 = vld [vmem:[%s1 + $0x30] sm:$0xff]
  %v1069 = vld [vmem:[%s1 + $0x38] sm:$0xff]
  %v1070 = vld [vmem:[%s1 + $0x40] sm:$0xff]
  %v1071 = vld [vmem:[%s1 + $0x48] sm:$0xff]
  %v1072 = vld [vmem:[%s1 + $0x50] sm:$0xff]
  %v1073 = vld [vmem:[%s1 + $0x58] sm:$0xff]
  %v1074 = vld [vmem:[%s1 + $0x60] sm:$0xff]
  %v1075 = vld [vmem:[%s1 + $0x68] sm:$0xff]
  %v1076 = vld [vmem:[%s1 + $0x70] sm:$0xff]
  %v1077 = vld [vmem:[%s1 + $0x78] sm:$0xff]
  %v1078 = vld [vmem:[%s1 + $0x80] sm:$0xff]
  %v1079 = vld [vmem:[%s1 + $0x88] sm:$0xff]
  %v1080 = vld [vmem:[%s1 + $0x90] sm:$0xff]
  %v1081 = vld [vmem:[%s1 + $0x98] sm:$0xff]
  %v1082 = vld [vmem:[%s1 + $0xa0] sm:$0xff]
  %v1083 = vld [vmem:[%s1 + $0xa8] sm:$0xff]
  %v1084 = vld [vmem:[%s1 + $0xb0] sm:$0xff]
  %v1085 = vld [vmem:[%s1 + $0xb8] sm:$0xff]
  %v1086 = vld [vmem:[%s1 + $0xc0] sm:$0xff]
  %v1087 = vld [vmem:[%s1 + $0xc8] sm:$0xff]
  %v1088 = vld [vmem:[%s1 + $0xd0] sm:$0xff]
  %v1089 = vld [vmem:[%s1 + $0xd8] sm:$0xff]
  %v1090 = vld [vmem:[%s1 + $0xe0] sm:$0xff]
  %v1091 = vld [vmem:[%s1 + $0xe8] sm:$0xff]
  %v1092 = vld [vmem:[%s1 + $0xf0] sm:$0xff]
  %v1093 = vld [vmem:[%s1 + $0xf8] sm:$0xff]
  %v1094 = vld [vmem:[%s1 + $0x100] sm:$0xff]
  %v1095 = vld [vmem:[%s1 + $0x108] sm:$0xff]
  %v1096 = vld [vmem:[%s1 + $0x110] sm:$0xff]
  %v1097 = vld [vmem:[%s1 + $0x118] sm:$0xff]
  %v1098 = vld [vmem:[%s1 + $0x120] sm:$0xff]
  %v1099 = vld [vmem:[%s1 + $0x128] sm:$0xff]
  %v1100 = vld [vmem:[%s1 + $0x130] sm:$0xff]
  %v1101 = vld [vmem:[%s1 + $0x138] sm:$0xff]
  %v1102 = vld [vmem:[%s1 + $0x140] sm:$0xff]
  %v1103 = vld [vmem:[%s1 + $0x148] sm:$0xff]
  %v1104 = vld [vmem:[%s1 + $0x150] sm:$0xff]
  %v1105 = vld [vmem:[%s1 + $0x158] sm:$0xff]
  %v1106 = vld [vmem:[%s1 + $0x160] sm:$0xff]
  %v1107 = vld [vmem:[%s1 + $0x168] sm:$0xff]
  %v1108 = vld [vmem:[%s1 + $0x170] sm:$0xff]
  %v1109 = vld [vmem:[%s1 + $0x178] sm:$0xff]
  %v1110 = vld [vmem:[%s1 + $0x180] sm:$0xff]
  %v1111 = vld [vmem:[%s1 + $0x188] sm:$0xff]
  %v1112 = vld [vmem:[%s1 + $0x190] sm:$0xff]
  %v1113 = vld [vmem:[%s1 + $0x198] sm:$0xff]
  %v1114 = vld [vmem:[%s1 + $0x1a0] sm:$0xff]
  %v1115 = vld [vmem:[%s1 + $0x1a8] sm:$0xff]
  %v1116 = vld [vmem:[%s1 + $0x1b0] sm:$0xff]
  %v1117 = vld [vmem:[%s1 + $0x1b8] sm:$0xff]
  %v1118 = vld [vmem:[%s1 + $0x1c0] sm:$0xff]
  %v1119 = vld [vmem:[%s1 + $0x1c8] sm:$0xff]
  %v1120 = vld [vmem:[%s1 + $0x1d0] sm:$0xff]
  %v1121 = vld [vmem:[%s1 + $0x1d8] sm:$0xff]
  %v1122 = vld [vmem:[%s1 + $0x1e0] sm:$0xff]
  %v1123 = vld [vmem:[%s1 + $0x1e8] sm:$0xff]
  %v1124 = vld [vmem:[%s1 + $0x1f0] sm:$0xff]
  %v1125 = vld [vmem:[%s1 + $0x1f8] sm:$0xff]
  %v1126 = vld [vmem:[%s2] sm:$0xf]
  %v1128 = vlaneseq
  %v1129 = vshrl.u32 %v1128, 7
  %v1130 = vsub.s32 0, %v1129
  %v1131 = vrot.slane %v1126, %v1130
  %v1132 = vlaneseq
  %v1133 = vshrl.u32 %v1132, 7
  %v1134 = vsub.s32 1, %v1133
  %v1135 = vrot.slane %v1126, %v1134
  %v1136 = vlaneseq
  %v1137 = vshrl.u32 %v1136, 7
  %v1138 = vsub.s32 2, %v1137
  %v1139 = vrot.slane %v1126, %v1138
  %v1140 = vlaneseq
  %v1141 = vshrl.u32 %v1140, 7
  %v1142 = vsub.s32 3, %v1141
  %v1143 = vrot.slane %v1126, %v1142
  %v1212 = vunpack.c.l.b16 %v1062
  %v1213 = vunpack.c.h.b16 %v1062
  %v1214 = vunpack.c.l.b16 %v1063
  %v1215 = vunpack.c.h.b16 %v1063
  %v1216 = vunpack.c.l.b16 %v1064
  %v1217 = vunpack.c.h.b16 %v1064
  %v1218 = vunpack.c.l.b16 %v1065
  %v1219 = vunpack.c.h.b16 %v1065
  %v1220 = vunpack.c.l.b16 %v1066
  %v1221 = vunpack.c.h.b16 %v1066
  %v1222 = vunpack.c.l.b16 %v1067
  %v1223 = vunpack.c.h.b16 %v1067
  %v1224 = vunpack.c.l.b16 %v1068
  %v1225 = vunpack.c.h.b16 %v1068
  %v1226 = vunpack.c.l.b16 %v1069
  %v1227 = vunpack.c.h.b16 %v1069
  %v1228 = vunpack.c.l.b16 %v1070
  %v1229 = vunpack.c.h.b16 %v1070
  %v1230 = vunpack.c.l.b16 %v1071
  %v1231 = vunpack.c.h.b16 %v1071
  %v1232 = vunpack.c.l.b16 %v1072
  %v1233 = vunpack.c.h.b16 %v1072
  %v1234 = vunpack.c.l.b16 %v1073
  %v1235 = vunpack.c.h.b16 %v1073
  %v1236 = vunpack.c.l.b16 %v1074
  %v1237 = vunpack.c.h.b16 %v1074
  %v1238 = vunpack.c.l.b16 %v1075
  %v1239 = vunpack.c.h.b16 %v1075
  %v1240 = vunpack.c.l.b16 %v1076
  %v1241 = vunpack.c.h.b16 %v1076
  %v1242 = vunpack.c.l.b16 %v1077
  %v1243 = vunpack.c.h.b16 %v1077
  %v1244 = vunpack.c.l.b16 %v1078
  %v1245 = vunpack.c.h.b16 %v1078
  %v1246 = vunpack.c.l.b16 %v1079
  %v1247 = vunpack.c.h.b16 %v1079
  %v1248 = vunpack.c.l.b16 %v1080
  %v1249 = vunpack.c.h.b16 %v1080
  %v1250 = vunpack.c.l.b16 %v1081
  %v1251 = vunpack.c.h.b16 %v1081
  %v1252 = vunpack.c.l.b16 %v1082
  %v1253 = vunpack.c.h.b16 %v1082
  %v1254 = vunpack.c.l.b16 %v1083
  %v1255 = vunpack.c.h.b16 %v1083
  %v1256 = vunpack.c.l.b16 %v1084
  %v1257 = vunpack.c.h.b16 %v1084
  %v1258 = vunpack.c.l.b16 %v1085
  %v1259 = vunpack.c.h.b16 %v1085
  %v1260 = vunpack.c.l.b16 %v1086
  %v1261 = vunpack.c.h.b16 %v1086
  %v1262 = vunpack.c.l.b16 %v1087
  %v1263 = vunpack.c.h.b16 %v1087
  %v1264 = vunpack.c.l.b16 %v1088
  %v1265 = vunpack.c.h.b16 %v1088
  %v1266 = vunpack.c.l.b16 %v1089
  %v1267 = vunpack.c.h.b16 %v1089
  %v1268 = vunpack.c.l.b16 %v1090
  %v1269 = vunpack.c.h.b16 %v1090
  %v1270 = vunpack.c.l.b16 %v1091
  %v1271 = vunpack.c.h.b16 %v1091
  %v1272 = vunpack.c.l.b16 %v1092
  %v1273 = vunpack.c.h.b16 %v1092
  %v1274 = vunpack.c.l.b16 %v1093
  %v1275 = vunpack.c.h.b16 %v1093
  %v1276 = vunpack.c.l.b16 %v1094
  %v1277 = vunpack.c.h.b16 %v1094
  %v1278 = vunpack.c.l.b16 %v1095
  %v1279 = vunpack.c.h.b16 %v1095
  %v1280 = vunpack.c.l.b16 %v1096
  %v1281 = vunpack.c.h.b16 %v1096
  %v1282 = vunpack.c.l.b16 %v1097
  %v1283 = vunpack.c.h.b16 %v1097
  %v1284 = vunpack.c.l.b16 %v1098
  %v1285 = vunpack.c.h.b16 %v1098
  %v1286 = vunpack.c.l.b16 %v1099
  %v1287 = vunpack.c.h.b16 %v1099
  %v1288 = vunpack.c.l.b16 %v1100
  %v1289 = vunpack.c.h.b16 %v1100
  %v1290 = vunpack.c.l.b16 %v1101
  %v1291 = vunpack.c.h.b16 %v1101
  %v1292 = vunpack.c.l.b16 %v1102
  %v1293 = vunpack.c.h.b16 %v1102
  %v1294 = vunpack.c.l.b16 %v1103
  %v1295 = vunpack.c.h.b16 %v1103
  %v1296 = vunpack.c.l.b16 %v1104
  %v1297 = vunpack.c.h.b16 %v1104
  %v1298 = vunpack.c.l.b16 %v1105
  %v1299 = vunpack.c.h.b16 %v1105
  %v1300 = vunpack.c.l.b16 %v1106
  %v1301 = vunpack.c.h.b16 %v1106
  %v1302 = vunpack.c.l.b16 %v1107
  %v1303 = vunpack.c.h.b16 %v1107
  %v1304 = vunpack.c.l.b16 %v1108
  %v1305 = vunpack.c.h.b16 %v1108
  %v1306 = vunpack.c.l.b16 %v1109
  %v1307 = vunpack.c.h.b16 %v1109
  %v1308 = vunpack.c.l.b16 %v1110
  %v1309 = vunpack.c.h.b16 %v1110
  %v1310 = vunpack.c.l.b16 %v1111
  %v1311 = vunpack.c.h.b16 %v1111
  %v1312 = vunpack.c.l.b16 %v1112
  %v1313 = vunpack.c.h.b16 %v1112
  %v1314 = vunpack.c.l.b16 %v1113
  %v1315 = vunpack.c.h.b16 %v1113
  %v1316 = vunpack.c.l.b16 %v1114
  %v1317 = vunpack.c.h.b16 %v1114
  %v1318 = vunpack.c.l.b16 %v1115
  %v1319 = vunpack.c.h.b16 %v1115
  %v1320 = vunpack.c.l.b16 %v1116
  %v1321 = vunpack.c.h.b16 %v1116
  %v1322 = vunpack.c.l.b16 %v1117
  %v1323 = vunpack.c.h.b16 %v1117
  %v1324 = vunpack.c.l.b16 %v1118
  %v1325 = vunpack.c.h.b16 %v1118
  %v1326 = vunpack.c.l.b16 %v1119
  %v1327 = vunpack.c.h.b16 %v1119
  %v1328 = vunpack.c.l.b16 %v1120
  %v1329 = vunpack.c.h.b16 %v1120
  %v1330 = vunpack.c.l.b16 %v1121
  %v1331 = vunpack.c.h.b16 %v1121
  %v1332 = vunpack.c.l.b16 %v1122
  %v1333 = vunpack.c.h.b16 %v1122
  %v1334 = vunpack.c.l.b16 %v1123
  %v1335 = vunpack.c.h.b16 %v1123
  %v1336 = vunpack.c.l.b16 %v1124
  %v1337 = vunpack.c.h.b16 %v1124
  %v1338 = vunpack.c.l.b16 %v1125
  %v1339 = vunpack.c.h.b16 %v1125
  %v1340 = vpack.c.b16 %v1216, %v1212
  %v1341 = vpack.c.b16 %v1217, %v1213
  %v1342 = vpack.c.b16 %v1218, %v1214
  %v1343 = vpack.c.b16 %v1219, %v1215
  %v1344 = vpack.c.b16 %v1224, %v1220
  %v1345 = vpack.c.b16 %v1225, %v1221
  %v1346 = vpack.c.b16 %v1226, %v1222
  %v1347 = vpack.c.b16 %v1227, %v1223
  %v1348 = vpack.c.b16 %v1232, %v1228
  %v1349 = vpack.c.b16 %v1233, %v1229
  %v1350 = vpack.c.b16 %v1234, %v1230
  %v1351 = vpack.c.b16 %v1235, %v1231
  %v1352 = vpack.c.b16 %v1240, %v1236
  %v1353 = vpack.c.b16 %v1241, %v1237
  %v1354 = vpack.c.b16 %v1242, %v1238
  %v1355 = vpack.c.b16 %v1243, %v1239
  %v1356 = vpack.c.b16 %v1248, %v1244
  %v1357 = vpack.c.b16 %v1249, %v1245
  %v1358 = vpack.c.b16 %v1250, %v1246
  %v1359 = vpack.c.b16 %v1251, %v1247
  %v1360 = vpack.c.b16 %v1256, %v1252
  %v1361 = vpack.c.b16 %v1257, %v1253
  %v1362 = vpack.c.b16 %v1258, %v1254
  %v1363 = vpack.c.b16 %v1259, %v1255
  %v1364 = vpack.c.b16 %v1264, %v1260
  %v1365 = vpack.c.b16 %v1265, %v1261
  %v1366 = vpack.c.b16 %v1266, %v1262
  %v1367 = vpack.c.b16 %v1267, %v1263
  %v1368 = vpack.c.b16 %v1272, %v1268
  %v1369 = vpack.c.b16 %v1273, %v1269
  %v1370 = vpack.c.b16 %v1274, %v1270
  %v1371 = vpack.c.b16 %v1275, %v1271
  %v1372 = vpack.c.b16 %v1280, %v1276
  %v1373 = vpack.c.b16 %v1281, %v1277
  %v1374 = vpack.c.b16 %v1282, %v1278
  %v1375 = vpack.c.b16 %v1283, %v1279
  %v1376 = vpack.c.b16 %v1288, %v1284
  %v1377 = vpack.c.b16 %v1289, %v1285
  %v1378 = vpack.c.b16 %v1290, %v1286
  %v1379 = vpack.c.b16 %v1291, %v1287
  %v1380 = vpack.c.b16 %v1296, %v1292
  %v1381 = vpack.c.b16 %v1297, %v1293
  %v1382 = vpack.c.b16 %v1298, %v1294
  %v1383 = vpack.c.b16 %v1299, %v1295
  %v1384 = vpack.c.b16 %v1304, %v1300
  %v1385 = vpack.c.b16 %v1305, %v1301
  %v1386 = vpack.c.b16 %v1306, %v1302
  %v1387 = vpack.c.b16 %v1307, %v1303
  %v1388 = vpack.c.b16 %v1312, %v1308
  %v1389 = vpack.c.b16 %v1313, %v1309
  %v1390 = vpack.c.b16 %v1314, %v1310
  %v1391 = vpack.c.b16 %v1315, %v1311
  %v1392 = vpack.c.b16 %v1320, %v1316
  %v1393 = vpack.c.b16 %v1321, %v1317
  %v1394 = vpack.c.b16 %v1322, %v1318
  %v1395 = vpack.c.b16 %v1323, %v1319
  %v1396 = vpack.c.b16 %v1328, %v1324
  %v1397 = vpack.c.b16 %v1329, %v1325
  %v1398 = vpack.c.b16 %v1330, %v1326
  %v1399 = vpack.c.b16 %v1331, %v1327
  %v1400 = vpack.c.b16 %v1336, %v1332
  %v1401 = vpack.c.b16 %v1337, %v1333
  %v1402 = vpack.c.b16 %v1338, %v1334
  %v1403 = vpack.c.b16 %v1339, %v1335
  %1468 = vmatprep.subr.bf16.mxu0 %v1341
  %1469 = vmatpush1.bf16.msra.mxu0 %v1340
  %1470 = vmatprep.subr.bf16.mxu0 %v1345
  %1471 = vmatpush1.bf16.msra.mxu0 %v1344
  %1472 = vmatprep.subr.bf16.mxu0 %v1349
  %1473 = vmatpush1.bf16.msra.mxu0 %v1348
  %1474 = vmatprep.subr.bf16.mxu0 %v1353
  %1475 = vmatpush1.bf16.msra.mxu0 %v1352
  %1476 = vmatprep.subr.bf16.mxu0 %v1357
  %1477 = vmatpush1.bf16.msra.mxu0 %v1356
  %1478 = vmatprep.subr.bf16.mxu0 %v1361
  %1479 = vmatpush1.bf16.msra.mxu0 %v1360
  %1480 = vmatprep.subr.bf16.mxu0 %v1365
  %1481 = vmatpush1.bf16.msra.mxu0 %v1364
  %1482 = vmatprep.subr.bf16.mxu0 %v1369
  %1483 = vmatpush1.bf16.msra.mxu0 %v1368
  %1484 = vmatprep.subr.bf16.mxu0 %v1373
  %1485 = vmatpush1.bf16.msra.mxu0 %v1372
  %1486 = vmatprep.subr.bf16.mxu0 %v1377
  %1487 = vmatpush1.bf16.msra.mxu0 %v1376
  %1488 = vmatprep.subr.bf16.mxu0 %v1381
  %1489 = vmatpush1.bf16.msra.mxu0 %v1380
  %1490 = vmatprep.subr.bf16.mxu0 %v1385
  %1491 = vmatpush1.bf16.msra.mxu0 %v1384
  %1492 = vmatprep.subr.bf16.mxu0 %v1389
  %1493 = vmatpush1.bf16.msra.mxu0 %v1388
  %1494 = vmatprep.subr.bf16.mxu0 %v1393
  %1495 = vmatpush1.bf16.msra.mxu0 %v1392
  %1496 = vmatprep.subr.bf16.mxu0 %v1397
  %1497 = vmatpush1.bf16.msra.mxu0 %v1396
  %1498 = vmatprep.subr.bf16.mxu0 %v1401
  %1499 = vmatpush1.bf16.msra.mxu0 %v1400
  %1500 = vmatprep.mubr.bf16.mxu0 %v1061
  %1501 = vmatmul.mubr.bf16.gmra.mrb[0].mxu0 %v1059
  %v1502 = vpop.f32.mrb[0].mxu0
  %v1503 = vadd.f32 %v1131, %v1502
  %v1504 = vpop.f32.mrb[0].mxu0
  %v1505 = vadd.f32 %v1135, %v1504
  %v1506 = vpop.f32.mrb[0].mxu0
  %v1507 = vpop.f32.mrb[0].mxu0
  %1508 = vdwg.mxu0
  %1509 = vmatprep.subr.bf16.mxu0 %v1343
  %1510 = vmatpush1.bf16.msra.mxu0 %v1342
  %1511 = vmatprep.subr.bf16.mxu0 %v1347
  %1512 = vmatpush1.bf16.msra.mxu0 %v1346
  %1513 = vmatprep.subr.bf16.mxu0 %v1351
  %1514 = vmatpush1.bf16.msra.mxu0 %v1350
  %1515 = vmatprep.subr.bf16.mxu0 %v1355
  %1516 = vmatpush1.bf16.msra.mxu0 %v1354
  %1517 = vmatprep.subr.bf16.mxu0 %v1359
  %1518 = vmatpush1.bf16.msra.mxu0 %v1358
  %1519 = vmatprep.subr.bf16.mxu0 %v1363
  %1520 = vmatpush1.bf16.msra.mxu0 %v1362
  %1521 = vmatprep.subr.bf16.mxu0 %v1367
  %1522 = vmatpush1.bf16.msra.mxu0 %v1366
  %1523 = vmatprep.subr.bf16.mxu0 %v1371
  %1524 = vmatpush1.bf16.msra.mxu0 %v1370
  %1525 = vmatprep.subr.bf16.mxu0 %v1375
  %1526 = vmatpush1.bf16.msra.mxu0 %v1374
  %1527 = vmatprep.subr.bf16.mxu0 %v1379
  %1528 = vmatpush1.bf16.msra.mxu0 %v1378
  %1529 = vmatprep.subr.bf16.mxu0 %v1383
  %1530 = vmatpush1.bf16.msra.mxu0 %v1382
  %1531 = vmatprep.subr.bf16.mxu0 %v1387
  %1532 = vmatpush1.bf16.msra.mxu0 %v1386
  %1533 = vmatprep.subr.bf16.mxu0 %v1391
  %1534 = vmatpush1.bf16.msra.mxu0 %v1390
  %1535 = vmatprep.subr.bf16.mxu0 %v1395
  %1536 = vmatpush1.bf16.msra.mxu0 %v1394
  %1537 = vmatprep.subr.bf16.mxu0 %v1399
  %1538 = vmatpush1.bf16.msra.mxu0 %v1398
  %1539 = vmatprep.subr.bf16.mxu0 %v1403
  %1540 = vmatpush1.bf16.msra.mxu0 %v1402
  %1541 = vmatprep.mubr.bf16.mxu0 %v1061
  %1542 = vmatmul.mubr.bf16.gmra.mrb[0].mxu0 %v1059
  %v1543 = vpop.f32.mrb[0].mxu0
  %v1544 = vadd.f32 %v1139, %v1543
  %v1545 = vpop.f32.mrb[0].mxu0
  %v1546 = vadd.f32 %v1143, %v1545
  %v1547 = vpop.f32.mrb[0].mxu0
  %v1548 = vpop.f32.mrb[0].mxu0
  %1549 = vdwg.mxu0
  %v1550 = vxor.u32 %v1503, 2147483648
  %v1551 = vmul.f32 %v1550, 1.442695
  %v1552 = vpow.pop %v1551
  %v1553 = vadd.f32 %v1552, 1.0
  %v1554 = vrcp.pop %v1553
  %v1555 = vmul.f32 1.0, %v1554
  %v1556 = vxor.u32 %v1505, 2147483648
  %v1557 = vmul.f32 %v1556, 1.442695
  %v1558 = vpow.pop %v1557
  %v1559 = vadd.f32 %v1558, 1.0
  %v1560 = vrcp.pop %v1559
  %v1561 = vmul.f32 1.0, %v1560
  %v1562 = vtanh.pop %v1544
  %v1563 = vxor.u32 %v1546, 2147483648
  %v1564 = vmul.f32 %v1563, 1.442695
  %v1565 = vpow.pop %v1564
  %v1566 = vadd.f32 %v1565, 1.0
  %v1567 = vrcp.pop %v1566
  %v1568 = vmul.f32 1.0, %v1567
  %v1569 = vld [vmem:[#allocation3] sm:$0xff]
  %v1570 = vmul.f32 %v1561, %v1569
  %v1571 = vmul.f32 %v1555, %v1562
  %v1572 = vadd.f32 %v1570, %v1571
  %v1573 = vtanh.pop %v1572
  %v1574 = vmul.f32 %v1568, %v1573
  %1575 = vst [vmem:[#allocation3] sm:$0xff] %v1572
  %1576 = vst [vmem:[#allocation2] sm:$0xff] %v1574
  %v1577 = vpack.c.bf16 %v1574, %v1574
  %s1578 = scalar_lea.vmem %s3, 8
  %1579 = vst [vmem:[%s1578] sm:$0xf] %v1577
  %s1580 = scalar_lea.vmem %s0, 12
  %v1581 = vld [vmem:[%s1580] sm:$0xf]
  %v1582 = vld [vmem:[#allocation2] sm:$0xff]
  %v1583 = vpack.c.bf16 %v1582, %v1582
  %v1584 = vld [vmem:[%s1] sm:$0xff]
  %v1585 = vld [vmem:[%s1 + $0x8] sm:$0xff]
  %v1586 = vld [vmem:[%s1 + $0x10] sm:$0xff]
  %v1587 = vld [vmem:[%s1 + $0x18] sm:$0xff]
  %v1588 = vld [vmem:[%s1 + $0x20] sm:$0xff]
  %v1589 = vld [vmem:[%s1 + $0x28] sm:$0xff]
  %v1590 = vld [vmem:[%s1 + $0x30] sm:$0xff]
  %v1591 = vld [vmem:[%s1 + $0x38] sm:$0xff]
  %v1592 = vld [vmem:[%s1 + $0x40] sm:$0xff]
  %v1593 = vld [vmem:[%s1 + $0x48] sm:$0xff]
  %v1594 = vld [vmem:[%s1 + $0x50] sm:$0xff]
  %v1595 = vld [vmem:[%s1 + $0x58] sm:$0xff]
  %v1596 = vld [vmem:[%s1 + $0x60] sm:$0xff]
  %v1597 = vld [vmem:[%s1 + $0x68] sm:$0xff]
  %v1598 = vld [vmem:[%s1 + $0x70] sm:$0xff]
  %v1599 = vld [vmem:[%s1 + $0x78] sm:$0xff]
  %v1600 = vld [vmem:[%s1 + $0x80] sm:$0xff]
  %v1601 = vld [vmem:[%s1 + $0x88] sm:$0xff]
  %v1602 = vld [vmem:[%s1 + $0x90] sm:$0xff]
  %v1603 = vld [vmem:[%s1 + $0x98] sm:$0xff]
  %v1604 = vld [vmem:[%s1 + $0xa0] sm:$0xff]
  %v1605 = vld [vmem:[%s1 + $0xa8] sm:$0xff]
  %v1606 = vld [vmem:[%s1 + $0xb0] sm:$0xff]
  %v1607 = vld [vmem:[%s1 + $0xb8] sm:$0xff]
  %v1608 = vld [vmem:[%s1 + $0xc0] sm:$0xff]
  %v1609 = vld [vmem:[%s1 + $0xc8] sm:$0xff]
  %v1610 = vld [vmem:[%s1 + $0xd0] sm:$0xff]
  %v1611 = vld [vmem:[%s1 + $0xd8] sm:$0xff]
  %v1612 = vld [vmem:[%s1 + $0xe0] sm:$0xff]
  %v1613 = vld [vmem:[%s1 + $0xe8] sm:$0xff]
  %v1614 = vld [vmem:[%s1 + $0xf0] sm:$0xff]
  %v1615 = vld [vmem:[%s1 + $0xf8] sm:$0xff]
  %v1616 = vld [vmem:[%s1 + $0x100] sm:$0xff]
  %v1617 = vld [vmem:[%s1 + $0x108] sm:$0xff]
  %v1618 = vld [vmem:[%s1 + $0x110] sm:$0xff]
  %v1619 = vld [vmem:[%s1 + $0x118] sm:$0xff]
  %v1620 = vld [vmem:[%s1 + $0x120] sm:$0xff]
  %v1621 = vld [vmem:[%s1 + $0x128] sm:$0xff]
  %v1622 = vld [vmem:[%s1 + $0x130] sm:$0xff]
  %v1623 = vld [vmem:[%s1 + $0x138] sm:$0xff]
  %v1624 = vld [vmem:[%s1 + $0x140] sm:$0xff]
  %v1625 = vld [vmem:[%s1 + $0x148] sm:$0xff]
  %v1626 = vld [vmem:[%s1 + $0x150] sm:$0xff]
  %v1627 = vld [vmem:[%s1 + $0x158] sm:$0xff]
  %v1628 = vld [vmem:[%s1 + $0x160] sm:$0xff]
  %v1629 = vld [vmem:[%s1 + $0x168] sm:$0xff]
  %v1630 = vld [vmem:[%s1 + $0x170] sm:$0xff]
  %v1631 = vld [vmem:[%s1 + $0x178] sm:$0xff]
  %v1632 = vld [vmem:[%s1 + $0x180] sm:$0xff]
  %v1633 = vld [vmem:[%s1 + $0x188] sm:$0xff]
  %v1634 = vld [vmem:[%s1 + $0x190] sm:$0xff]
  %v1635 = vld [vmem:[%s1 + $0x198] sm:$0xff]
  %v1636 = vld [vmem:[%s1 + $0x1a0] sm:$0xff]
  %v1637 = vld [vmem:[%s1 + $0x1a8] sm:$0xff]
  %v1638 = vld [vmem:[%s1 + $0x1b0] sm:$0xff]
  %v1639 = vld [vmem:[%s1 + $0x1b8] sm:$0xff]
  %v1640 = vld [vmem:[%s1 + $0x1c0] sm:$0xff]
  %v1641 = vld [vmem:[%s1 + $0x1c8] sm:$0xff]
  %v1642 = vld [vmem:[%s1 + $0x1d0] sm:$0xff]
  %v1643 = vld [vmem:[%s1 + $0x1d8] sm:$0xff]
  %v1644 = vld [vmem:[%s1 + $0x1e0] sm:$0xff]
  %v1645 = vld [vmem:[%s1 + $0x1e8] sm:$0xff]
  %v1646 = vld [vmem:[%s1 + $0x1f0] sm:$0xff]
  %v1647 = vld [vmem:[%s1 + $0x1f8] sm:$0xff]
  %v1648 = vld [vmem:[%s2] sm:$0xf]
  %v1650 = vlaneseq
  %v1651 = vshrl.u32 %v1650, 7
  %v1652 = vsub.s32 0, %v1651
  %v1653 = vrot.slane %v1648, %v1652
  %v1654 = vlaneseq
  %v1655 = vshrl.u32 %v1654, 7
  %v1656 = vsub.s32 1, %v1655
  %v1657 = vrot.slane %v1648, %v1656
  %v1658 = vlaneseq
  %v1659 = vshrl.u32 %v1658, 7
  %v1660 = vsub.s32 2, %v1659
  %v1661 = vrot.slane %v1648, %v1660
  %v1662 = vlaneseq
  %v1663 = vshrl.u32 %v1662, 7
  %v1664 = vsub.s32 3, %v1663
  %v1665 = vrot.slane %v1648, %v1664
  %v1734 = vunpack.c.l.b16 %v1584
  %v1735 = vunpack.c.h.b16 %v1584
  %v1736 = vunpack.c.l.b16 %v1585
  %v1737 = vunpack.c.h.b16 %v1585
  %v1738 = vunpack.c.l.b16 %v1586
  %v1739 = vunpack.c.h.b16 %v1586
  %v1740 = vunpack.c.l.b16 %v1587
  %v1741 = vunpack.c.h.b16 %v1587
  %v1742 = vunpack.c.l.b16 %v1588
  %v1743 = vunpack.c.h.b16 %v1588
  %v1744 = vunpack.c.l.b16 %v1589
  %v1745 = vunpack.c.h.b16 %v1589
  %v1746 = vunpack.c.l.b16 %v1590
  %v1747 = vunpack.c.h.b16 %v1590
  %v1748 = vunpack.c.l.b16 %v1591
  %v1749 = vunpack.c.h.b16 %v1591
  %v1750 = vunpack.c.l.b16 %v1592
  %v1751 = vunpack.c.h.b16 %v1592
  %v1752 = vunpack.c.l.b16 %v1593
  %v1753 = vunpack.c.h.b16 %v1593
  %v1754 = vunpack.c.l.b16 %v1594
  %v1755 = vunpack.c.h.b16 %v1594
  %v1756 = vunpack.c.l.b16 %v1595
  %v1757 = vunpack.c.h.b16 %v1595
  %v1758 = vunpack.c.l.b16 %v1596
  %v1759 = vunpack.c.h.b16 %v1596
  %v1760 = vunpack.c.l.b16 %v1597
  %v1761 = vunpack.c.h.b16 %v1597
  %v1762 = vunpack.c.l.b16 %v1598
  %v1763 = vunpack.c.h.b16 %v1598
  %v1764 = vunpack.c.l.b16 %v1599
  %v1765 = vunpack.c.h.b16 %v1599
  %v1766 = vunpack.c.l.b16 %v1600
  %v1767 = vunpack.c.h.b16 %v1600
  %v1768 = vunpack.c.l.b16 %v1601
  %v1769 = vunpack.c.h.b16 %v1601
  %v1770 = vunpack.c.l.b16 %v1602
  %v1771 = vunpack.c.h.b16 %v1602
  %v1772 = vunpack.c.l.b16 %v1603
  %v1773 = vunpack.c.h.b16 %v1603
  %v1774 = vunpack.c.l.b16 %v1604
  %v1775 = vunpack.c.h.b16 %v1604
  %v1776 = vunpack.c.l.b16 %v1605
  %v1777 = vunpack.c.h.b16 %v1605
  %v1778 = vunpack.c.l.b16 %v1606
  %v1779 = vunpack.c.h.b16 %v1606
  %v1780 = vunpack.c.l.b16 %v1607
  %v1781 = vunpack.c.h.b16 %v1607
  %v1782 = vunpack.c.l.b16 %v1608
  %v1783 = vunpack.c.h.b16 %v1608
  %v1784 = vunpack.c.l.b16 %v1609
  %v1785 = vunpack.c.h.b16 %v1609
  %v1786 = vunpack.c.l.b16 %v1610
  %v1787 = vunpack.c.h.b16 %v1610
  %v1788 = vunpack.c.l.b16 %v1611
  %v1789 = vunpack.c.h.b16 %v1611
  %v1790 = vunpack.c.l.b16 %v1612
  %v1791 = vunpack.c.h.b16 %v1612
  %v1792 = vunpack.c.l.b16 %v1613
  %v1793 = vunpack.c.h.b16 %v1613
  %v1794 = vunpack.c.l.b16 %v1614
  %v1795 = vunpack.c.h.b16 %v1614
  %v1796 = vunpack.c.l.b16 %v1615
  %v1797 = vunpack.c.h.b16 %v1615
  %v1798 = vunpack.c.l.b16 %v1616
  %v1799 = vunpack.c.h.b16 %v1616
  %v1800 = vunpack.c.l.b16 %v1617
  %v1801 = vunpack.c.h.b16 %v1617
  %v1802 = vunpack.c.l.b16 %v1618
  %v1803 = vunpack.c.h.b16 %v1618
  %v1804 = vunpack.c.l.b16 %v1619
  %v1805 = vunpack.c.h.b16 %v1619
  %v1806 = vunpack.c.l.b16 %v1620
  %v1807 = vunpack.c.h.b16 %v1620
  %v1808 = vunpack.c.l.b16 %v1621
  %v1809 = vunpack.c.h.b16 %v1621
  %v1810 = vunpack.c.l.b16 %v1622
  %v1811 = vunpack.c.h.b16 %v1622
  %v1812 = vunpack.c.l.b16 %v1623
  %v1813 = vunpack.c.h.b16 %v1623
  %v1814 = vunpack.c.l.b16 %v1624
  %v1815 = vunpack.c.h.b16 %v1624
  %v1816 = vunpack.c.l.b16 %v1625
  %v1817 = vunpack.c.h.b16 %v1625
  %v1818 = vunpack.c.l.b16 %v1626
  %v1819 = vunpack.c.h.b16 %v1626
  %v1820 = vunpack.c.l.b16 %v1627
  %v1821 = vunpack.c.h.b16 %v1627
  %v1822 = vunpack.c.l.b16 %v1628
  %v1823 = vunpack.c.h.b16 %v1628
  %v1824 = vunpack.c.l.b16 %v1629
  %v1825 = vunpack.c.h.b16 %v1629
  %v1826 = vunpack.c.l.b16 %v1630
  %v1827 = vunpack.c.h.b16 %v1630
  %v1828 = vunpack.c.l.b16 %v1631
  %v1829 = vunpack.c.h.b16 %v1631
  %v1830 = vunpack.c.l.b16 %v1632
  %v1831 = vunpack.c.h.b16 %v1632
  %v1832 = vunpack.c.l.b16 %v1633
  %v1833 = vunpack.c.h.b16 %v1633
  %v1834 = vunpack.c.l.b16 %v1634
  %v1835 = vunpack.c.h.b16 %v1634
  %v1836 = vunpack.c.l.b16 %v1635
  %v1837 = vunpack.c.h.b16 %v1635
  %v1838 = vunpack.c.l.b16 %v1636
  %v1839 = vunpack.c.h.b16 %v1636
  %v1840 = vunpack.c.l.b16 %v1637
  %v1841 = vunpack.c.h.b16 %v1637
  %v1842 = vunpack.c.l.b16 %v1638
  %v1843 = vunpack.c.h.b16 %v1638
  %v1844 = vunpack.c.l.b16 %v1639
  %v1845 = vunpack.c.h.b16 %v1639
  %v1846 = vunpack.c.l.b16 %v1640
  %v1847 = vunpack.c.h.b16 %v1640
  %v1848 = vunpack.c.l.b16 %v1641
  %v1849 = vunpack.c.h.b16 %v1641
  %v1850 = vunpack.c.l.b16 %v1642
  %v1851 = vunpack.c.h.b16 %v1642
  %v1852 = vunpack.c.l.b16 %v1643
  %v1853 = vunpack.c.h.b16 %v1643
  %v1854 = vunpack.c.l.b16 %v1644
  %v1855 = vunpack.c.h.b16 %v1644
  %v1856 = vunpack.c.l.b16 %v1645
  %v1857 = vunpack.c.h.b16 %v1645
  %v1858 = vunpack.c.l.b16 %v1646
  %v1859 = vunpack.c.h.b16 %v1646
  %v1860 = vunpack.c.l.b16 %v1647
  %v1861 = vunpack.c.h.b16 %v1647
  %v1862 = vpack.c.b16 %v1738, %v1734
  %v1863 = vpack.c.b16 %v1739, %v1735
  %v1864 = vpack.c.b16 %v1740, %v1736
  %v1865 = vpack.c.b16 %v1741, %v1737
  %v1866 = vpack.c.b16 %v1746, %v1742
  %v1867 = vpack.c.b16 %v1747, %v1743
  %v1868 = vpack.c.b16 %v1748, %v1744
  %v1869 = vpack.c.b16 %v1749, %v1745
  %v1870 = vpack.c.b16 %v1754, %v1750
  %v1871 = vpack.c.b16 %v1755, %v1751
  %v1872 = vpack.c.b16 %v1756, %v1752
  %v1873 = vpack.c.b16 %v1757, %v1753
  %v1874 = vpack.c.b16 %v1762, %v1758
  %v1875 = vpack.c.b16 %v1763, %v1759
  %v1876 = vpack.c.b16 %v1764, %v1760
  %v1877 = vpack.c.b16 %v1765, %v1761
  %v1878 = vpack.c.b16 %v1770, %v1766
  %v1879 = vpack.c.b16 %v1771, %v1767
  %v1880 = vpack.c.b16 %v1772, %v1768
  %v1881 = vpack.c.b16 %v1773, %v1769
  %v1882 = vpack.c.b16 %v1778, %v1774
  %v1883 = vpack.c.b16 %v1779, %v1775
  %v1884 = vpack.c.b16 %v1780, %v1776
  %v1885 = vpack.c.b16 %v1781, %v1777
  %v1886 = vpack.c.b16 %v1786, %v1782
  %v1887 = vpack.c.b16 %v1787, %v1783
  %v1888 = vpack.c.b16 %v1788, %v1784
  %v1889 = vpack.c.b16 %v1789, %v1785
  %v1890 = vpack.c.b16 %v1794, %v1790
  %v1891 = vpack.c.b16 %v1795, %v1791
  %v1892 = vpack.c.b16 %v1796, %v1792
  %v1893 = vpack.c.b16 %v1797, %v1793
  %v1894 = vpack.c.b16 %v1802, %v1798
  %v1895 = vpack.c.b16 %v1803, %v1799
  %v1896 = vpack.c.b16 %v1804, %v1800
  %v1897 = vpack.c.b16 %v1805, %v1801
  %v1898 = vpack.c.b16 %v1810, %v1806
  %v1899 = vpack.c.b16 %v1811, %v1807
  %v1900 = vpack.c.b16 %v1812, %v1808
  %v1901 = vpack.c.b16 %v1813, %v1809
  %v1902 = vpack.c.b16 %v1818, %v1814
  %v1903 = vpack.c.b16 %v1819, %v1815
  %v1904 = vpack.c.b16 %v1820, %v1816
  %v1905 = vpack.c.b16 %v1821, %v1817
  %v1906 = vpack.c.b16 %v1826, %v1822
  %v1907 = vpack.c.b16 %v1827, %v1823
  %v1908 = vpack.c.b16 %v1828, %v1824
  %v1909 = vpack.c.b16 %v1829, %v1825
  %v1910 = vpack.c.b16 %v1834, %v1830
  %v1911 = vpack.c.b16 %v1835, %v1831
  %v1912 = vpack.c.b16 %v1836, %v1832
  %v1913 = vpack.c.b16 %v1837, %v1833
  %v1914 = vpack.c.b16 %v1842, %v1838
  %v1915 = vpack.c.b16 %v1843, %v1839
  %v1916 = vpack.c.b16 %v1844, %v1840
  %v1917 = vpack.c.b16 %v1845, %v1841
  %v1918 = vpack.c.b16 %v1850, %v1846
  %v1919 = vpack.c.b16 %v1851, %v1847
  %v1920 = vpack.c.b16 %v1852, %v1848
  %v1921 = vpack.c.b16 %v1853, %v1849
  %v1922 = vpack.c.b16 %v1858, %v1854
  %v1923 = vpack.c.b16 %v1859, %v1855
  %v1924 = vpack.c.b16 %v1860, %v1856
  %v1925 = vpack.c.b16 %v1861, %v1857
  %1990 = vmatprep.subr.bf16.mxu0 %v1863
  %1991 = vmatpush1.bf16.msra.mxu0 %v1862
  %1992 = vmatprep.subr.bf16.mxu0 %v1867
  %1993 = vmatpush1.bf16.msra.mxu0 %v1866
  %1994 = vmatprep.subr.bf16.mxu0 %v1871
  %1995 = vmatpush1.bf16.msra.mxu0 %v1870
  %1996 = vmatprep.subr.bf16.mxu0 %v1875
  %1997 = vmatpush1.bf16.msra.mxu0 %v1874
  %1998 = vmatprep.subr.bf16.mxu0 %v1879
  %1999 = vmatpush1.bf16.msra.mxu0 %v1878
  %2000 = vmatprep.subr.bf16.mxu0 %v1883
  %2001 = vmatpush1.bf16.msra.mxu0 %v1882
  %2002 = vmatprep.subr.bf16.mxu0 %v1887
  %2003 = vmatpush1.bf16.msra.mxu0 %v1886
  %2004 = vmatprep.subr.bf16.mxu0 %v1891
  %2005 = vmatpush1.bf16.msra.mxu0 %v1890
  %2006 = vmatprep.subr.bf16.mxu0 %v1895
  %2007 = vmatpush1.bf16.msra.mxu0 %v1894
  %2008 = vmatprep.subr.bf16.mxu0 %v1899
  %2009 = vmatpush1.bf16.msra.mxu0 %v1898
  %2010 = vmatprep.subr.bf16.mxu0 %v1903
  %2011 = vmatpush1.bf16.msra.mxu0 %v1902
  %2012 = vmatprep.subr.bf16.mxu0 %v1907
  %2013 = vmatpush1.bf16.msra.mxu0 %v1906
  %2014 = vmatprep.subr.bf16.mxu0 %v1911
  %2015 = vmatpush1.bf16.msra.mxu0 %v1910
  %2016 = vmatprep.subr.bf16.mxu0 %v1915
  %2017 = vmatpush1.bf16.msra.mxu0 %v1914
  %2018 = vmatprep.subr.bf16.mxu0 %v1919
  %2019 = vmatpush1.bf16.msra.mxu0 %v1918
  %2020 = vmatprep.subr.bf16.mxu0 %v1923
  %2021 = vmatpush1.bf16.msra.mxu0 %v1922
  %2022 = vmatprep.mubr.bf16.mxu0 %v1583
  %2023 = vmatmul.mubr.bf16.gmra.mrb[0].mxu0 %v1581
  %v2024 = vpop.f32.mrb[0].mxu0
  %v2025 = vadd.f32 %v1653, %v2024
  %v2026 = vpop.f32.mrb[0].mxu0
  %v2027 = vadd.f32 %v1657, %v2026
  %v2028 = vpop.f32.mrb[0].mxu0
  %v2029 = vpop.f32.mrb[0].mxu0
  %2030 = vdwg.mxu0
  %2031 = vmatprep.subr.bf16.mxu0 %v1865
  %2032 = vmatpush1.bf16.msra.mxu0 %v1864
  %2033 = vmatprep.subr.bf16.mxu0 %v1869
  %2034 = vmatpush1.bf16.msra.mxu0 %v1868
  %2035 = vmatprep.subr.bf16.mxu0 %v1873
  %2036 = vmatpush1.bf16.msra.mxu0 %v1872
  %2037 = vmatprep.subr.bf16.mxu0 %v1877
  %2038 = vmatpush1.bf16.msra.mxu0 %v1876
  %2039 = vmatprep.subr.bf16.mxu0 %v1881
  %2040 = vmatpush1.bf16.msra.mxu0 %v1880
  %2041 = vmatprep.subr.bf16.mxu0 %v1885
  %2042 = vmatpush1.bf16.msra.mxu0 %v1884
  %2043 = vmatprep.subr.bf16.mxu0 %v1889
  %2044 = vmatpush1.bf16.msra.mxu0 %v1888
  %2045 = vmatprep.subr.bf16.mxu0 %v1893
  %2046 = vmatpush1.bf16.msra.mxu0 %v1892
  %2047 = vmatprep.subr.bf16.mxu0 %v1897
  %2048 = vmatpush1.bf16.msra.mxu0 %v1896
  %2049 = vmatprep.subr.bf16.mxu0 %v1901
  %2050 = vmatpush1.bf16.msra.mxu0 %v1900
  %2051 = vmatprep.subr.bf16.mxu0 %v1905
  %2052 = vmatpush1.bf16.msra.mxu0 %v1904
  %2053 = vmatprep.subr.bf16.mxu0 %v1909
  %2054 = vmatpush1.bf16.msra.mxu0 %v1908
  %2055 = vmatprep.subr.bf16.mxu0 %v1913
  %2056 = vmatpush1.bf16.msra.mxu0 %v1912
  %2057 = vmatprep.subr.bf16.mxu0 %v1917
  %2058 = vmatpush1.bf16.msra.mxu0 %v1916
  %2059 = vmatprep.subr.bf16.mxu0 %v1921
  %2060 = vmatpush1.bf16.msra.mxu0 %v1920
  %2061 = vmatprep.subr.bf16.mxu0 %v1925
  %2062 = vmatpush1.bf16.msra.mxu0 %v1924
  %2063 = vmatprep.mubr.bf16.mxu0 %v1583
  %2064 = vmatmul.mubr.bf16.gmra.mrb[0].mxu0 %v1581
  %v2065 = vpop.f32.mrb[0].mxu0
  %v2066 = vadd.f32 %v1661, %v2065
  %v2067 = vpop.f32.mrb[0].mxu0
  %v2068 = vadd.f32 %v1665, %v2067
  %v2069 = vpop.f32.mrb[0].mxu0
  %v2070 = vpop.f32.mrb[0].mxu0
  %2071 = vdwg.mxu0
  %v2072 = vxor.u32 %v2025, 2147483648
  %v2073 = vmul.f32 %v2072, 1.442695
  %v2074 = vpow.pop %v2073
  %v2075 = vadd.f32 %v2074, 1.0
  %v2076 = vrcp.pop %v2075
  %v2077 = vmul.f32 1.0, %v2076
  %v2078 = vxor.u32 %v2027, 2147483648
  %v2079 = vmul.f32 %v2078, 1.442695
  %v2080 = vpow.pop %v2079
  %v2081 = vadd.f32 %v2080, 1.0
  %v2082 = vrcp.pop %v2081
  %v2083 = vmul.f32 1.0, %v2082
  %v2084 = vtanh.pop %v2066
  %v2085 = vxor.u32 %v2068, 2147483648
  %v2086 = vmul.f32 %v2085, 1.442695
  %v2087 = vpow.pop %v2086
  %v2088 = vadd.f32 %v2087, 1.0
  %v2089 = vrcp.pop %v2088
  %v2090 = vmul.f32 1.0, %v2089
  %v2091 = vld [vmem:[#allocation3] sm:$0xff]
  %v2092 = vmul.f32 %v2083, %v2091
  %v2093 = vmul.f32 %v2077, %v2084
  %v2094 = vadd.f32 %v2092, %v2093
  %v2095 = vtanh.pop %v2094
  %v2096 = vmul.f32 %v2090, %v2095
  %2097 = vst [vmem:[#allocation3] sm:$0xff] %v2094
  %2098 = vst [vmem:[#allocation2] sm:$0xff] %v2096
  %v2099 = vpack.c.bf16 %v2096, %v2096
  %s2100 = scalar_lea.vmem %s3, 12
  %2101 = vst [vmem:[%s2100] sm:$0xf] %v2099
  %s2102 = scalar_lea.vmem %s0, 16
  %v2103 = vld [vmem:[%s2102] sm:$0xf]
  %v2104 = vld [vmem:[#allocation2] sm:$0xff]
  %v2105 = vpack.c.bf16 %v2104, %v2104
  %v2106 = vld [vmem:[%s1] sm:$0xff]
  %v2107 = vld [vmem:[%s1 + $0x8] sm:$0xff]
  %v2108 = vld [vmem:[%s1 + $0x10] sm:$0xff]
  %v2109 = vld [vmem:[%s1 + $0x18] sm:$0xff]
  %v2110 = vld [vmem:[%s1 + $0x20] sm:$0xff]
  %v2111 = vld [vmem:[%s1 + $0x28] sm:$0xff]
  %v2112 = vld [vmem:[%s1 + $0x30] sm:$0xff]
  %v2113 = vld [vmem:[%s1 + $0x38] sm:$0xff]
  %v2114 = vld [vmem:[%s1 + $0x40] sm:$0xff]
  %v2115 = vld [vmem:[%s1 + $0x48] sm:$0xff]
  %v2116 = vld [vmem:[%s1 + $0x50] sm:$0xff]
  %v2117 = vld [vmem:[%s1 + $0x58] sm:$0xff]
  %v2118 = vld [vmem:[%s1 + $0x60] sm:$0xff]
  %v2119 = vld [vmem:[%s1 + $0x68] sm:$0xff]
  %v2120 = vld [vmem:[%s1 + $0x70] sm:$0xff]
  %v2121 = vld [vmem:[%s1 + $0x78] sm:$0xff]
  %v2122 = vld [vmem:[%s1 + $0x80] sm:$0xff]
  %v2123 = vld [vmem:[%s1 + $0x88] sm:$0xff]
  %v2124 = vld [vmem:[%s1 + $0x90] sm:$0xff]
  %v2125 = vld [vmem:[%s1 + $0x98] sm:$0xff]
  %v2126 = vld [vmem:[%s1 + $0xa0] sm:$0xff]
  %v2127 = vld [vmem:[%s1 + $0xa8] sm:$0xff]
  %v2128 = vld [vmem:[%s1 + $0xb0] sm:$0xff]
  %v2129 = vld [vmem:[%s1 + $0xb8] sm:$0xff]
  %v2130 = vld [vmem:[%s1 + $0xc0] sm:$0xff]
  %v2131 = vld [vmem:[%s1 + $0xc8] sm:$0xff]
  %v2132 = vld [vmem:[%s1 + $0xd0] sm:$0xff]
  %v2133 = vld [vmem:[%s1 + $0xd8] sm:$0xff]
  %v2134 = vld [vmem:[%s1 + $0xe0] sm:$0xff]
  %v2135 = vld [vmem:[%s1 + $0xe8] sm:$0xff]
  %v2136 = vld [vmem:[%s1 + $0xf0] sm:$0xff]
  %v2137 = vld [vmem:[%s1 + $0xf8] sm:$0xff]
  %v2138 = vld [vmem:[%s1 + $0x100] sm:$0xff]
  %v2139 = vld [vmem:[%s1 + $0x108] sm:$0xff]
  %v2140 = vld [vmem:[%s1 + $0x110] sm:$0xff]
  %v2141 = vld [vmem:[%s1 + $0x118] sm:$0xff]
  %v2142 = vld [vmem:[%s1 + $0x120] sm:$0xff]
  %v2143 = vld [vmem:[%s1 + $0x128] sm:$0xff]
  %v2144 = vld [vmem:[%s1 + $0x130] sm:$0xff]
  %v2145 = vld [vmem:[%s1 + $0x138] sm:$0xff]
  %v2146 = vld [vmem:[%s1 + $0x140] sm:$0xff]
  %v2147 = vld [vmem:[%s1 + $0x148] sm:$0xff]
  %v2148 = vld [vmem:[%s1 + $0x150] sm:$0xff]
  %v2149 = vld [vmem:[%s1 + $0x158] sm:$0xff]
  %v2150 = vld [vmem:[%s1 + $0x160] sm:$0xff]
  %v2151 = vld [vmem:[%s1 + $0x168] sm:$0xff]
  %v2152 = vld [vmem:[%s1 + $0x170] sm:$0xff]
  %v2153 = vld [vmem:[%s1 + $0x178] sm:$0xff]
  %v2154 = vld [vmem:[%s1 + $0x180] sm:$0xff]
  %v2155 = vld [vmem:[%s1 + $0x188] sm:$0xff]
  %v2156 = vld [vmem:[%s1 + $0x190] sm:$0xff]
  %v2157 = vld [vmem:[%s1 + $0x198] sm:$0xff]
  %v2158 = vld [vmem:[%s1 + $0x1a0] sm:$0xff]
  %v2159 = vld [vmem:[%s1 + $0x1a8] sm:$0xff]
  %v2160 = vld [vmem:[%s1 + $0x1b0] sm:$0xff]
  %v2161 = vld [vmem:[%s1 + $0x1b8] sm:$0xff]
  %v2162 = vld [vmem:[%s1 + $0x1c0] sm:$0xff]
  %v2163 = vld [vmem:[%s1 + $0x1c8] sm:$0xff]
  %v2164 = vld [vmem:[%s1 + $0x1d0] sm:$0xff]
  %v2165 = vld [vmem:[%s1 + $0x1d8] sm:$0xff]
  %v2166 = vld [vmem:[%s1 + $0x1e0] sm:$0xff]
  %v2167 = vld [vmem:[%s1 + $0x1e8] sm:$0xff]
  %v2168 = vld [vmem:[%s1 + $0x1f0] sm:$0xff]
  %v2169 = vld [vmem:[%s1 + $0x1f8] sm:$0xff]
  %v2170 = vld [vmem:[%s2] sm:$0xf]
  %v2172 = vlaneseq
  %v2173 = vshrl.u32 %v2172, 7
  %v2174 = vsub.s32 0, %v2173
  %v2175 = vrot.slane %v2170, %v2174
  %v2176 = vlaneseq
  %v2177 = vshrl.u32 %v2176, 7
  %v2178 = vsub.s32 1, %v2177
  %v2179 = vrot.slane %v2170, %v2178
  %v2180 = vlaneseq
  %v2181 = vshrl.u32 %v2180, 7
  %v2182 = vsub.s32 2, %v2181
  %v2183 = vrot.slane %v2170, %v2182
  %v2184 = vlaneseq
  %v2185 = vshrl.u32 %v2184, 7
  %v2186 = vsub.s32 3, %v2185
  %v2187 = vrot.slane %v2170, %v2186
  %v2256 = vunpack.c.l.b16 %v2106
  %v2257 = vunpack.c.h.b16 %v2106
  %v2258 = vunpack.c.l.b16 %v2107
  %v2259 = vunpack.c.h.b16 %v2107
  %v2260 = vunpack.c.l.b16 %v2108
  %v2261 = vunpack.c.h.b16 %v2108
  %v2262 = vunpack.c.l.b16 %v2109
  %v2263 = vunpack.c.h.b16 %v2109
  %v2264 = vunpack.c.l.b16 %v2110
  %v2265 = vunpack.c.h.b16 %v2110
  %v2266 = vunpack.c.l.b16 %v2111
  %v2267 = vunpack.c.h.b16 %v2111
  %v2268 = vunpack.c.l.b16 %v2112
  %v2269 = vunpack.c.h.b16 %v2112
  %v2270 = vunpack.c.l.b16 %v2113
  %v2271 = vunpack.c.h.b16 %v2113
  %v2272 = vunpack.c.l.b16 %v2114
  %v2273 = vunpack.c.h.b16 %v2114
  %v2274 = vunpack.c.l.b16 %v2115
  %v2275 = vunpack.c.h.b16 %v2115
  %v2276 = vunpack.c.l.b16 %v2116
  %v2277 = vunpack.c.h.b16 %v2116
  %v2278 = vunpack.c.l.b16 %v2117
  %v2279 = vunpack.c.h.b16 %v2117
  %v2280 = vunpack.c.l.b16 %v2118
  %v2281 = vunpack.c.h.b16 %v2118
  %v2282 = vunpack.c.l.b16 %v2119
  %v2283 = vunpack.c.h.b16 %v2119
  %v2284 = vunpack.c.l.b16 %v2120
  %v2285 = vunpack.c.h.b16 %v2120
  %v2286 = vunpack.c.l.b16 %v2121
  %v2287 = vunpack.c.h.b16 %v2121
  %v2288 = vunpack.c.l.b16 %v2122
  %v2289 = vunpack.c.h.b16 %v2122
  %v2290 = vunpack.c.l.b16 %v2123
  %v2291 = vunpack.c.h.b16 %v2123
  %v2292 = vunpack.c.l.b16 %v2124
  %v2293 = vunpack.c.h.b16 %v2124
  %v2294 = vunpack.c.l.b16 %v2125
  %v2295 = vunpack.c.h.b16 %v2125
  %v2296 = vunpack.c.l.b16 %v2126
  %v2297 = vunpack.c.h.b16 %v2126
  %v2298 = vunpack.c.l.b16 %v2127
  %v2299 = vunpack.c.h.b16 %v2127
  %v2300 = vunpack.c.l.b16 %v2128
  %v2301 = vunpack.c.h.b16 %v2128
  %v2302 = vunpack.c.l.b16 %v2129
  %v2303 = vunpack.c.h.b16 %v2129
  %v2304 = vunpack.c.l.b16 %v2130
  %v2305 = vunpack.c.h.b16 %v2130
  %v2306 = vunpack.c.l.b16 %v2131
  %v2307 = vunpack.c.h.b16 %v2131
  %v2308 = vunpack.c.l.b16 %v2132
  %v2309 = vunpack.c.h.b16 %v2132
  %v2310 = vunpack.c.l.b16 %v2133
  %v2311 = vunpack.c.h.b16 %v2133
  %v2312 = vunpack.c.l.b16 %v2134
  %v2313 = vunpack.c.h.b16 %v2134
  %v2314 = vunpack.c.l.b16 %v2135
  %v2315 = vunpack.c.h.b16 %v2135
  %v2316 = vunpack.c.l.b16 %v2136
  %v2317 = vunpack.c.h.b16 %v2136
  %v2318 = vunpack.c.l.b16 %v2137
  %v2319 = vunpack.c.h.b16 %v2137
  %v2320 = vunpack.c.l.b16 %v2138
  %v2321 = vunpack.c.h.b16 %v2138
  %v2322 = vunpack.c.l.b16 %v2139
  %v2323 = vunpack.c.h.b16 %v2139
  %v2324 = vunpack.c.l.b16 %v2140
  %v2325 = vunpack.c.h.b16 %v2140
  %v2326 = vunpack.c.l.b16 %v2141
  %v2327 = vunpack.c.h.b16 %v2141
  %v2328 = vunpack.c.l.b16 %v2142
  %v2329 = vunpack.c.h.b16 %v2142
  %v2330 = vunpack.c.l.b16 %v2143
  %v2331 = vunpack.c.h.b16 %v2143
  %v2332 = vunpack.c.l.b16 %v2144
  %v2333 = vunpack.c.h.b16 %v2144
  %v2334 = vunpack.c.l.b16 %v2145
  %v2335 = vunpack.c.h.b16 %v2145
  %v2336 = vunpack.c.l.b16 %v2146
  %v2337 = vunpack.c.h.b16 %v2146
  %v2338 = vunpack.c.l.b16 %v2147
  %v2339 = vunpack.c.h.b16 %v2147
  %v2340 = vunpack.c.l.b16 %v2148
  %v2341 = vunpack.c.h.b16 %v2148
  %v2342 = vunpack.c.l.b16 %v2149
  %v2343 = vunpack.c.h.b16 %v2149
  %v2344 = vunpack.c.l.b16 %v2150
  %v2345 = vunpack.c.h.b16 %v2150
  %v2346 = vunpack.c.l.b16 %v2151
  %v2347 = vunpack.c.h.b16 %v2151
  %v2348 = vunpack.c.l.b16 %v2152
  %v2349 = vunpack.c.h.b16 %v2152
  %v2350 = vunpack.c.l.b16 %v2153
  %v2351 = vunpack.c.h.b16 %v2153
  %v2352 = vunpack.c.l.b16 %v2154
  %v2353 = vunpack.c.h.b16 %v2154
  %v2354 = vunpack.c.l.b16 %v2155
  %v2355 = vunpack.c.h.b16 %v2155
  %v2356 = vunpack.c.l.b16 %v2156
  %v2357 = vunpack.c.h.b16 %v2156
  %v2358 = vunpack.c.l.b16 %v2157
  %v2359 = vunpack.c.h.b16 %v2157
  %v2360 = vunpack.c.l.b16 %v2158
  %v2361 = vunpack.c.h.b16 %v2158
  %v2362 = vunpack.c.l.b16 %v2159
  %v2363 = vunpack.c.h.b16 %v2159
  %v2364 = vunpack.c.l.b16 %v2160
  %v2365 = vunpack.c.h.b16 %v2160
  %v2366 = vunpack.c.l.b16 %v2161
  %v2367 = vunpack.c.h.b16 %v2161
  %v2368 = vunpack.c.l.b16 %v2162
  %v2369 = vunpack.c.h.b16 %v2162
  %v2370 = vunpack.c.l.b16 %v2163
  %v2371 = vunpack.c.h.b16 %v2163
  %v2372 = vunpack.c.l.b16 %v2164
  %v2373 = vunpack.c.h.b16 %v2164
  %v2374 = vunpack.c.l.b16 %v2165
  %v2375 = vunpack.c.h.b16 %v2165
  %v2376 = vunpack.c.l.b16 %v2166
  %v2377 = vunpack.c.h.b16 %v2166
  %v2378 = vunpack.c.l.b16 %v2167
  %v2379 = vunpack.c.h.b16 %v2167
  %v2380 = vunpack.c.l.b16 %v2168
  %v2381 = vunpack.c.h.b16 %v2168
  %v2382 = vunpack.c.l.b16 %v2169
  %v2383 = vunpack.c.h.b16 %v2169
  %v2384 = vpack.c.b16 %v2260, %v2256
  %v2385 = vpack.c.b16 %v2261, %v2257
  %v2386 = vpack.c.b16 %v2262, %v2258
  %v2387 = vpack.c.b16 %v2263, %v2259
  %v2388 = vpack.c.b16 %v2268, %v2264
  %v2389 = vpack.c.b16 %v2269, %v2265
  %v2390 = vpack.c.b16 %v2270, %v2266
  %v2391 = vpack.c.b16 %v2271, %v2267
  %v2392 = vpack.c.b16 %v2276, %v2272
  %v2393 = vpack.c.b16 %v2277, %v2273
  %v2394 = vpack.c.b16 %v2278, %v2274
  %v2395 = vpack.c.b16 %v2279, %v2275
  %v2396 = vpack.c.b16 %v2284, %v2280
  %v2397 = vpack.c.b16 %v2285, %v2281
  %v2398 = vpack.c.b16 %v2286, %v2282
  %v2399 = vpack.c.b16 %v2287, %v2283
  %v2400 = vpack.c.b16 %v2292, %v2288
  %v2401 = vpack.c.b16 %v2293, %v2289
  %v2402 = vpack.c.b16 %v2294, %v2290
  %v2403 = vpack.c.b16 %v2295, %v2291
  %v2404 = vpack.c.b16 %v2300, %v2296
  %v2405 = vpack.c.b16 %v2301, %v2297
  %v2406 = vpack.c.b16 %v2302, %v2298
  %v2407 = vpack.c.b16 %v2303, %v2299
  %v2408 = vpack.c.b16 %v2308, %v2304
  %v2409 = vpack.c.b16 %v2309, %v2305
  %v2410 = vpack.c.b16 %v2310, %v2306
  %v2411 = vpack.c.b16 %v2311, %v2307
  %v2412 = vpack.c.b16 %v2316, %v2312
  %v2413 = vpack.c.b16 %v2317, %v2313
  %v2414 = vpack.c.b16 %v2318, %v2314
  %v2415 = vpack.c.b16 %v2319, %v2315
  %v2416 = vpack.c.b16 %v2324, %v2320
  %v2417 = vpack.c.b16 %v2325, %v2321
  %v2418 = vpack.c.b16 %v2326, %v2322
  %v2419 = vpack.c.b16 %v2327, %v2323
  %v2420 = vpack.c.b16 %v2332, %v2328
  %v2421 = vpack.c.b16 %v2333, %v2329
  %v2422 = vpack.c.b16 %v2334, %v2330
  %v2423 = vpack.c.b16 %v2335, %v2331
  %v2424 = vpack.c.b16 %v2340, %v2336
  %v2425 = vpack.c.b16 %v2341, %v2337
  %v2426 = vpack.c.b16 %v2342, %v2338
  %v2427 = vpack.c.b16 %v2343, %v2339
  %v2428 = vpack.c.b16 %v2348, %v2344
  %v2429 = vpack.c.b16 %v2349, %v2345
  %v2430 = vpack.c.b16 %v2350, %v2346
  %v2431 = vpack.c.b16 %v2351, %v2347
  %v2432 = vpack.c.b16 %v2356, %v2352
  %v2433 = vpack.c.b16 %v2357, %v2353
  %v2434 = vpack.c.b16 %v2358, %v2354
  %v2435 = vpack.c.b16 %v2359, %v2355
  %v2436 = vpack.c.b16 %v2364, %v2360
  %v2437 = vpack.c.b16 %v2365, %v2361
  %v2438 = vpack.c.b16 %v2366, %v2362
  %v2439 = vpack.c.b16 %v2367, %v2363
  %v2440 = vpack.c.b16 %v2372, %v2368
  %v2441 = vpack.c.b16 %v2373, %v2369
  %v2442 = vpack.c.b16 %v2374, %v2370
  %v2443 = vpack.c.b16 %v2375, %v2371
  %v2444 = vpack.c.b16 %v2380, %v2376
  %v2445 = vpack.c.b16 %v2381, %v2377
  %v2446 = vpack.c.b16 %v2382, %v2378
  %v2447 = vpack.c.b16 %v2383, %v2379
  %2512 = vmatprep.subr.bf16.mxu0 %v2385
  %2513 = vmatpush1.bf16.msra.mxu0 %v2384
  %2514 = vmatprep.subr.bf16.mxu0 %v2389
  %2515 = vmatpush1.bf16.msra.mxu0 %v2388
  %2516 = vmatprep.subr.bf16.mxu0 %v2393
  %2517 = vmatpush1.bf16.msra.mxu0 %v2392
  %2518 = vmatprep.subr.bf16.mxu0 %v2397
  %2519 = vmatpush1.bf16.msra.mxu0 %v2396
  %2520 = vmatprep.subr.bf16.mxu0 %v2401
  %2521 = vmatpush1.bf16.msra.mxu0 %v2400
  %2522 = vmatprep.subr.bf16.mxu0 %v2405
  %2523 = vmatpush1.bf16.msra.mxu0 %v2404
  %2524 = vmatprep.subr.bf16.mxu0 %v2409
  %2525 = vmatpush1.bf16.msra.mxu0 %v2408
  %2526 = vmatprep.subr.bf16.mxu0 %v2413
  %2527 = vmatpush1.bf16.msra.mxu0 %v2412
  %2528 = vmatprep.subr.bf16.mxu0 %v2417
  %2529 = vmatpush1.bf16.msra.mxu0 %v2416
  %2530 = vmatprep.subr.bf16.mxu0 %v2421
  %2531 = vmatpush1.bf16.msra.mxu0 %v2420
  %2532 = vmatprep.subr.bf16.mxu0 %v2425
  %2533 = vmatpush1.bf16.msra.mxu0 %v2424
  %2534 = vmatprep.subr.bf16.mxu0 %v2429
  %2535 = vmatpush1.bf16.msra.mxu0 %v2428
  %2536 = vmatprep.subr.bf16.mxu0 %v2433
  %2537 = vmatpush1.bf16.msra.mxu0 %v2432
  %2538 = vmatprep.subr.bf16.mxu0 %v2437
  %2539 = vmatpush1.bf16.msra.mxu0 %v2436
  %2540 = vmatprep.subr.bf16.mxu0 %v2441
  %2541 = vmatpush1.bf16.msra.mxu0 %v2440
  %2542 = vmatprep.subr.bf16.mxu0 %v2445
  %2543 = vmatpush1.bf16.msra.mxu0 %v2444
  %2544 = vmatprep.mubr.bf16.mxu0 %v2105
  %2545 = vmatmul.mubr.bf16.gmra.mrb[0].mxu0 %v2103
  %v2546 = vpop.f32.mrb[0].mxu0
  %v2547 = vadd.f32 %v2175, %v2546
  %v2548 = vpop.f32.mrb[0].mxu0
  %v2549 = vadd.f32 %v2179, %v2548
  %v2550 = vpop.f32.mrb[0].mxu0
  %v2551 = vpop.f32.mrb[0].mxu0
  %2552 = vdwg.mxu0
  %2553 = vmatprep.subr.bf16.mxu0 %v2387
  %2554 = vmatpush1.bf16.msra.mxu0 %v2386
  %2555 = vmatprep.subr.bf16.mxu0 %v2391
  %2556 = vmatpush1.bf16.msra.mxu0 %v2390
  %2557 = vmatprep.subr.bf16.mxu0 %v2395
  %2558 = vmatpush1.bf16.msra.mxu0 %v2394
  %2559 = vmatprep.subr.bf16.mxu0 %v2399
  %2560 = vmatpush1.bf16.msra.mxu0 %v2398
  %2561 = vmatprep.subr.bf16.mxu0 %v2403
  %2562 = vmatpush1.bf16.msra.mxu0 %v2402
  %2563 = vmatprep.subr.bf16.mxu0 %v2407
  %2564 = vmatpush1.bf16.msra.mxu0 %v2406
  %2565 = vmatprep.subr.bf16.mxu0 %v2411
  %2566 = vmatpush1.bf16.msra.mxu0 %v2410
  %2567 = vmatprep.subr.bf16.mxu0 %v2415
  %2568 = vmatpush1.bf16.msra.mxu0 %v2414
  %2569 = vmatprep.subr.bf16.mxu0 %v2419
  %2570 = vmatpush1.bf16.msra.mxu0 %v2418
  %2571 = vmatprep.subr.bf16.mxu0 %v2423
  %2572 = vmatpush1.bf16.msra.mxu0 %v2422
  %2573 = vmatprep.subr.bf16.mxu0 %v2427
  %2574 = vmatpush1.bf16.msra.mxu0 %v2426
  %2575 = vmatprep.subr.bf16.mxu0 %v2431
  %2576 = vmatpush1.bf16.msra.mxu0 %v2430
  %2577 = vmatprep.subr.bf16.mxu0 %v2435
  %2578 = vmatpush1.bf16.msra.mxu0 %v2434
  %2579 = vmatprep.subr.bf16.mxu0 %v2439
  %2580 = vmatpush1.bf16.msra.mxu0 %v2438
  %2581 = vmatprep.subr.bf16.mxu0 %v2443
  %2582 = vmatpush1.bf16.msra.mxu0 %v2442
  %2583 = vmatprep.subr.bf16.mxu0 %v2447
  %2584 = vmatpush1.bf16.msra.mxu0 %v2446
  %2585 = vmatprep.mubr.bf16.mxu0 %v2105
  %2586 = vmatmul.mubr.bf16.gmra.mrb[0].mxu0 %v2103
  %v2587 = vpop.f32.mrb[0].mxu0
  %v2588 = vadd.f32 %v2183, %v2587
  %v2589 = vpop.f32.mrb[0].mxu0
  %v2590 = vadd.f32 %v2187, %v2589
  %v2591 = vpop.f32.mrb[0].mxu0
  %v2592 = vpop.f32.mrb[0].mxu0
  %2593 = vdwg.mxu0
  %v2594 = vxor.u32 %v2547, 2147483648
  %v2595 = vmul.f32 %v2594, 1.442695
  %v2596 = vpow.pop %v2595
  %v2597 = vadd.f32 %v2596, 1.0
  %v2598 = vrcp.pop %v2597
  %v2599 = vmul.f32 1.0, %v2598
  %v2600 = vxor.u32 %v2549, 2147483648
  %v2601 = vmul.f32 %v2600, 1.442695
  %v2602 = vpow.pop %v2601
  %v2603 = vadd.f32 %v2602, 1.0
  %v2604 = vrcp.pop %v2603
  %v2605 = vmul.f32 1.0, %v2604
  %v2606 = vtanh.pop %v2588
  %v2607 = vxor.u32 %v2590, 2147483648
  %v2608 = vmul.f32 %v2607, 1.442695
  %v2609 = vpow.pop %v2608
  %v2610 = vadd.f32 %v2609, 1.0
  %v2611 = vrcp.pop %v2610
  %v2612 = vmul.f32 1.0, %v2611
  %v2613 = vld [vmem:[#allocation3] sm:$0xff]
  %v2614 = vmul.f32 %v2605, %v2613
  %v2615 = vmul.f32 %v2599, %v2606
  %v2616 = vadd.f32 %v2614, %v2615
  %v2617 = vtanh.pop %v2616
  %v2618 = vmul.f32 %v2612, %v2617
  %2619 = vst [vmem:[#allocation3] sm:$0xff] %v2616
  %2620 = vst [vmem:[#allocation2] sm:$0xff] %v2618
  %v2621 = vpack.c.bf16 %v2618, %v2618
  %s2622 = scalar_lea.vmem %s3, 16
  %2623 = vst [vmem:[%s2622] sm:$0xf] %v2621
  %s2624 = scalar_lea.vmem %s0, 20
  %v2625 = vld [vmem:[%s2624] sm:$0xf]
  %v2626 = vld [vmem:[#allocation2] sm:$0xff]
  %v2627 = vpack.c.bf16 %v2626, %v2626
  %v2628 = vld [vmem:[%s1] sm:$0xff]
  %v2629 = vld [vmem:[%s1 + $0x8] sm:$0xff]
  %v2630 = vld [vmem:[%s1 + $0x10] sm:$0xff]
  %v2631 = vld [vmem:[%s1 + $0x18] sm:$0xff]
  %v2632 = vld [vmem:[%s1 + $0x20] sm:$0xff]
  %v2633 = vld [vmem:[%s1 + $0x28] sm:$0xff]
  %v2634 = vld [vmem:[%s1 + $0x30] sm:$0xff]
  %v2635 = vld [vmem:[%s1 + $0x38] sm:$0xff]
  %v2636 = vld [vmem:[%s1 + $0x40] sm:$0xff]
  %v2637 = vld [vmem:[%s1 + $0x48] sm:$0xff]
  %v2638 = vld [vmem:[%s1 + $0x50] sm:$0xff]
  %v2639 = vld [vmem:[%s1 + $0x58] sm:$0xff]
  %v2640 = vld [vmem:[%s1 + $0x60] sm:$0xff]
  %v2641 = vld [vmem:[%s1 + $0x68] sm:$0xff]
  %v2642 = vld [vmem:[%s1 + $0x70] sm:$0xff]
  %v2643 = vld [vmem:[%s1 + $0x78] sm:$0xff]
  %v2644 = vld [vmem:[%s1 + $0x80] sm:$0xff]
  %v2645 = vld [vmem:[%s1 + $0x88] sm:$0xff]
  %v2646 = vld [vmem:[%s1 + $0x90] sm:$0xff]
  %v2647 = vld [vmem:[%s1 + $0x98] sm:$0xff]
  %v2648 = vld [vmem:[%s1 + $0xa0] sm:$0xff]
  %v2649 = vld [vmem:[%s1 + $0xa8] sm:$0xff]
  %v2650 = vld [vmem:[%s1 + $0xb0] sm:$0xff]
  %v2651 = vld [vmem:[%s1 + $0xb8] sm:$0xff]
  %v2652 = vld [vmem:[%s1 + $0xc0] sm:$0xff]
  %v2653 = vld [vmem:[%s1 + $0xc8] sm:$0xff]
  %v2654 = vld [vmem:[%s1 + $0xd0] sm:$0xff]
  %v2655 = vld [vmem:[%s1 + $0xd8] sm:$0xff]
  %v2656 = vld [vmem:[%s1 + $0xe0] sm:$0xff]
  %v2657 = vld [vmem:[%s1 + $0xe8] sm:$0xff]
  %v2658 = vld [vmem:[%s1 + $0xf0] sm:$0xff]
  %v2659 = vld [vmem:[%s1 + $0xf8] sm:$0xff]
  %v2660 = vld [vmem:[%s1 + $0x100] sm:$0xff]
  %v2661 = vld [vmem:[%s1 + $0x108] sm:$0xff]
  %v2662 = vld [vmem:[%s1 + $0x110] sm:$0xff]
  %v2663 = vld [vmem:[%s1 + $0x118] sm:$0xff]
  %v2664 = vld [vmem:[%s1 + $0x120] sm:$0xff]
  %v2665 = vld [vmem:[%s1 + $0x128] sm:$0xff]
  %v2666 = vld [vmem:[%s1 + $0x130] sm:$0xff]
  %v2667 = vld [vmem:[%s1 + $0x138] sm:$0xff]
  %v2668 = vld [vmem:[%s1 + $0x140] sm:$0xff]
  %v2669 = vld [vmem:[%s1 + $0x148] sm:$0xff]
  %v2670 = vld [vmem:[%s1 + $0x150] sm:$0xff]
  %v2671 = vld [vmem:[%s1 + $0x158] sm:$0xff]
  %v2672 = vld [vmem:[%s1 + $0x160] sm:$0xff]
  %v2673 = vld [vmem:[%s1 + $0x168] sm:$0xff]
  %v2674 = vld [vmem:[%s1 + $0x170] sm:$0xff]
  %v2675 = vld [vmem:[%s1 + $0x178] sm:$0xff]
  %v2676 = vld [vmem:[%s1 + $0x180] sm:$0xff]
  %v2677 = vld [vmem:[%s1 + $0x188] sm:$0xff]
  %v2678 = vld [vmem:[%s1 + $0x190] sm:$0xff]
  %v2679 = vld [vmem:[%s1 + $0x198] sm:$0xff]
  %v2680 = vld [vmem:[%s1 + $0x1a0] sm:$0xff]
  %v2681 = vld [vmem:[%s1 + $0x1a8] sm:$0xff]
  %v2682 = vld [vmem:[%s1 + $0x1b0] sm:$0xff]
  %v2683 = vld [vmem:[%s1 + $0x1b8] sm:$0xff]
  %v2684 = vld [vmem:[%s1 + $0x1c0] sm:$0xff]
  %v2685 = vld [vmem:[%s1 + $0x1c8] sm:$0xff]
  %v2686 = vld [vmem:[%s1 + $0x1d0] sm:$0xff]
  %v2687 = vld [vmem:[%s1 + $0x1d8] sm:$0xff]
  %v2688 = vld [vmem:[%s1 + $0x1e0] sm:$0xff]
  %v2689 = vld [vmem:[%s1 + $0x1e8] sm:$0xff]
  %v2690 = vld [vmem:[%s1 + $0x1f0] sm:$0xff]
  %v2691 = vld [vmem:[%s1 + $0x1f8] sm:$0xff]
  %v2692 = vld [vmem:[%s2] sm:$0xf]
  %v2694 = vlaneseq
  %v2695 = vshrl.u32 %v2694, 7
  %v2696 = vsub.s32 0, %v2695
  %v2697 = vrot.slane %v2692, %v2696
  %v2698 = vlaneseq
  %v2699 = vshrl.u32 %v2698, 7
  %v2700 = vsub.s32 1, %v2699
  %v2701 = vrot.slane %v2692, %v2700
  %v2702 = vlaneseq
  %v2703 = vshrl.u32 %v2702, 7
  %v2704 = vsub.s32 2, %v2703
  %v2705 = vrot.slane %v2692, %v2704
  %v2706 = vlaneseq
  %v2707 = vshrl.u32 %v2706, 7
  %v2708 = vsub.s32 3, %v2707
  %v2709 = vrot.slane %v2692, %v2708
  %v2778 = vunpack.c.l.b16 %v2628
  %v2779 = vunpack.c.h.b16 %v2628
  %v2780 = vunpack.c.l.b16 %v2629
  %v2781 = vunpack.c.h.b16 %v2629
  %v2782 = vunpack.c.l.b16 %v2630
  %v2783 = vunpack.c.h.b16 %v2630
  %v2784 = vunpack.c.l.b16 %v2631
  %v2785 = vunpack.c.h.b16 %v2631
  %v2786 = vunpack.c.l.b16 %v2632
  %v2787 = vunpack.c.h.b16 %v2632
  %v2788 = vunpack.c.l.b16 %v2633
  %v2789 = vunpack.c.h.b16 %v2633
  %v2790 = vunpack.c.l.b16 %v2634
  %v2791 = vunpack.c.h.b16 %v2634
  %v2792 = vunpack.c.l.b16 %v2635
  %v2793 = vunpack.c.h.b16 %v2635
  %v2794 = vunpack.c.l.b16 %v2636
  %v2795 = vunpack.c.h.b16 %v2636
  %v2796 = vunpack.c.l.b16 %v2637
  %v2797 = vunpack.c.h.b16 %v2637
  %v2798 = vunpack.c.l.b16 %v2638
  %v2799 = vunpack.c.h.b16 %v2638
  %v2800 = vunpack.c.l.b16 %v2639
  %v2801 = vunpack.c.h.b16 %v2639
  %v2802 = vunpack.c.l.b16 %v2640
  %v2803 = vunpack.c.h.b16 %v2640
  %v2804 = vunpack.c.l.b16 %v2641
  %v2805 = vunpack.c.h.b16 %v2641
  %v2806 = vunpack.c.l.b16 %v2642
  %v2807 = vunpack.c.h.b16 %v2642
  %v2808 = vunpack.c.l.b16 %v2643
  %v2809 = vunpack.c.h.b16 %v2643
  %v2810 = vunpack.c.l.b16 %v2644
  %v2811 = vunpack.c.h.b16 %v2644
  %v2812 = vunpack.c.l.b16 %v2645
  %v2813 = vunpack.c.h.b16 %v2645
  %v2814 = vunpack.c.l.b16 %v2646
  %v2815 = vunpack.c.h.b16 %v2646
  %v2816 = vunpack.c.l.b16 %v2647
  %v2817 = vunpack.c.h.b16 %v2647
  %v2818 = vunpack.c.l.b16 %v2648
  %v2819 = vunpack.c.h.b16 %v2648
  %v2820 = vunpack.c.l.b16 %v2649
  %v2821 = vunpack.c.h.b16 %v2649
  %v2822 = vunpack.c.l.b16 %v2650
  %v2823 = vunpack.c.h.b16 %v2650
  %v2824 = vunpack.c.l.b16 %v2651
  %v2825 = vunpack.c.h.b16 %v2651
  %v2826 = vunpack.c.l.b16 %v2652
  %v2827 = vunpack.c.h.b16 %v2652
  %v2828 = vunpack.c.l.b16 %v2653
  %v2829 = vunpack.c.h.b16 %v2653
  %v2830 = vunpack.c.l.b16 %v2654
  %v2831 = vunpack.c.h.b16 %v2654
  %v2832 = vunpack.c.l.b16 %v2655
  %v2833 = vunpack.c.h.b16 %v2655
  %v2834 = vunpack.c.l.b16 %v2656
  %v2835 = vunpack.c.h.b16 %v2656
  %v2836 = vunpack.c.l.b16 %v2657
  %v2837 = vunpack.c.h.b16 %v2657
  %v2838 = vunpack.c.l.b16 %v2658
  %v2839 = vunpack.c.h.b16 %v2658
  %v2840 = vunpack.c.l.b16 %v2659
  %v2841 = vunpack.c.h.b16 %v2659
  %v2842 = vunpack.c.l.b16 %v2660
  %v2843 = vunpack.c.h.b16 %v2660
  %v2844 = vunpack.c.l.b16 %v2661
  %v2845 = vunpack.c.h.b16 %v2661
  %v2846 = vunpack.c.l.b16 %v2662
  %v2847 = vunpack.c.h.b16 %v2662
  %v2848 = vunpack.c.l.b16 %v2663
  %v2849 = vunpack.c.h.b16 %v2663
  %v2850 = vunpack.c.l.b16 %v2664
  %v2851 = vunpack.c.h.b16 %v2664
  %v2852 = vunpack.c.l.b16 %v2665
  %v2853 = vunpack.c.h.b16 %v2665
  %v2854 = vunpack.c.l.b16 %v2666
  %v2855 = vunpack.c.h.b16 %v2666
  %v2856 = vunpack.c.l.b16 %v2667
  %v2857 = vunpack.c.h.b16 %v2667
  %v2858 = vunpack.c.l.b16 %v2668
  %v2859 = vunpack.c.h.b16 %v2668
  %v2860 = vunpack.c.l.b16 %v2669
  %v2861 = vunpack.c.h.b16 %v2669
  %v2862 = vunpack.c.l.b16 %v2670
  %v2863 = vunpack.c.h.b16 %v2670
  %v2864 = vunpack.c.l.b16 %v2671
  %v2865 = vunpack.c.h.b16 %v2671
  %v2866 = vunpack.c.l.b16 %v2672
  %v2867 = vunpack.c.h.b16 %v2672
  %v2868 = vunpack.c.l.b16 %v2673
  %v2869 = vunpack.c.h.b16 %v2673
  %v2870 = vunpack.c.l.b16 %v2674
  %v2871 = vunpack.c.h.b16 %v2674
  %v2872 = vunpack.c.l.b16 %v2675
  %v2873 = vunpack.c.h.b16 %v2675
  %v2874 = vunpack.c.l.b16 %v2676
  %v2875 = vunpack.c.h.b16 %v2676
  %v2876 = vunpack.c.l.b16 %v2677
  %v2877 = vunpack.c.h.b16 %v2677
  %v2878 = vunpack.c.l.b16 %v2678
  %v2879 = vunpack.c.h.b16 %v2678
  %v2880 = vunpack.c.l.b16 %v2679
  %v2881 = vunpack.c.h.b16 %v2679
  %v2882 = vunpack.c.l.b16 %v2680
  %v2883 = vunpack.c.h.b16 %v2680
  %v2884 = vunpack.c.l.b16 %v2681
  %v2885 = vunpack.c.h.b16 %v2681
  %v2886 = vunpack.c.l.b16 %v2682
  %v2887 = vunpack.c.h.b16 %v2682
  %v2888 = vunpack.c.l.b16 %v2683
  %v2889 = vunpack.c.h.b16 %v2683
  %v2890 = vunpack.c.l.b16 %v2684
  %v2891 = vunpack.c.h.b16 %v2684
  %v2892 = vunpack.c.l.b16 %v2685
  %v2893 = vunpack.c.h.b16 %v2685
  %v2894 = vunpack.c.l.b16 %v2686
  %v2895 = vunpack.c.h.b16 %v2686
  %v2896 = vunpack.c.l.b16 %v2687
  %v2897 = vunpack.c.h.b16 %v2687
  %v2898 = vunpack.c.l.b16 %v2688
  %v2899 = vunpack.c.h.b16 %v2688
  %v2900 = vunpack.c.l.b16 %v2689
  %v2901 = vunpack.c.h.b16 %v2689
  %v2902 = vunpack.c.l.b16 %v2690
  %v2903 = vunpack.c.h.b16 %v2690
  %v2904 = vunpack.c.l.b16 %v2691
  %v2905 = vunpack.c.h.b16 %v2691
  %v2906 = vpack.c.b16 %v2782, %v2778
  %v2907 = vpack.c.b16 %v2783, %v2779
  %v2908 = vpack.c.b16 %v2784, %v2780
  %v2909 = vpack.c.b16 %v2785, %v2781
  %v2910 = vpack.c.b16 %v2790, %v2786
  %v2911 = vpack.c.b16 %v2791, %v2787
  %v2912 = vpack.c.b16 %v2792, %v2788
  %v2913 = vpack.c.b16 %v2793, %v2789
  %v2914 = vpack.c.b16 %v2798, %v2794
  %v2915 = vpack.c.b16 %v2799, %v2795
  %v2916 = vpack.c.b16 %v2800, %v2796
  %v2917 = vpack.c.b16 %v2801, %v2797
  %v2918 = vpack.c.b16 %v2806, %v2802
  %v2919 = vpack.c.b16 %v2807, %v2803
  %v2920 = vpack.c.b16 %v2808, %v2804
  %v2921 = vpack.c.b16 %v2809, %v2805
  %v2922 = vpack.c.b16 %v2814, %v2810
  %v2923 = vpack.c.b16 %v2815, %v2811
  %v2924 = vpack.c.b16 %v2816, %v2812
  %v2925 = vpack.c.b16 %v2817, %v2813
  %v2926 = vpack.c.b16 %v2822, %v2818
  %v2927 = vpack.c.b16 %v2823, %v2819
  %v2928 = vpack.c.b16 %v2824, %v2820
  %v2929 = vpack.c.b16 %v2825, %v2821
  %v2930 = vpack.c.b16 %v2830, %v2826
  %v2931 = vpack.c.b16 %v2831, %v2827
  %v2932 = vpack.c.b16 %v2832, %v2828
  %v2933 = vpack.c.b16 %v2833, %v2829
  %v2934 = vpack.c.b16 %v2838, %v2834
  %v2935 = vpack.c.b16 %v2839, %v2835
  %v2936 = vpack.c.b16 %v2840, %v2836
  %v2937 = vpack.c.b16 %v2841, %v2837
  %v2938 = vpack.c.b16 %v2846, %v2842
  %v2939 = vpack.c.b16 %v2847, %v2843
  %v2940 = vpack.c.b16 %v2848, %v2844
  %v2941 = vpack.c.b16 %v2849, %v2845
  %v2942 = vpack.c.b16 %v2854, %v2850
  %v2943 = vpack.c.b16 %v2855, %v2851
  %v2944 = vpack.c.b16 %v2856, %v2852
  %v2945 = vpack.c.b16 %v2857, %v2853
  %v2946 = vpack.c.b16 %v2862, %v2858
  %v2947 = vpack.c.b16 %v2863, %v2859
  %v2948 = vpack.c.b16 %v2864, %v2860
  %v2949 = vpack.c.b16 %v2865, %v2861
  %v2950 = vpack.c.b16 %v2870, %v2866
  %v2951 = vpack.c.b16 %v2871, %v2867
  %v2952 = vpack.c.b16 %v2872, %v2868
  %v2953 = vpack.c.b16 %v2873, %v2869
  %v2954 = vpack.c.b16 %v2878, %v2874
  %v2955 = vpack.c.b16 %v2879, %v2875
  %v2956 = vpack.c.b16 %v2880, %v2876
  %v2957 = vpack.c.b16 %v2881, %v2877
  %v2958 = vpack.c.b16 %v2886, %v2882
  %v2959 = vpack.c.b16 %v2887, %v2883
  %v2960 = vpack.c.b16 %v2888, %v2884
  %v2961 = vpack.c.b16 %v2889, %v2885
  %v2962 = vpack.c.b16 %v2894, %v2890
  %v2963 = vpack.c.b16 %v2895, %v2891
  %v2964 = vpack.c.b16 %v2896, %v2892
  %v2965 = vpack.c.b16 %v2897, %v2893
  %v2966 = vpack.c.b16 %v2902, %v2898
  %v2967 = vpack.c.b16 %v2903, %v2899
  %v2968 = vpack.c.b16 %v2904, %v2900
  %v2969 = vpack.c.b16 %v2905, %v2901
  %3034 = vmatprep.subr.bf16.mxu0 %v2907
  %3035 = vmatpush1.bf16.msra.mxu0 %v2906
  %3036 = vmatprep.subr.bf16.mxu0 %v2911
  %3037 = vmatpush1.bf16.msra.mxu0 %v2910
  %3038 = vmatprep.subr.bf16.mxu0 %v2915
  %3039 = vmatpush1.bf16.msra.mxu0 %v2914
  %3040 = vmatprep.subr.bf16.mxu0 %v2919
  %3041 = vmatpush1.bf16.msra.mxu0 %v2918
  %3042 = vmatprep.subr.bf16.mxu0 %v2923
  %3043 = vmatpush1.bf16.msra.mxu0 %v2922
  %3044 = vmatprep.subr.bf16.mxu0 %v2927
  %3045 = vmatpush1.bf16.msra.mxu0 %v2926
  %3046 = vmatprep.subr.bf16.mxu0 %v2931
  %3047 = vmatpush1.bf16.msra.mxu0 %v2930
  %3048 = vmatprep.subr.bf16.mxu0 %v2935
  %3049 = vmatpush1.bf16.msra.mxu0 %v2934
  %3050 = vmatprep.subr.bf16.mxu0 %v2939
  %3051 = vmatpush1.bf16.msra.mxu0 %v2938
  %3052 = vmatprep.subr.bf16.mxu0 %v2943
  %3053 = vmatpush1.bf16.msra.mxu0 %v2942
  %3054 = vmatprep.subr.bf16.mxu0 %v2947
  %3055 = vmatpush1.bf16.msra.mxu0 %v2946
  %3056 = vmatprep.subr.bf16.mxu0 %v2951
  %3057 = vmatpush1.bf16.msra.mxu0 %v2950
  %3058 = vmatprep.subr.bf16.mxu0 %v2955
  %3059 = vmatpush1.bf16.msra.mxu0 %v2954
  %3060 = vmatprep.subr.bf16.mxu0 %v2959
  %3061 = vmatpush1.bf16.msra.mxu0 %v2958
  %3062 = vmatprep.subr.bf16.mxu0 %v2963
  %3063 = vmatpush1.bf16.msra.mxu0 %v2962
  %3064 = vmatprep.subr.bf16.mxu0 %v2967
  %3065 = vmatpush1.bf16.msra.mxu0 %v2966
  %3066 = vmatprep.mubr.bf16.mxu0 %v2627
  %3067 = vmatmul.mubr.bf16.gmra.mrb[0].mxu0 %v2625
  %v3068 = vpop.f32.mrb[0].mxu0
  %v3069 = vadd.f32 %v2697, %v3068
  %v3070 = vpop.f32.mrb[0].mxu0
  %v3071 = vadd.f32 %v2701, %v3070
  %v3072 = vpop.f32.mrb[0].mxu0
  %v3073 = vpop.f32.mrb[0].mxu0
  %3074 = vdwg.mxu0
  %3075 = vmatprep.subr.bf16.mxu0 %v2909
  %3076 = vmatpush1.bf16.msra.mxu0 %v2908
  %3077 = vmatprep.subr.bf16.mxu0 %v2913
  %3078 = vmatpush1.bf16.msra.mxu0 %v2912
  %3079 = vmatprep.subr.bf16.mxu0 %v2917
  %3080 = vmatpush1.bf16.msra.mxu0 %v2916
  %3081 = vmatprep.subr.bf16.mxu0 %v2921
  %3082 = vmatpush1.bf16.msra.mxu0 %v2920
  %3083 = vmatprep.subr.bf16.mxu0 %v2925
  %3084 = vmatpush1.bf16.msra.mxu0 %v2924
  %3085 = vmatprep.subr.bf16.mxu0 %v2929
  %3086 = vmatpush1.bf16.msra.mxu0 %v2928
  %3087 = vmatprep.subr.bf16.mxu0 %v2933
  %3088 = vmatpush1.bf16.msra.mxu0 %v2932
  %3089 = vmatprep.subr.bf16.mxu0 %v2937
  %3090 = vmatpush1.bf16.msra.mxu0 %v2936
  %3091 = vmatprep.subr.bf16.mxu0 %v2941
  %3092 = vmatpush1.bf16.msra.mxu0 %v2940
  %3093 = vmatprep.subr.bf16.mxu0 %v2945
  %3094 = vmatpush1.bf16.msra.mxu0 %v2944
  %3095 = vmatprep.subr.bf16.mxu0 %v2949
  %3096 = vmatpush1.bf16.msra.mxu0 %v2948
  %3097 = vmatprep.subr.bf16.mxu0 %v2953
  %3098 = vmatpush1.bf16.msra.mxu0 %v2952
  %3099 = vmatprep.subr.bf16.mxu0 %v2957
  %3100 = vmatpush1.bf16.msra.mxu0 %v2956
  %3101 = vmatprep.subr.bf16.mxu0 %v2961
  %3102 = vmatpush1.bf16.msra.mxu0 %v2960
  %3103 = vmatprep.subr.bf16.mxu0 %v2965
  %3104 = vmatpush1.bf16.msra.mxu0 %v2964
  %3105 = vmatprep.subr.bf16.mxu0 %v2969
  %3106 = vmatpush1.bf16.msra.mxu0 %v2968
  %3107 = vmatprep.mubr.bf16.mxu0 %v2627
  %3108 = vmatmul.mubr.bf16.gmra.mrb[0].mxu0 %v2625
  %v3109 = vpop.f32.mrb[0].mxu0
  %v3110 = vadd.f32 %v2705, %v3109
  %v3111 = vpop.f32.mrb[0].mxu0
  %v3112 = vadd.f32 %v2709, %v3111
  %v3113 = vpop.f32.mrb[0].mxu0
  %v3114 = vpop.f32.mrb[0].mxu0
  %3115 = vdwg.mxu0
  %v3116 = vxor.u32 %v3069, 2147483648
  %v3117 = vmul.f32 %v3116, 1.442695
  %v3118 = vpow.pop %v3117
  %v3119 = vadd.f32 %v3118, 1.0
  %v3120 = vrcp.pop %v3119
  %v3121 = vmul.f32 1.0, %v3120
  %v3122 = vxor.u32 %v3071, 2147483648
  %v3123 = vmul.f32 %v3122, 1.442695
  %v3124 = vpow.pop %v3123
  %v3125 = vadd.f32 %v3124, 1.0
  %v3126 = vrcp.pop %v3125
  %v3127 = vmul.f32 1.0, %v3126
  %v3128 = vtanh.pop %v3110
  %v3129 = vxor.u32 %v3112, 2147483648
  %v3130 = vmul.f32 %v3129, 1.442695
  %v3131 = vpow.pop %v3130
  %v3132 = vadd.f32 %v3131, 1.0
  %v3133 = vrcp.pop %v3132
  %v3134 = vmul.f32 1.0, %v3133
  %v3135 = vld [vmem:[#allocation3] sm:$0xff]
  %v3136 = vmul.f32 %v3127, %v3135
  %v3137 = vmul.f32 %v3121, %v3128
  %v3138 = vadd.f32 %v3136, %v3137
  %v3139 = vtanh.pop %v3138
  %v3140 = vmul.f32 %v3134, %v3139
  %3141 = vst [vmem:[#allocation3] sm:$0xff] %v3138
  %3142 = vst [vmem:[#allocation2] sm:$0xff] %v3140
  %v3143 = vpack.c.bf16 %v3140, %v3140
  %s3144 = scalar_lea.vmem %s3, 20
  %3145 = vst [vmem:[%s3144] sm:$0xf] %v3143
  %s3146 = scalar_lea.vmem %s0, 24
  %v3147 = vld [vmem:[%s3146] sm:$0xf]
  %v3148 = vld [vmem:[#allocation2] sm:$0xff]
  %v3149 = vpack.c.bf16 %v3148, %v3148
  %v3150 = vld [vmem:[%s1] sm:$0xff]
  %v3151 = vld [vmem:[%s1 + $0x8] sm:$0xff]
  %v3152 = vld [vmem:[%s1 + $0x10] sm:$0xff]
  %v3153 = vld [vmem:[%s1 + $0x18] sm:$0xff]
  %v3154 = vld [vmem:[%s1 + $0x20] sm:$0xff]
  %v3155 = vld [vmem:[%s1 + $0x28] sm:$0xff]
  %v3156 = vld [vmem:[%s1 + $0x30] sm:$0xff]
  %v3157 = vld [vmem:[%s1 + $0x38] sm:$0xff]
  %v3158 = vld [vmem:[%s1 + $0x40] sm:$0xff]
  %v3159 = vld [vmem:[%s1 + $0x48] sm:$0xff]
  %v3160 = vld [vmem:[%s1 + $0x50] sm:$0xff]
  %v3161 = vld [vmem:[%s1 + $0x58] sm:$0xff]
  %v3162 = vld [vmem:[%s1 + $0x60] sm:$0xff]
  %v3163 = vld [vmem:[%s1 + $0x68] sm:$0xff]
  %v3164 = vld [vmem:[%s1 + $0x70] sm:$0xff]
  %v3165 = vld [vmem:[%s1 + $0x78] sm:$0xff]
  %v3166 = vld [vmem:[%s1 + $0x80] sm:$0xff]
  %v3167 = vld [vmem:[%s1 + $0x88] sm:$0xff]
  %v3168 = vld [vmem:[%s1 + $0x90] sm:$0xff]
  %v3169 = vld [vmem:[%s1 + $0x98] sm:$0xff]
  %v3170 = vld [vmem:[%s1 + $0xa0] sm:$0xff]
  %v3171 = vld [vmem:[%s1 + $0xa8] sm:$0xff]
  %v3172 = vld [vmem:[%s1 + $0xb0] sm:$0xff]
  %v3173 = vld [vmem:[%s1 + $0xb8] sm:$0xff]
  %v3174 = vld [vmem:[%s1 + $0xc0] sm:$0xff]
  %v3175 = vld [vmem:[%s1 + $0xc8] sm:$0xff]
  %v3176 = vld [vmem:[%s1 + $0xd0] sm:$0xff]
  %v3177 = vld [vmem:[%s1 + $0xd8] sm:$0xff]
  %v3178 = vld [vmem:[%s1 + $0xe0] sm:$0xff]
  %v3179 = vld [vmem:[%s1 + $0xe8] sm:$0xff]
  %v3180 = vld [vmem:[%s1 + $0xf0] sm:$0xff]
  %v3181 = vld [vmem:[%s1 + $0xf8] sm:$0xff]
  %v3182 = vld [vmem:[%s1 + $0x100] sm:$0xff]
  %v3183 = vld [vmem:[%s1 + $0x108] sm:$0xff]
  %v3184 = vld [vmem:[%s1 + $0x110] sm:$0xff]
  %v3185 = vld [vmem:[%s1 + $0x118] sm:$0xff]
  %v3186 = vld [vmem:[%s1 + $0x120] sm:$0xff]
  %v3187 = vld [vmem:[%s1 + $0x128] sm:$0xff]
  %v3188 = vld [vmem:[%s1 + $0x130] sm:$0xff]
  %v3189 = vld [vmem:[%s1 + $0x138] sm:$0xff]
  %v3190 = vld [vmem:[%s1 + $0x140] sm:$0xff]
  %v3191 = vld [vmem:[%s1 + $0x148] sm:$0xff]
  %v3192 = vld [vmem:[%s1 + $0x150] sm:$0xff]
  %v3193 = vld [vmem:[%s1 + $0x158] sm:$0xff]
  %v3194 = vld [vmem:[%s1 + $0x160] sm:$0xff]
  %v3195 = vld [vmem:[%s1 + $0x168] sm:$0xff]
  %v3196 = vld [vmem:[%s1 + $0x170] sm:$0xff]
  %v3197 = vld [vmem:[%s1 + $0x178] sm:$0xff]
  %v3198 = vld [vmem:[%s1 + $0x180] sm:$0xff]
  %v3199 = vld [vmem:[%s1 + $0x188] sm:$0xff]
  %v3200 = vld [vmem:[%s1 + $0x190] sm:$0xff]
  %v3201 = vld [vmem:[%s1 + $0x198] sm:$0xff]
  %v3202 = vld [vmem:[%s1 + $0x1a0] sm:$0xff]
  %v3203 = vld [vmem:[%s1 + $0x1a8] sm:$0xff]
  %v3204 = vld [vmem:[%s1 + $0x1b0] sm:$0xff]
  %v3205 = vld [vmem:[%s1 + $0x1b8] sm:$0xff]
  %v3206 = vld [vmem:[%s1 + $0x1c0] sm:$0xff]
  %v3207 = vld [vmem:[%s1 + $0x1c8] sm:$0xff]
  %v3208 = vld [vmem:[%s1 + $0x1d0] sm:$0xff]
  %v3209 = vld [vmem:[%s1 + $0x1d8] sm:$0xff]
  %v3210 = vld [vmem:[%s1 + $0x1e0] sm:$0xff]
  %v3211 = vld [vmem:[%s1 + $0x1e8] sm:$0xff]
  %v3212 = vld [vmem:[%s1 + $0x1f0] sm:$0xff]
  %v3213 = vld [vmem:[%s1 + $0x1f8] sm:$0xff]
  %v3214 = vld [vmem:[%s2] sm:$0xf]
  %v3216 = vlaneseq
  %v3217 = vshrl.u32 %v3216, 7
  %v3218 = vsub.s32 0, %v3217
  %v3219 = vrot.slane %v3214, %v3218
  %v3220 = vlaneseq
  %v3221 = vshrl.u32 %v3220, 7
  %v3222 = vsub.s32 1, %v3221
  %v3223 = vrot.slane %v3214, %v3222
  %v3224 = vlaneseq
  %v3225 = vshrl.u32 %v3224, 7
  %v3226 = vsub.s32 2, %v3225
  %v3227 = vrot.slane %v3214, %v3226
  %v3228 = vlaneseq
  %v3229 = vshrl.u32 %v3228, 7
  %v3230 = vsub.s32 3, %v3229
  %v3231 = vrot.slane %v3214, %v3230
  %v3300 = vunpack.c.l.b16 %v3150
  %v3301 = vunpack.c.h.b16 %v3150
  %v3302 = vunpack.c.l.b16 %v3151
  %v3303 = vunpack.c.h.b16 %v3151
  %v3304 = vunpack.c.l.b16 %v3152
  %v3305 = vunpack.c.h.b16 %v3152
  %v3306 = vunpack.c.l.b16 %v3153
  %v3307 = vunpack.c.h.b16 %v3153
  %v3308 = vunpack.c.l.b16 %v3154
  %v3309 = vunpack.c.h.b16 %v3154
  %v3310 = vunpack.c.l.b16 %v3155
  %v3311 = vunpack.c.h.b16 %v3155
  %v3312 = vunpack.c.l.b16 %v3156
  %v3313 = vunpack.c.h.b16 %v3156
  %v3314 = vunpack.c.l.b16 %v3157
  %v3315 = vunpack.c.h.b16 %v3157
  %v3316 = vunpack.c.l.b16 %v3158
  %v3317 = vunpack.c.h.b16 %v3158
  %v3318 = vunpack.c.l.b16 %v3159
  %v3319 = vunpack.c.h.b16 %v3159
  %v3320 = vunpack.c.l.b16 %v3160
  %v3321 = vunpack.c.h.b16 %v3160
  %v3322 = vunpack.c.l.b16 %v3161
  %v3323 = vunpack.c.h.b16 %v3161
  %v3324 = vunpack.c.l.b16 %v3162
  %v3325 = vunpack.c.h.b16 %v3162
  %v3326 = vunpack.c.l.b16 %v3163
  %v3327 = vunpack.c.h.b16 %v3163
  %v3328 = vunpack.c.l.b16 %v3164
  %v3329 = vunpack.c.h.b16 %v3164
  %v3330 = vunpack.c.l.b16 %v3165
  %v3331 = vunpack.c.h.b16 %v3165
  %v3332 = vunpack.c.l.b16 %v3166
  %v3333 = vunpack.c.h.b16 %v3166
  %v3334 = vunpack.c.l.b16 %v3167
  %v3335 = vunpack.c.h.b16 %v3167
  %v3336 = vunpack.c.l.b16 %v3168
  %v3337 = vunpack.c.h.b16 %v3168
  %v3338 = vunpack.c.l.b16 %v3169
  %v3339 = vunpack.c.h.b16 %v3169
  %v3340 = vunpack.c.l.b16 %v3170
  %v3341 = vunpack.c.h.b16 %v3170
  %v3342 = vunpack.c.l.b16 %v3171
  %v3343 = vunpack.c.h.b16 %v3171
  %v3344 = vunpack.c.l.b16 %v3172
  %v3345 = vunpack.c.h.b16 %v3172
  %v3346 = vunpack.c.l.b16 %v3173
  %v3347 = vunpack.c.h.b16 %v3173
  %v3348 = vunpack.c.l.b16 %v3174
  %v3349 = vunpack.c.h.b16 %v3174
  %v3350 = vunpack.c.l.b16 %v3175
  %v3351 = vunpack.c.h.b16 %v3175
  %v3352 = vunpack.c.l.b16 %v3176
  %v3353 = vunpack.c.h.b16 %v3176
  %v3354 = vunpack.c.l.b16 %v3177
  %v3355 = vunpack.c.h.b16 %v3177
  %v3356 = vunpack.c.l.b16 %v3178
  %v3357 = vunpack.c.h.b16 %v3178
  %v3358 = vunpack.c.l.b16 %v3179
  %v3359 = vunpack.c.h.b16 %v3179
  %v3360 = vunpack.c.l.b16 %v3180
  %v3361 = vunpack.c.h.b16 %v3180
  %v3362 = vunpack.c.l.b16 %v3181
  %v3363 = vunpack.c.h.b16 %v3181
  %v3364 = vunpack.c.l.b16 %v3182
  %v3365 = vunpack.c.h.b16 %v3182
  %v3366 = vunpack.c.l.b16 %v3183
  %v3367 = vunpack.c.h.b16 %v3183
  %v3368 = vunpack.c.l.b16 %v3184
  %v3369 = vunpack.c.h.b16 %v3184
  %v3370 = vunpack.c.l.b16 %v3185
  %v3371 = vunpack.c.h.b16 %v3185
  %v3372 = vunpack.c.l.b16 %v3186
  %v3373 = vunpack.c.h.b16 %v3186
  %v3374 = vunpack.c.l.b16 %v3187
  %v3375 = vunpack.c.h.b16 %v3187
  %v3376 = vunpack.c.l.b16 %v3188
  %v3377 = vunpack.c.h.b16 %v3188
  %v3378 = vunpack.c.l.b16 %v3189
  %v3379 = vunpack.c.h.b16 %v3189
  %v3380 = vunpack.c.l.b16 %v3190
  %v3381 = vunpack.c.h.b16 %v3190
  %v3382 = vunpack.c.l.b16 %v3191
  %v3383 = vunpack.c.h.b16 %v3191
  %v3384 = vunpack.c.l.b16 %v3192
  %v3385 = vunpack.c.h.b16 %v3192
  %v3386 = vunpack.c.l.b16 %v3193
  %v3387 = vunpack.c.h.b16 %v3193
  %v3388 = vunpack.c.l.b16 %v3194
  %v3389 = vunpack.c.h.b16 %v3194
  %v3390 = vunpack.c.l.b16 %v3195
  %v3391 = vunpack.c.h.b16 %v3195
  %v3392 = vunpack.c.l.b16 %v3196
  %v3393 = vunpack.c.h.b16 %v3196
  %v3394 = vunpack.c.l.b16 %v3197
  %v3395 = vunpack.c.h.b16 %v3197
  %v3396 = vunpack.c.l.b16 %v3198
  %v3397 = vunpack.c.h.b16 %v3198
  %v3398 = vunpack.c.l.b16 %v3199
  %v3399 = vunpack.c.h.b16 %v3199
  %v3400 = vunpack.c.l.b16 %v3200
  %v3401 = vunpack.c.h.b16 %v3200
  %v3402 = vunpack.c.l.b16 %v3201
  %v3403 = vunpack.c.h.b16 %v3201
  %v3404 = vunpack.c.l.b16 %v3202
  %v3405 = vunpack.c.h.b16 %v3202
  %v3406 = vunpack.c.l.b16 %v3203
  %v3407 = vunpack.c.h.b16 %v3203
  %v3408 = vunpack.c.l.b16 %v3204
  %v3409 = vunpack.c.h.b16 %v3204
  %v3410 = vunpack.c.l.b16 %v3205
  %v3411 = vunpack.c.h.b16 %v3205
  %v3412 = vunpack.c.l.b16 %v3206
  %v3413 = vunpack.c.h.b16 %v3206
  %v3414 = vunpack.c.l.b16 %v3207
  %v3415 = vunpack.c.h.b16 %v3207
  %v3416 = vunpack.c.l.b16 %v3208
  %v3417 = vunpack.c.h.b16 %v3208
  %v3418 = vunpack.c.l.b16 %v3209
  %v3419 = vunpack.c.h.b16 %v3209
  %v3420 = vunpack.c.l.b16 %v3210
  %v3421 = vunpack.c.h.b16 %v3210
  %v3422 = vunpack.c.l.b16 %v3211
  %v3423 = vunpack.c.h.b16 %v3211
  %v3424 = vunpack.c.l.b16 %v3212
  %v3425 = vunpack.c.h.b16 %v3212
  %v3426 = vunpack.c.l.b16 %v3213
  %v3427 = vunpack.c.h.b16 %v3213
  %v3428 = vpack.c.b16 %v3304, %v3300
  %v3429 = vpack.c.b16 %v3305, %v3301
  %v3430 = vpack.c.b16 %v3306, %v3302
  %v3431 = vpack.c.b16 %v3307, %v3303
  %v3432 = vpack.c.b16 %v3312, %v3308
  %v3433 = vpack.c.b16 %v3313, %v3309
  %v3434 = vpack.c.b16 %v3314, %v3310
  %v3435 = vpack.c.b16 %v3315, %v3311
  %v3436 = vpack.c.b16 %v3320, %v3316
  %v3437 = vpack.c.b16 %v3321, %v3317
  %v3438 = vpack.c.b16 %v3322, %v3318
  %v3439 = vpack.c.b16 %v3323, %v3319
  %v3440 = vpack.c.b16 %v3328, %v3324
  %v3441 = vpack.c.b16 %v3329, %v3325
  %v3442 = vpack.c.b16 %v3330, %v3326
  %v3443 = vpack.c.b16 %v3331, %v3327
  %v3444 = vpack.c.b16 %v3336, %v3332
  %v3445 = vpack.c.b16 %v3337, %v3333
  %v3446 = vpack.c.b16 %v3338, %v3334
  %v3447 = vpack.c.b16 %v3339, %v3335
  %v3448 = vpack.c.b16 %v3344, %v3340
  %v3449 = vpack.c.b16 %v3345, %v3341
  %v3450 = vpack.c.b16 %v3346, %v3342
  %v3451 = vpack.c.b16 %v3347, %v3343
  %v3452 = vpack.c.b16 %v3352, %v3348
  %v3453 = vpack.c.b16 %v3353, %v3349
  %v3454 = vpack.c.b16 %v3354, %v3350
  %v3455 = vpack.c.b16 %v3355, %v3351
  %v3456 = vpack.c.b16 %v3360, %v3356
  %v3457 = vpack.c.b16 %v3361, %v3357
  %v3458 = vpack.c.b16 %v3362, %v3358
  %v3459 = vpack.c.b16 %v3363, %v3359
  %v3460 = vpack.c.b16 %v3368, %v3364
  %v3461 = vpack.c.b16 %v3369, %v3365
  %v3462 = vpack.c.b16 %v3370, %v3366
  %v3463 = vpack.c.b16 %v3371, %v3367
  %v3464 = vpack.c.b16 %v3376, %v3372
  %v3465 = vpack.c.b16 %v3377, %v3373
  %v3466 = vpack.c.b16 %v3378, %v3374
  %v3467 = vpack.c.b16 %v3379, %v3375
  %v3468 = vpack.c.b16 %v3384, %v3380
  %v3469 = vpack.c.b16 %v3385, %v3381
  %v3470 = vpack.c.b16 %v3386, %v3382
  %v3471 = vpack.c.b16 %v3387, %v3383
  %v3472 = vpack.c.b16 %v3392, %v3388
  %v3473 = vpack.c.b16 %v3393, %v3389
  %v3474 = vpack.c.b16 %v3394, %v3390
  %v3475 = vpack.c.b16 %v3395, %v3391
  %v3476 = vpack.c.b16 %v3400, %v3396
  %v3477 = vpack.c.b16 %v3401, %v3397
  %v3478 = vpack.c.b16 %v3402, %v3398
  %v3479 = vpack.c.b16 %v3403, %v3399
  %v3480 = vpack.c.b16 %v3408, %v3404
  %v3481 = vpack.c.b16 %v3409, %v3405
  %v3482 = vpack.c.b16 %v3410, %v3406
  %v3483 = vpack.c.b16 %v3411, %v3407
  %v3484 = vpack.c.b16 %v3416, %v3412
  %v3485 = vpack.c.b16 %v3417, %v3413
  %v3486 = vpack.c.b16 %v3418, %v3414
  %v3487 = vpack.c.b16 %v3419, %v3415
  %v3488 = vpack.c.b16 %v3424, %v3420
  %v3489 = vpack.c.b16 %v3425, %v3421
  %v3490 = vpack.c.b16 %v3426, %v3422
  %v3491 = vpack.c.b16 %v3427, %v3423
  %3556 = vmatprep.subr.bf16.mxu0 %v3429
  %3557 = vmatpush1.bf16.msra.mxu0 %v3428
  %3558 = vmatprep.subr.bf16.mxu0 %v3433
  %3559 = vmatpush1.bf16.msra.mxu0 %v3432
  %3560 = vmatprep.subr.bf16.mxu0 %v3437
  %3561 = vmatpush1.bf16.msra.mxu0 %v3436
  %3562 = vmatprep.subr.bf16.mxu0 %v3441
  %3563 = vmatpush1.bf16.msra.mxu0 %v3440
  %3564 = vmatprep.subr.bf16.mxu0 %v3445
  %3565 = vmatpush1.bf16.msra.mxu0 %v3444
  %3566 = vmatprep.subr.bf16.mxu0 %v3449
  %3567 = vmatpush1.bf16.msra.mxu0 %v3448
  %3568 = vmatprep.subr.bf16.mxu0 %v3453
  %3569 = vmatpush1.bf16.msra.mxu0 %v3452
  %3570 = vmatprep.subr.bf16.mxu0 %v3457
  %3571 = vmatpush1.bf16.msra.mxu0 %v3456
  %3572 = vmatprep.subr.bf16.mxu0 %v3461
  %3573 = vmatpush1.bf16.msra.mxu0 %v3460
  %3574 = vmatprep.subr.bf16.mxu0 %v3465
  %3575 = vmatpush1.bf16.msra.mxu0 %v3464
  %3576 = vmatprep.subr.bf16.mxu0 %v3469
  %3577 = vmatpush1.bf16.msra.mxu0 %v3468
  %3578 = vmatprep.subr.bf16.mxu0 %v3473
  %3579 = vmatpush1.bf16.msra.mxu0 %v3472
  %3580 = vmatprep.subr.bf16.mxu0 %v3477
  %3581 = vmatpush1.bf16.msra.mxu0 %v3476
  %3582 = vmatprep.subr.bf16.mxu0 %v3481
  %3583 = vmatpush1.bf16.msra.mxu0 %v3480
  %3584 = vmatprep.subr.bf16.mxu0 %v3485
  %3585 = vmatpush1.bf16.msra.mxu0 %v3484
  %3586 = vmatprep.subr.bf16.mxu0 %v3489
  %3587 = vmatpush1.bf16.msra.mxu0 %v3488
  %3588 = vmatprep.mubr.bf16.mxu0 %v3149
  %3589 = vmatmul.mubr.bf16.gmra.mrb[0].mxu0 %v3147
  %v3590 = vpop.f32.mrb[0].mxu0
  %v3591 = vadd.f32 %v3219, %v3590
  %v3592 = vpop.f32.mrb[0].mxu0
  %v3593 = vadd.f32 %v3223, %v3592
  %v3594 = vpop.f32.mrb[0].mxu0
  %v3595 = vpop.f32.mrb[0].mxu0
  %3596 = vdwg.mxu0
  %3597 = vmatprep.subr.bf16.mxu0 %v3431
  %3598 = vmatpush1.bf16.msra.mxu0 %v3430
  %3599 = vmatprep.subr.bf16.mxu0 %v3435
  %3600 = vmatpush1.bf16.msra.mxu0 %v3434
  %3601 = vmatprep.subr.bf16.mxu0 %v3439
  %3602 = vmatpush1.bf16.msra.mxu0 %v3438
  %3603 = vmatprep.subr.bf16.mxu0 %v3443
  %3604 = vmatpush1.bf16.msra.mxu0 %v3442
  %3605 = vmatprep.subr.bf16.mxu0 %v3447
  %3606 = vmatpush1.bf16.msra.mxu0 %v3446
  %3607 = vmatprep.subr.bf16.mxu0 %v3451
  %3608 = vmatpush1.bf16.msra.mxu0 %v3450
  %3609 = vmatprep.subr.bf16.mxu0 %v3455
  %3610 = vmatpush1.bf16.msra.mxu0 %v3454
  %3611 = vmatprep.subr.bf16.mxu0 %v3459
  %3612 = vmatpush1.bf16.msra.mxu0 %v3458
  %3613 = vmatprep.subr.bf16.mxu0 %v3463
  %3614 = vmatpush1.bf16.msra.mxu0 %v3462
  %3615 = vmatprep.subr.bf16.mxu0 %v3467
  %3616 = vmatpush1.bf16.msra.mxu0 %v3466
  %3617 = vmatprep.subr.bf16.mxu0 %v3471
  %3618 = vmatpush1.bf16.msra.mxu0 %v3470
  %3619 = vmatprep.subr.bf16.mxu0 %v3475
  %3620 = vmatpush1.bf16.msra.mxu0 %v3474
  %3621 = vmatprep.subr.bf16.mxu0 %v3479
  %3622 = vmatpush1.bf16.msra.mxu0 %v3478
  %3623 = vmatprep.subr.bf16.mxu0 %v3483
  %3624 = vmatpush1.bf16.msra.mxu0 %v3482
  %3625 = vmatprep.subr.bf16.mxu0 %v3487
  %3626 = vmatpush1.bf16.msra.mxu0 %v3486
  %3627 = vmatprep.subr.bf16.mxu0 %v3491
  %3628 = vmatpush1.bf16.msra.mxu0 %v3490
  %3629 = vmatprep.mubr.bf16.mxu0 %v3149
  %3630 = vmatmul.mubr.bf16.gmra.mrb[0].mxu0 %v3147
  %v3631 = vpop.f32.mrb[0].mxu0
  %v3632 = vadd.f32 %v3227, %v3631
  %v3633 = vpop.f32.mrb[0].mxu0
  %v3634 = vadd.f32 %v3231, %v3633
  %v3635 = vpop.f32.mrb[0].mxu0
  %v3636 = vpop.f32.mrb[0].mxu0
  %3637 = vdwg.mxu0
  %v3638 = vxor.u32 %v3591, 2147483648
  %v3639 = vmul.f32 %v3638, 1.442695
  %v3640 = vpow.pop %v3639
  %v3641 = vadd.f32 %v3640, 1.0
  %v3642 = vrcp.pop %v3641
  %v3643 = vmul.f32 1.0, %v3642
  %v3644 = vxor.u32 %v3593, 2147483648
  %v3645 = vmul.f32 %v3644, 1.442695
  %v3646 = vpow.pop %v3645
  %v3647 = vadd.f32 %v3646, 1.0
  %v3648 = vrcp.pop %v3647
  %v3649 = vmul.f32 1.0, %v3648
  %v3650 = vtanh.pop %v3632
  %v3651 = vxor.u32 %v3634, 2147483648
  %v3652 = vmul.f32 %v3651, 1.442695
  %v3653 = vpow.pop %v3652
  %v3654 = vadd.f32 %v3653, 1.0
  %v3655 = vrcp.pop %v3654
  %v3656 = vmul.f32 1.0, %v3655
  %v3657 = vld [vmem:[#allocation3] sm:$0xff]
  %v3658 = vmul.f32 %v3649, %v3657
  %v3659 = vmul.f32 %v3643, %v3650
  %v3660 = vadd.f32 %v3658, %v3659
  %v3661 = vtanh.pop %v3660
  %v3662 = vmul.f32 %v3656, %v3661
  %3663 = vst [vmem:[#allocation3] sm:$0xff] %v3660
  %3664 = vst [vmem:[#allocation2] sm:$0xff] %v3662
  %v3665 = vpack.c.bf16 %v3662, %v3662
  %s3666 = scalar_lea.vmem %s3, 24
  %3667 = vst [vmem:[%s3666] sm:$0xf] %v3665
  %s3668 = scalar_lea.vmem %s0, 28
  %v3669 = vld [vmem:[%s3668] sm:$0xf]
  %v3670 = vld [vmem:[#allocation2] sm:$0xff]
  %v3671 = vpack.c.bf16 %v3670, %v3670
  %v3672 = vld [vmem:[%s1] sm:$0xff]
  %v3673 = vld [vmem:[%s1 + $0x8] sm:$0xff]
  %v3674 = vld [vmem:[%s1 + $0x10] sm:$0xff]
  %v3675 = vld [vmem:[%s1 + $0x18] sm:$0xff]
  %v3676 = vld [vmem:[%s1 + $0x20] sm:$0xff]
  %v3677 = vld [vmem:[%s1 + $0x28] sm:$0xff]
  %v3678 = vld [vmem:[%s1 + $0x30] sm:$0xff]
  %v3679 = vld [vmem:[%s1 + $0x38] sm:$0xff]
  %v3680 = vld [vmem:[%s1 + $0x40] sm:$0xff]
  %v3681 = vld [vmem:[%s1 + $0x48] sm:$0xff]
  %v3682 = vld [vmem:[%s1 + $0x50] sm:$0xff]
  %v3683 = vld [vmem:[%s1 + $0x58] sm:$0xff]
  %v3684 = vld [vmem:[%s1 + $0x60] sm:$0xff]
  %v3685 = vld [vmem:[%s1 + $0x68] sm:$0xff]
  %v3686 = vld [vmem:[%s1 + $0x70] sm:$0xff]
  %v3687 = vld [vmem:[%s1 + $0x78] sm:$0xff]
  %v3688 = vld [vmem:[%s1 + $0x80] sm:$0xff]
  %v3689 = vld [vmem:[%s1 + $0x88] sm:$0xff]
  %v3690 = vld [vmem:[%s1 + $0x90] sm:$0xff]
  %v3691 = vld [vmem:[%s1 + $0x98] sm:$0xff]
  %v3692 = vld [vmem:[%s1 + $0xa0] sm:$0xff]
  %v3693 = vld [vmem:[%s1 + $0xa8] sm:$0xff]
  %v3694 = vld [vmem:[%s1 + $0xb0] sm:$0xff]
  %v3695 = vld [vmem:[%s1 + $0xb8] sm:$0xff]
  %v3696 = vld [vmem:[%s1 + $0xc0] sm:$0xff]
  %v3697 = vld [vmem:[%s1 + $0xc8] sm:$0xff]
  %v3698 = vld [vmem:[%s1 + $0xd0] sm:$0xff]
  %v3699 = vld [vmem:[%s1 + $0xd8] sm:$0xff]
  %v3700 = vld [vmem:[%s1 + $0xe0] sm:$0xff]
  %v3701 = vld [vmem:[%s1 + $0xe8] sm:$0xff]
  %v3702 = vld [vmem:[%s1 + $0xf0] sm:$0xff]
  %v3703 = vld [vmem:[%s1 + $0xf8] sm:$0xff]
  %v3704 = vld [vmem:[%s1 + $0x100] sm:$0xff]
  %v3705 = vld [vmem:[%s1 + $0x108] sm:$0xff]
  %v3706 = vld [vmem:[%s1 + $0x110] sm:$0xff]
  %v3707 = vld [vmem:[%s1 + $0x118] sm:$0xff]
  %v3708 = vld [vmem:[%s1 + $0x120] sm:$0xff]
  %v3709 = vld [vmem:[%s1 + $0x128] sm:$0xff]
  %v3710 = vld [vmem:[%s1 + $0x130] sm:$0xff]
  %v3711 = vld [vmem:[%s1 + $0x138] sm:$0xff]
  %v3712 = vld [vmem:[%s1 + $0x140] sm:$0xff]
  %v3713 = vld [vmem:[%s1 + $0x148] sm:$0xff]
  %v3714 = vld [vmem:[%s1 + $0x150] sm:$0xff]
  %v3715 = vld [vmem:[%s1 + $0x158] sm:$0xff]
  %v3716 = vld [vmem:[%s1 + $0x160] sm:$0xff]
  %v3717 = vld [vmem:[%s1 + $0x168] sm:$0xff]
  %v3718 = vld [vmem:[%s1 + $0x170] sm:$0xff]
  %v3719 = vld [vmem:[%s1 + $0x178] sm:$0xff]
  %v3720 = vld [vmem:[%s1 + $0x180] sm:$0xff]
  %v3721 = vld [vmem:[%s1 + $0x188] sm:$0xff]
  %v3722 = vld [vmem:[%s1 + $0x190] sm:$0xff]
  %v3723 = vld [vmem:[%s1 + $0x198] sm:$0xff]
  %v3724 = vld [vmem:[%s1 + $0x1a0] sm:$0xff]
  %v3725 = vld [vmem:[%s1 + $0x1a8] sm:$0xff]
  %v3726 = vld [vmem:[%s1 + $0x1b0] sm:$0xff]
  %v3727 = vld [vmem:[%s1 + $0x1b8] sm:$0xff]
  %v3728 = vld [vmem:[%s1 + $0x1c0] sm:$0xff]
  %v3729 = vld [vmem:[%s1 + $0x1c8] sm:$0xff]
  %v3730 = vld [vmem:[%s1 + $0x1d0] sm:$0xff]
  %v3731 = vld [vmem:[%s1 + $0x1d8] sm:$0xff]
  %v3732 = vld [vmem:[%s1 + $0x1e0] sm:$0xff]
  %v3733 = vld [vmem:[%s1 + $0x1e8] sm:$0xff]
  %v3734 = vld [vmem:[%s1 + $0x1f0] sm:$0xff]
  %v3735 = vld [vmem:[%s1 + $0x1f8] sm:$0xff]
  %v3736 = vld [vmem:[%s2] sm:$0xf]
  %v3738 = vlaneseq
  %v3739 = vshrl.u32 %v3738, 7
  %v3740 = vsub.s32 0, %v3739
  %v3741 = vrot.slane %v3736, %v3740
  %v3742 = vlaneseq
  %v3743 = vshrl.u32 %v3742, 7
  %v3744 = vsub.s32 1, %v3743
  %v3745 = vrot.slane %v3736, %v3744
  %v3746 = vlaneseq
  %v3747 = vshrl.u32 %v3746, 7
  %v3748 = vsub.s32 2, %v3747
  %v3749 = vrot.slane %v3736, %v3748
  %v3750 = vlaneseq
  %v3751 = vshrl.u32 %v3750, 7
  %v3752 = vsub.s32 3, %v3751
  %v3753 = vrot.slane %v3736, %v3752
  %v3822 = vunpack.c.l.b16 %v3672
  %v3823 = vunpack.c.h.b16 %v3672
  %v3824 = vunpack.c.l.b16 %v3673
  %v3825 = vunpack.c.h.b16 %v3673
  %v3826 = vunpack.c.l.b16 %v3674
  %v3827 = vunpack.c.h.b16 %v3674
  %v3828 = vunpack.c.l.b16 %v3675
  %v3829 = vunpack.c.h.b16 %v3675
  %v3830 = vunpack.c.l.b16 %v3676
  %v3831 = vunpack.c.h.b16 %v3676
  %v3832 = vunpack.c.l.b16 %v3677
  %v3833 = vunpack.c.h.b16 %v3677
  %v3834 = vunpack.c.l.b16 %v3678
  %v3835 = vunpack.c.h.b16 %v3678
  %v3836 = vunpack.c.l.b16 %v3679
  %v3837 = vunpack.c.h.b16 %v3679
  %v3838 = vunpack.c.l.b16 %v3680
  %v3839 = vunpack.c.h.b16 %v3680
  %v3840 = vunpack.c.l.b16 %v3681
  %v3841 = vunpack.c.h.b16 %v3681
  %v3842 = vunpack.c.l.b16 %v3682
  %v3843 = vunpack.c.h.b16 %v3682
  %v3844 = vunpack.c.l.b16 %v3683
  %v3845 = vunpack.c.h.b16 %v3683
  %v3846 = vunpack.c.l.b16 %v3684
  %v3847 = vunpack.c.h.b16 %v3684
  %v3848 = vunpack.c.l.b16 %v3685
  %v3849 = vunpack.c.h.b16 %v3685
  %v3850 = vunpack.c.l.b16 %v3686
  %v3851 = vunpack.c.h.b16 %v3686
  %v3852 = vunpack.c.l.b16 %v3687
  %v3853 = vunpack.c.h.b16 %v3687
  %v3854 = vunpack.c.l.b16 %v3688
  %v3855 = vunpack.c.h.b16 %v3688
  %v3856 = vunpack.c.l.b16 %v3689
  %v3857 = vunpack.c.h.b16 %v3689
  %v3858 = vunpack.c.l.b16 %v3690
  %v3859 = vunpack.c.h.b16 %v3690
  %v3860 = vunpack.c.l.b16 %v3691
  %v3861 = vunpack.c.h.b16 %v3691
  %v3862 = vunpack.c.l.b16 %v3692
  %v3863 = vunpack.c.h.b16 %v3692
  %v3864 = vunpack.c.l.b16 %v3693
  %v3865 = vunpack.c.h.b16 %v3693
  %v3866 = vunpack.c.l.b16 %v3694
  %v3867 = vunpack.c.h.b16 %v3694
  %v3868 = vunpack.c.l.b16 %v3695
  %v3869 = vunpack.c.h.b16 %v3695
  %v3870 = vunpack.c.l.b16 %v3696
  %v3871 = vunpack.c.h.b16 %v3696
  %v3872 = vunpack.c.l.b16 %v3697
  %v3873 = vunpack.c.h.b16 %v3697
  %v3874 = vunpack.c.l.b16 %v3698
  %v3875 = vunpack.c.h.b16 %v3698
  %v3876 = vunpack.c.l.b16 %v3699
  %v3877 = vunpack.c.h.b16 %v3699
  %v3878 = vunpack.c.l.b16 %v3700
  %v3879 = vunpack.c.h.b16 %v3700
  %v3880 = vunpack.c.l.b16 %v3701
  %v3881 = vunpack.c.h.b16 %v3701
  %v3882 = vunpack.c.l.b16 %v3702
  %v3883 = vunpack.c.h.b16 %v3702
  %v3884 = vunpack.c.l.b16 %v3703
  %v3885 = vunpack.c.h.b16 %v3703
  %v3886 = vunpack.c.l.b16 %v3704
  %v3887 = vunpack.c.h.b16 %v3704
  %v3888 = vunpack.c.l.b16 %v3705
  %v3889 = vunpack.c.h.b16 %v3705
  %v3890 = vunpack.c.l.b16 %v3706
  %v3891 = vunpack.c.h.b16 %v3706
  %v3892 = vunpack.c.l.b16 %v3707
  %v3893 = vunpack.c.h.b16 %v3707
  %v3894 = vunpack.c.l.b16 %v3708
  %v3895 = vunpack.c.h.b16 %v3708
  %v3896 = vunpack.c.l.b16 %v3709
  %v3897 = vunpack.c.h.b16 %v3709
  %v3898 = vunpack.c.l.b16 %v3710
  %v3899 = vunpack.c.h.b16 %v3710
  %v3900 = vunpack.c.l.b16 %v3711
  %v3901 = vunpack.c.h.b16 %v3711
  %v3902 = vunpack.c.l.b16 %v3712
  %v3903 = vunpack.c.h.b16 %v3712
  %v3904 = vunpack.c.l.b16 %v3713
  %v3905 = vunpack.c.h.b16 %v3713
  %v3906 = vunpack.c.l.b16 %v3714
  %v3907 = vunpack.c.h.b16 %v3714
  %v3908 = vunpack.c.l.b16 %v3715
  %v3909 = vunpack.c.h.b16 %v3715
  %v3910 = vunpack.c.l.b16 %v3716
  %v3911 = vunpack.c.h.b16 %v3716
  %v3912 = vunpack.c.l.b16 %v3717
  %v3913 = vunpack.c.h.b16 %v3717
  %v3914 = vunpack.c.l.b16 %v3718
  %v3915 = vunpack.c.h.b16 %v3718
  %v3916 = vunpack.c.l.b16 %v3719
  %v3917 = vunpack.c.h.b16 %v3719
  %v3918 = vunpack.c.l.b16 %v3720
  %v3919 = vunpack.c.h.b16 %v3720
  %v3920 = vunpack.c.l.b16 %v3721
  %v3921 = vunpack.c.h.b16 %v3721
  %v3922 = vunpack.c.l.b16 %v3722
  %v3923 = vunpack.c.h.b16 %v3722
  %v3924 = vunpack.c.l.b16 %v3723
  %v3925 = vunpack.c.h.b16 %v3723
  %v3926 = vunpack.c.l.b16 %v3724
  %v3927 = vunpack.c.h.b16 %v3724
  %v3928 = vunpack.c.l.b16 %v3725
  %v3929 = vunpack.c.h.b16 %v3725
  %v3930 = vunpack.c.l.b16 %v3726
  %v3931 = vunpack.c.h.b16 %v3726
  %v3932 = vunpack.c.l.b16 %v3727
  %v3933 = vunpack.c.h.b16 %v3727
  %v3934 = vunpack.c.l.b16 %v3728
  %v3935 = vunpack.c.h.b16 %v3728
  %v3936 = vunpack.c.l.b16 %v3729
  %v3937 = vunpack.c.h.b16 %v3729
  %v3938 = vunpack.c.l.b16 %v3730
  %v3939 = vunpack.c.h.b16 %v3730
  %v3940 = vunpack.c.l.b16 %v3731
  %v3941 = vunpack.c.h.b16 %v3731
  %v3942 = vunpack.c.l.b16 %v3732
  %v3943 = vunpack.c.h.b16 %v3732
  %v3944 = vunpack.c.l.b16 %v3733
  %v3945 = vunpack.c.h.b16 %v3733
  %v3946 = vunpack.c.l.b16 %v3734
  %v3947 = vunpack.c.h.b16 %v3734
  %v3948 = vunpack.c.l.b16 %v3735
  %v3949 = vunpack.c.h.b16 %v3735
  %v3950 = vpack.c.b16 %v3826, %v3822
  %v3951 = vpack.c.b16 %v3827, %v3823
  %v3952 = vpack.c.b16 %v3828, %v3824
  %v3953 = vpack.c.b16 %v3829, %v3825
  %v3954 = vpack.c.b16 %v3834, %v3830
  %v3955 = vpack.c.b16 %v3835, %v3831
  %v3956 = vpack.c.b16 %v3836, %v3832
  %v3957 = vpack.c.b16 %v3837, %v3833
  %v3958 = vpack.c.b16 %v3842, %v3838
  %v3959 = vpack.c.b16 %v3843, %v3839
  %v3960 = vpack.c.b16 %v3844, %v3840
  %v3961 = vpack.c.b16 %v3845, %v3841
  %v3962 = vpack.c.b16 %v3850, %v3846
  %v3963 = vpack.c.b16 %v3851, %v3847
  %v3964 = vpack.c.b16 %v3852, %v3848
  %v3965 = vpack.c.b16 %v3853, %v3849
  %v3966 = vpack.c.b16 %v3858, %v3854
  %v3967 = vpack.c.b16 %v3859, %v3855
  %v3968 = vpack.c.b16 %v3860, %v3856
  %v3969 = vpack.c.b16 %v3861, %v3857
  %v3970 = vpack.c.b16 %v3866, %v3862
  %v3971 = vpack.c.b16 %v3867, %v3863
  %v3972 = vpack.c.b16 %v3868, %v3864
  %v3973 = vpack.c.b16 %v3869, %v3865
  %v3974 = vpack.c.b16 %v3874, %v3870
  %v3975 = vpack.c.b16 %v3875, %v3871
  %v3976 = vpack.c.b16 %v3876, %v3872
  %v3977 = vpack.c.b16 %v3877, %v3873
  %v3978 = vpack.c.b16 %v3882, %v3878
  %v3979 = vpack.c.b16 %v3883, %v3879
  %v3980 = vpack.c.b16 %v3884, %v3880
  %v3981 = vpack.c.b16 %v3885, %v3881
  %v3982 = vpack.c.b16 %v3890, %v3886
  %v3983 = vpack.c.b16 %v3891, %v3887
  %v3984 = vpack.c.b16 %v3892, %v3888
  %v3985 = vpack.c.b16 %v3893, %v3889
  %v3986 = vpack.c.b16 %v3898, %v3894
  %v3987 = vpack.c.b16 %v3899, %v3895
  %v3988 = vpack.c.b16 %v3900, %v3896
  %v3989 = vpack.c.b16 %v3901, %v3897
  %v3990 = vpack.c.b16 %v3906, %v3902
  %v3991 = vpack.c.b16 %v3907, %v3903
  %v3992 = vpack.c.b16 %v3908, %v3904
  %v3993 = vpack.c.b16 %v3909, %v3905
  %v3994 = vpack.c.b16 %v3914, %v3910
  %v3995 = vpack.c.b16 %v3915, %v3911
  %v3996 = vpack.c.b16 %v3916, %v3912
  %v3997 = vpack.c.b16 %v3917, %v3913
  %v3998 = vpack.c.b16 %v3922, %v3918
  %v3999 = vpack.c.b16 %v3923, %v3919
  %v4000 = vpack.c.b16 %v3924, %v3920
  %v4001 = vpack.c.b16 %v3925, %v3921
  %v4002 = vpack.c.b16 %v3930, %v3926
  %v4003 = vpack.c.b16 %v3931, %v3927
  %v4004 = vpack.c.b16 %v3932, %v3928
  %v4005 = vpack.c.b16 %v3933, %v3929
  %v4006 = vpack.c.b16 %v3938, %v3934
  %v4007 = vpack.c.b16 %v3939, %v3935
  %v4008 = vpack.c.b16 %v3940, %v3936
  %v4009 = vpack.c.b16 %v3941, %v3937
  %v4010 = vpack.c.b16 %v3946, %v3942
  %v4011 = vpack.c.b16 %v3947, %v3943
  %v4012 = vpack.c.b16 %v3948, %v3944
  %v4013 = vpack.c.b16 %v3949, %v3945
  %4078 = vmatprep.subr.bf16.mxu0 %v3951
  %4079 = vmatpush1.bf16.msra.mxu0 %v3950
  %4080 = vmatprep.subr.bf16.mxu0 %v3955
  %4081 = vmatpush1.bf16.msra.mxu0 %v3954
  %4082 = vmatprep.subr.bf16.mxu0 %v3959
  %4083 = vmatpush1.bf16.msra.mxu0 %v3958
  %4084 = vmatprep.subr.bf16.mxu0 %v3963
  %4085 = vmatpush1.bf16.msra.mxu0 %v3962
  %4086 = vmatprep.subr.bf16.mxu0 %v3967
  %4087 = vmatpush1.bf16.msra.mxu0 %v3966
  %4088 = vmatprep.subr.bf16.mxu0 %v3971
  %4089 = vmatpush1.bf16.msra.mxu0 %v3970
  %4090 = vmatprep.subr.bf16.mxu0 %v3975
  %4091 = vmatpush1.bf16.msra.mxu0 %v3974
  %4092 = vmatprep.subr.bf16.mxu0 %v3979
  %4093 = vmatpush1.bf16.msra.mxu0 %v3978
  %4094 = vmatprep.subr.bf16.mxu0 %v3983
  %4095 = vmatpush1.bf16.msra.mxu0 %v3982
  %4096 = vmatprep.subr.bf16.mxu0 %v3987
  %4097 = vmatpush1.bf16.msra.mxu0 %v3986
  %4098 = vmatprep.subr.bf16.mxu0 %v3991
  %4099 = vmatpush1.bf16.msra.mxu0 %v3990
  %4100 = vmatprep.subr.bf16.mxu0 %v3995
  %4101 = vmatpush1.bf16.msra.mxu0 %v3994
  %4102 = vmatprep.subr.bf16.mxu0 %v3999
  %4103 = vmatpush1.bf16.msra.mxu0 %v3998
  %4104 = vmatprep.subr.bf16.mxu0 %v4003
  %4105 = vmatpush1.bf16.msra.mxu0 %v4002
  %4106 = vmatprep.subr.bf16.mxu0 %v4007
  %4107 = vmatpush1.bf16.msra.mxu0 %v4006
  %4108 = vmatprep.subr.bf16.mxu0 %v4011
  %4109 = vmatpush1.bf16.msra.mxu0 %v4010
  %4110 = vmatprep.mubr.bf16.mxu0 %v3671
  %4111 = vmatmul.mubr.bf16.gmra.mrb[0].mxu0 %v3669
  %v4112 = vpop.f32.mrb[0].mxu0
  %v4113 = vadd.f32 %v3741, %v4112
  %v4114 = vpop.f32.mrb[0].mxu0
  %v4115 = vadd.f32 %v3745, %v4114
  %v4116 = vpop.f32.mrb[0].mxu0
  %v4117 = vpop.f32.mrb[0].mxu0
  %4118 = vdwg.mxu0
  %4119 = vmatprep.subr.bf16.mxu0 %v3953
  %4120 = vmatpush1.bf16.msra.mxu0 %v3952
  %4121 = vmatprep.subr.bf16.mxu0 %v3957
  %4122 = vmatpush1.bf16.msra.mxu0 %v3956
  %4123 = vmatprep.subr.bf16.mxu0 %v3961
  %4124 = vmatpush1.bf16.msra.mxu0 %v3960
  %4125 = vmatprep.subr.bf16.mxu0 %v3965
  %4126 = vmatpush1.bf16.msra.mxu0 %v3964
  %4127 = vmatprep.subr.bf16.mxu0 %v3969
  %4128 = vmatpush1.bf16.msra.mxu0 %v3968
  %4129 = vmatprep.subr.bf16.mxu0 %v3973
  %4130 = vmatpush1.bf16.msra.mxu0 %v3972
  %4131 = vmatprep.subr.bf16.mxu0 %v3977
  %4132 = vmatpush1.bf16.msra.mxu0 %v3976
  %4133 = vmatprep.subr.bf16.mxu0 %v3981
  %4134 = vmatpush1.bf16.msra.mxu0 %v3980
  %4135 = vmatprep.subr.bf16.mxu0 %v3985
  %4136 = vmatpush1.bf16.msra.mxu0 %v3984
  %4137 = vmatprep.subr.bf16.mxu0 %v3989
  %4138 = vmatpush1.bf16.msra.mxu0 %v3988
  %4139 = vmatprep.subr.bf16.mxu0 %v3993
  %4140 = vmatpush1.bf16.msra.mxu0 %v3992
  %4141 = vmatprep.subr.bf16.mxu0 %v3997
  %4142 = vmatpush1.bf16.msra.mxu0 %v3996
  %4143 = vmatprep.subr.bf16.mxu0 %v4001
  %4144 = vmatpush1.bf16.msra.mxu0 %v4000
  %4145 = vmatprep.subr.bf16.mxu0 %v4005
  %4146 = vmatpush1.bf16.msra.mxu0 %v4004
  %4147 = vmatprep.subr.bf16.mxu0 %v4009
  %4148 = vmatpush1.bf16.msra.mxu0 %v4008
  %4149 = vmatprep.subr.bf16.mxu0 %v4013
  %4150 = vmatpush1.bf16.msra.mxu0 %v4012
  %4151 = vmatprep.mubr.bf16.mxu0 %v3671
  %4152 = vmatmul.mubr.bf16.gmra.mrb[0].mxu0 %v3669
  %v4153 = vpop.f32.mrb[0].mxu0
  %v4154 = vadd.f32 %v3749, %v4153
  %v4155 = vpop.f32.mrb[0].mxu0
  %v4156 = vadd.f32 %v3753, %v4155
  %v4157 = vpop.f32.mrb[0].mxu0
  %v4158 = vpop.f32.mrb[0].mxu0
  %4159 = vdwg.mxu0
  %v4160 = vxor.u32 %v4113, 2147483648
  %v4161 = vmul.f32 %v4160, 1.442695
  %v4162 = vpow.pop %v4161
  %v4163 = vadd.f32 %v4162, 1.0
  %v4164 = vrcp.pop %v4163
  %v4165 = vmul.f32 1.0, %v4164
  %v4166 = vxor.u32 %v4115, 2147483648
  %v4167 = vmul.f32 %v4166, 1.442695
  %v4168 = vpow.pop %v4167
  %v4169 = vadd.f32 %v4168, 1.0
  %v4170 = vrcp.pop %v4169
  %v4171 = vmul.f32 1.0, %v4170
  %v4172 = vtanh.pop %v4154
  %v4173 = vxor.u32 %v4156, 2147483648
  %v4174 = vmul.f32 %v4173, 1.442695
  %v4175 = vpow.pop %v4174
  %v4176 = vadd.f32 %v4175, 1.0
  %v4177 = vrcp.pop %v4176
  %v4178 = vmul.f32 1.0, %v4177
  %v4179 = vld [vmem:[#allocation3] sm:$0xff]
  %v4180 = vmul.f32 %v4171, %v4179
  %v4181 = vmul.f32 %v4165, %v4172
  %v4182 = vadd.f32 %v4180, %v4181
  %v4183 = vtanh.pop %v4182
  %v4184 = vmul.f32 %v4178, %v4183
  %4185 = vst [vmem:[#allocation3] sm:$0xff] %v4182
  %4186 = vst [vmem:[#allocation2] sm:$0xff] %v4184
  %v4187 = vpack.c.bf16 %v4184, %v4184
  %s4188 = scalar_lea.vmem %s3, 28
  %4189 = vst [vmem:[%s4188] sm:$0xf] %v4187
  // Predicated region
  $region14: #{decoder_rnn_forward.2} parent=0 // pred_check
    _
  $region15: #{decoder_rnn_forward.2} parent=0 // pred_check_branch
    %4191 = sbr.rel (0) target = $region17
  $region16: #{decoder_rnn_forward.2} parent=0 // pred_region
    _
  $region17: #{decoder_rnn_forward.2} parent=0 // pred_fallthru
    _
  // Predicated region
  $region18: #{decoder_rnn_forward.2} parent=0 // pred_check
    _
  $region19: #{decoder_rnn_forward.2} parent=0 // pred_check_branch
    %4193 = sbr.rel (0) target = $region21
  $region20: #{decoder_rnn_forward.2} parent=0 // pred_region
    _
  $region21: #{decoder_rnn_forward.2} parent=0 // pred_fallthru
    _

</llo_original>
